<compile_context>
chip_gen: v7x
topology: tpu7x:2x2x1
jax: 0.10.0
libtpu: 0.0.40
codegen_flags: <defaults>
</compile_context>

<pallas_src>
import functools

import jax
import jax.numpy as jnp
from jax.experimental import pallas as pl
from jax.experimental.pallas import tpu as pltpu


def _round_up(x, m):
    return (x + m - 1) // m * m


# ---------------------------------------------------------------------------
# Generic tiled matmul-with-bias kernel:  out = A @ W + b   (bf16 in, f32 acc)
# Used for (1) the hoisted layer-0 input projection and (2) the fc head.
# ---------------------------------------------------------------------------
def _matmul_bias_kernel(a_ref, w_ref, b_ref, o_ref, acc_ref):
    @pl.when(pl.program_id(2) == 0)
    def _():
        acc_ref[...] = jnp.zeros_like(acc_ref)

    acc_ref[...] += jnp.dot(a_ref[...], w_ref[...],
                            preferred_element_type=jnp.float32)

    @pl.when(pl.program_id(2) == pl.num_programs(2) - 1)
    def _():
        o_ref[...] = (acc_ref[...] + b_ref[...]).astype(o_ref.dtype)


def matmul_bias(a, w, bias, *, tm=256, tn=256, tk=512):
    """a: (M, K) f32, w: (K, N) f32, bias: (1, N) or (N,). Returns (M, N) f32."""
    M, K = a.shape
    K2, N = w.shape
    assert K == K2
    bias = bias.reshape(1, N)

    # Tile sizes: lane (128) / sublane-pack (16 for bf16) aligned.
    tm = min(tm, _round_up(M, 16))
    tk = min(tk, _round_up(K, 128))
    tn = min(tn, _round_up(N, 128))
    Mp, Kp, Np = _round_up(M, tm), _round_up(K, tk), _round_up(N, tn)

    a_p = jnp.pad(a, ((0, Mp - M), (0, Kp - K))).astype(jnp.bfloat16)
    w_p = jnp.pad(w, ((0, Kp - K), (0, Np - N))).astype(jnp.bfloat16)
    b_p = jnp.pad(bias, ((0, 0), (0, Np - N))).astype(jnp.float32)

    out = pl.pallas_call(
        _matmul_bias_kernel,
        out_shape=jax.ShapeDtypeStruct((Mp, Np), jnp.float32),
        grid_spec=pltpu.PrefetchScalarGridSpec(
            num_scalar_prefetch=0,
            grid=(Mp // tm, Np // tn, Kp // tk),
            in_specs=[
                pl.BlockSpec((tm, tk), lambda i, j, k: (i, k)),
                pl.BlockSpec((tk, tn), lambda i, j, k: (k, j)),
                pl.BlockSpec((1, tn), lambda i, j, k: (0, j)),
            ],
            out_specs=pl.BlockSpec((tm, tn), lambda i, j, k: (i, j)),
            scratch_shapes=[pltpu.VMEM((tm, tn), jnp.float32)],
        ),
        compiler_params=pltpu.CompilerParams(
            dimension_semantics=("parallel", "parallel", "arbitrary"),
            vmem_limit_bytes=48 * 1024 * 1024,
        ),
    )(a_p, w_p, b_p)
    return out[:M, :N]


# ---------------------------------------------------------------------------
# Serial recurrence kernel: 2-layer LSTM, Tc timesteps per grid step.
# Inputs: precomputed layer-0 gate inputs xg0 = x @ W_ih0^T + b0  (f32),
#         recurrent weights (bf16), layer-1 bias (f32).
# Output: h1 (layer-1 hidden state) per timestep.
# ---------------------------------------------------------------------------
def _lstm_recurrent_kernel(xg0_ref, whh0_ref, wih1_ref, whh1_ref, b1_ref,
                           h1_out_ref, h0_sc, c0_sc, h1_sc, c1_sc):
    t_idx = pl.program_id(1)                 # sequential time-chunk axis
    Tc = xg0_ref.shape[0]
    Bt, Hp = h0_sc.shape

    @pl.when(t_idx == 0)
    def _():
        # init_hidden(): zeros for h and c of both layers (per batch block).
        h0_sc[...] = jnp.zeros_like(h0_sc)
        c0_sc[...] = jnp.zeros_like(c0_sc)
        h1_sc[...] = jnp.zeros_like(h1_sc)
        c1_sc[...] = jnp.zeros_like(c1_sc)

    # Hoist weight loads and the bias broadcast out of the timestep loop.
    whh0 = whh0_ref[...]                              # (Hp, 4Hp) bf16
    wih1 = wih1_ref[...]                              # (Hp, 4Hp) bf16
    whh1 = whh1_ref[...]                              # (Hp, 4Hp) bf16
    b1 = jnp.broadcast_to(b1_ref[...], (Bt, 4 * Hp))  # (Bt, 4Hp) f32

    def gates(pre):                                   # lane-aligned slices
        i = jax.nn.sigmoid(pre[:, 0 * Hp:1 * Hp])
        f = jax.nn.sigmoid(pre[:, 1 * Hp:2 * Hp])
        g = jnp.tanh(pre[:, 2 * Hp:3 * Hp])
        o = jax.nn.sigmoid(pre[:, 3 * Hp:4 * Hp])
        return i, f, g, o

    def step(lt, carry):
        h0, c0, h1, c1 = carry

        # ---- layer 0: input projection was precomputed; only h @ W_hh0 here.
        g0 = xg0_ref[lt] + jnp.dot(h0.astype(jnp.bfloat16), whh0,
                                   preferred_element_type=jnp.float32)
        i0, f0, gg0, o0 = gates(g0)
        c0 = f0 * c0 + i0 * gg0
        h0 = o0 * jnp.tanh(c0)

        # ---- layer 1 (inter-layer dropout is a no-op in eval mode) ----
        g1 = (jnp.dot(h0.astype(jnp.bfloat16), wih1,
                      preferred_element_type=jnp.float32)
              + jnp.dot(h1.astype(jnp.bfloat16), whh1,
                        preferred_element_type=jnp.float32)
              + b1)
        i1, f1, gg1, o1 = gates(g1)
        c1 = f1 * c1 + i1 * gg1
        h1 = o1 * jnp.tanh(c1)

        h1_out_ref[lt] = h1
        return h0, c0, h1, c1

    carry0 = (h0_sc[...], c0_sc[...], h1_sc[...], c1_sc[...])
    h0, c0, h1, c1 = jax.lax.fori_loop(0, Tc, step, carry0, unroll=True)

    # Persist state to the next time chunk.
    h0_sc[...] = h0
    c0_sc[...] = c0
    h1_sc[...] = h1
    c1_sc[...] = c1


# ---------------------------------------------------------------------------
# Parameter init mirroring DecoderRNN.__init__ / init_weights.
# ---------------------------------------------------------------------------
def init_decoder_params(key, embed_size, hidden_size, vocab_size):
    E, H, V = embed_size, hidden_size, vocab_size
    ks = jax.random.split(key, 6)

    def xavier_normal(k, shape):
        fan_out, fan_in = shape
        std = (2.0 / (fan_in + fan_out)) ** 0.5
        return std * jax.random.normal(k, shape, dtype=jnp.float32)

    # LSTM layer 0: W_ih (4H, E), W_hh (4H, H); layer 1: W_ih (4H, H), W_hh (4H, H)
    w_ih0 = xavier_normal(ks[0], (4 * H, E))
    w_hh0 = xavier_normal(ks[1], (4 * H, H))
    w_ih1 = xavier_normal(ks[2], (4 * H, H))
    w_hh1 = xavier_normal(ks[3], (4 * H, H))
    # biases all filled with 0.1; b_ih + b_hh are folded together (= 0.2).
    b0 = jnp.full((1, 4 * H), 0.2, dtype=jnp.float32)
    b1 = jnp.full((1, 4 * H), 0.2, dtype=jnp.float32)

    # fc: weight (V, H) xavier normal, bias filled with 0.1
    w_fc = xavier_normal(ks[4], (V, H))
    b_fc = jnp.full((1, V), 0.1, dtype=jnp.float32)

    # word embedding: default PyTorch init N(0, 1), shape (V, E)
    emb = jax.random.normal(ks[5], (V, E), dtype=jnp.float32)

    lstm_fc_params = (
        w_ih0.T, w_hh0.T, b0,      # pre-transposed for x @ W^T
        w_ih1.T, w_hh1.T, b1,
        w_fc.T, b_fc,
    )
    return emb, lstm_fc_params


@functools.partial(jax.jit, static_argnums=(4, 5))
def decoder_rnn_forward(features, captions, emb, lstm_fc_params,
                        hidden_size, vocab_size):
    """DecoderRNN.forward.

    features: (B, E) float32
    captions: (B, L) int32
    returns:  (B, L, V) float32
    """
    B, E = features.shape
    H, V = hidden_size, vocab_size
    (w_ih0_t, w_hh0_t, b0, w_ih1_t, w_hh1_t, b1, w_fc_t, b_fc) = lstm_fc_params

    # ---- glue (XLA): embedding gather + concat image feature ----
    feats = features[:, None, :]                        # (B, 1, E)
    cap = captions[:, :-1]
    cap_emb = jnp.take(emb, cap, axis=0)                # (B, L-1, E)
    x = jnp.concatenate([feats, cap_emb], axis=1)       # (B, T, E)
    T = x.shape[1]

    # ---- padded sizes (lane / sublane / tile alignment) ----
    Hp = _round_up(H, 128)              # lane-aligned gate slices
    Tc = min(8, T)                      # timesteps per grid step
    Tp = _round_up(T, Tc)
    Bt = min(128, _round_up(B, 8))      # batch tile (parallel grid axis)
    Bp = _round_up(B, Bt)

    # ---- pad LSTM params per-gate H -> Hp (zero padding is inert) ----
    def pad_gate_w(w, rows_to):         # (K, 4H) -> (rows_to, 4Hp)
        K = w.shape[0]
        w4 = w.reshape(K, 4, H)
        w4 = jnp.pad(w4, ((0, rows_to - K), (0, 0), (0, Hp - H)))
        return w4.reshape(rows_to, 4 * Hp)

    w_ih0_p = pad_gate_w(w_ih0_t, E)                         # (E, 4Hp) f32
    w_hh0_p = pad_gate_w(w_hh0_t, Hp).astype(jnp.bfloat16)   # (Hp, 4Hp)
    w_ih1_p = pad_gate_w(w_ih1_t, Hp).astype(jnp.bfloat16)
    w_hh1_p = pad_gate_w(w_hh1_t, Hp).astype(jnp.bfloat16)
    b0_p = pad_gate_w(b0, 1)                                 # (1, 4Hp) f32
    b1_p = pad_gate_w(b1, 1)                                 # (1, 4Hp) f32
    w_fc_p = jnp.pad(w_fc_t, ((0, Hp - H), (0, 0)))          # (Hp, V) f32

    # ---- 1) hoisted layer-0 input projection: one batched MXU matmul ----
    xg0 = matmul_bias(x.reshape(B * T, E), w_ih0_p, b0_p)    # (B*T, 4Hp) f32
    xg0 = xg0.reshape(B, T, 4 * Hp).transpose(1, 0, 2)       # (T, B, 4Hp)
    xg0 = jnp.pad(xg0, ((0, Tp - T), (0, Bp - B), (0, 0)))   # (Tp, Bp, 4Hp)

    # ---- 2) serial recurrence kernel -> h1 per timestep ----
    h1_tb = pl.pallas_call(
        _lstm_recurrent_kernel,
        out_shape=jax.ShapeDtypeStruct((Tp, Bp, Hp), jnp.float32),
        grid_spec=pltpu.PrefetchScalarGridSpec(
            num_scalar_prefetch=0,
            grid=(Bp // Bt, Tp // Tc),       # (parallel batch, sequential time)
            in_specs=[
                pl.BlockSpec((Tc, Bt, 4 * Hp), lambda b, t: (t, b, 0)),
                pl.BlockSpec((Hp, 4 * Hp), lambda b, t: (0, 0)),
                pl.BlockSpec((Hp, 4 * Hp), lambda b, t: (0, 0)),
                pl.BlockSpec((Hp, 4 * Hp), lambda b, t: (0, 0)),
                pl.BlockSpec((1, 4 * Hp), lambda b, t: (0, 0)),
            ],
            out_specs=pl.BlockSpec((Tc, Bt, Hp), lambda b, t: (t, b, 0)),
            scratch_shapes=[pltpu.VMEM((Bt, Hp), jnp.float32)] * 4,
        ),
        compiler_params=pltpu.CompilerParams(
            dimension_semantics=("parallel", "arbitrary"),
            vmem_limit_bytes=48 * 1024 * 1024,
        ),
    )(xg0, w_hh0_p, w_ih1_p, w_hh1_p, b1_p)

    # ---- 3) hoisted fc head: one batched matmul over all B*T rows ----
    # Transpose the small h1 tensor (not the big logits) to batch-major so the
    # logits come out directly in (B, T, V) layout.
    h1_bt = h1_tb[:T, :B].transpose(1, 0, 2).reshape(B * T, Hp)
    logits = matmul_bias(h1_bt, w_fc_p, b_fc)                # (B*T, V) f32
    return logits.reshape(B, T, V)


if __name__ == "__main__":
    batch_size = 2
    embed_size = 32
    hidden_size = 32
    vocab_size = 64
    seq_len = 8  # caption length -> T = 8 timesteps after concat

    key = jax.random.PRNGKey(0)
    k_feat, k_cap, k_param = jax.random.split(key, 3)

    features = jax.random.normal(k_feat, (batch_size, embed_size),
                                 dtype=jnp.float32)
    captions = jax.random.randint(k_cap, (batch_size, seq_len), 0, vocab_size,
                                  dtype=jnp.int32)

    emb, lstm_fc_params = init_decoder_params(
        k_param, embed_size, hidden_size, vocab_size)

    out = decoder_rnn_forward(features, captions, emb, lstm_fc_params,
                              hidden_size, vocab_size)
    out = jax.block_until_ready(out)

    assert out.shape == (batch_size, seq_len, vocab_size), out.shape
    assert out.dtype == jnp.float32
    assert bool(jnp.all(jnp.isfinite(out)))
    print("KERNEL_OK")
</pallas_src>

<mosaic_0001>
module attributes {stable_mosaic.version = 11 : i64} {
  func.func @_matmul_bias_kernel(%arg0: i32, %arg1: i32, %arg2: i32, %arg3: memref<16x128xbf16, #tpu.memory_space<vmem>>, %arg4: memref<128x256xbf16, #tpu.memory_space<vmem>>, %arg5: memref<1x256xf32, #tpu.memory_space<vmem>>, %arg6: memref<16x256xf32, #tpu.memory_space<vmem>>, %arg7: memref<16x256xf32, #tpu.memory_space<vmem>>) attributes {dimension_semantics = [#tpu.dimension_semantics<parallel>, #tpu.dimension_semantics<parallel>, #tpu.dimension_semantics<arbitrary>], iteration_bounds = array<i64: 1, 2, 1>, scalar_prefetch = 0 : i64, scratch_operands = 1 : i64, tpu.core_type = #tpu.core_type<tc>, window_params = [{transform_indices = @transform_0, window_bounds = array<i64: 16, 128>}, {transform_indices = @transform_1, window_bounds = array<i64: 128, 256>}, {transform_indices = @transform_2, window_bounds = array<i64: 1, 256>}, {transform_indices = @transform_3, window_bounds = array<i64: 16, 256>}]} {
    %c0_i32 = arith.constant 0 : i32
    %0 = arith.cmpi eq, %arg2, %c0_i32 : i32
    %1 = arith.extui %0 : i1 to i32
    %c0_i32_0 = arith.constant 0 : i32
    %2 = arith.cmpi ne, %1, %c0_i32_0 : i32
    scf.if %2 {
      %cst_10 = arith.constant 0.000000e+00 : f32
      %12 = vector.broadcast %cst_10 : f32 to vector<16x256xf32>
      %c0_11 = arith.constant 0 : index
      %c0_12 = arith.constant 0 : index
      %13 = vector.load %arg7[%c0_11, %c0_12] : memref<16x256xf32, #tpu.memory_space<vmem>>, vector<16x256xf32>
      tpu.vector_store %arg7[%c0_11, %c0_12], %12 {strides = array<i32>} : memref<16x256xf32, #tpu.memory_space<vmem>>, vector<16x256xf32>,
    } else {
    }
    %c0 = arith.constant 0 : index
    %c0_1 = arith.constant 0 : index
    %3 = vector.load %arg7[%c0, %c0_1] : memref<16x256xf32, #tpu.memory_space<vmem>>, vector<16x256xf32>
    %c0_2 = arith.constant 0 : index
    %c0_3 = arith.constant 0 : index
    %4 = vector.load %arg3[%c0_2, %c0_3] : memref<16x128xbf16, #tpu.memory_space<vmem>>, vector<16x128xbf16>
    %c0_4 = arith.constant 0 : index
    %c0_5 = arith.constant 0 : index
    %5 = vector.load %arg4[%c0_4, %c0_5] : memref<128x256xbf16, #tpu.memory_space<vmem>>, vector<128x256xbf16>
    %cst = arith.constant dense<0.000000e+00> : vector<16x256xf32>
    %6 = tpu.matmul %4, %5, %cst {dimension_numbers = #tpu.dot_dimension_numbers<[1], [0], [0], [1], [0, 0, 1, 1], [], []>} : vector<16x128xbf16>, vector<128x256xbf16>, vector<16x256xf32> -> vector<16x256xf32>
    %7 = arith.addf %3, %6 : vector<16x256xf32>
    %c0_6 = arith.constant 0 : index
    %c0_7 = arith.constant 0 : index
    %8 = vector.load %arg7[%c0_6, %c0_7] : memref<16x256xf32, #tpu.memory_space<vmem>>, vector<16x256xf32>
    tpu.vector_store %arg7[%c0_6, %c0_7], %7 {strides = array<i32>} : memref<16x256xf32, #tpu.memory_space<vmem>>, vector<16x256xf32>,
    %c0_i32_8 = arith.constant 0 : i32
    %9 = arith.cmpi eq, %arg2, %c0_i32_8 : i32
    %10 = arith.extui %9 : i1 to i32
    %c0_i32_9 = arith.constant 0 : i32
    %11 = arith.cmpi ne, %10, %c0_i32_9 : i32
    scf.if %11 {
      %c0_10 = arith.constant 0 : index
      %c0_11 = arith.constant 0 : index
      %12 = vector.load %arg7[%c0_10, %c0_11] : memref<16x256xf32, #tpu.memory_space<vmem>>, vector<16x256xf32>
      %c0_12 = arith.constant 0 : index
      %c0_13 = arith.constant 0 : index
      %13 = vector.load %arg5[%c0_12, %c0_13] : memref<1x256xf32, #tpu.memory_space<vmem>>, vector<1x256xf32>
      %14 = vector.broadcast %13 : vector<1x256xf32> to vector<16x256xf32>
      %15 = arith.addf %12, %14 : vector<16x256xf32>
      %c0_14 = arith.constant 0 : index
      %c0_15 = arith.constant 0 : index
      %16 = vector.load %arg6[%c0_14, %c0_15] : memref<16x256xf32, #tpu.memory_space<vmem>>, vector<16x256xf32>
      tpu.vector_store %arg6[%c0_14, %c0_15], %15 {strides = array<i32>} : memref<16x256xf32, #tpu.memory_space<vmem>>, vector<16x256xf32>,
    } else {
    }
    return
  }
  func.func @transform_0(%arg0: i32, %arg1: i32, %arg2: i32) -> (i32, i32) {
    %c0_i32 = arith.constant 0 : i32
    return %arg0, %arg2 : i32, i32
  }
  func.func @transform_1(%arg0: i32, %arg1: i32, %arg2: i32) -> (i32, i32) {
    %c0_i32 = arith.constant 0 : i32
    return %arg2, %arg1 : i32, i32
  }
  func.func @transform_2(%arg0: i32, %arg1: i32, %arg2: i32) -> (i32, i32) {
    %c0_i32 = arith.constant 0 : i32
    %c0_i32_0 = arith.constant 0 : i32
    return %c0_i32, %arg1 : i32, i32
  }
  func.func @transform_3(%arg0: i32, %arg1: i32, %arg2: i32) -> (i32, i32) {
    %c0_i32 = arith.constant 0 : i32
    return %arg0, %arg1 : i32, i32
  }
}

module attributes {stable_mosaic.version = 11 : i64} {
  func.func @_lstm_recurrent_kernel(%arg0: i32, %arg1: i32, %arg2: memref<8x8x512xf32, #tpu.memory_space<vmem>>, %arg3: memref<128x512xbf16, #tpu.memory_space<vmem>>, %arg4: memref<128x512xbf16, #tpu.memory_space<vmem>>, %arg5: memref<128x512xbf16, #tpu.memory_space<vmem>>, %arg6: memref<1x512xf32, #tpu.memory_space<vmem>>, %arg7: memref<8x8x128xf32, #tpu.memory_space<vmem>>, %arg8: memref<8x128xf32, #tpu.memory_space<vmem>>, %arg9: memref<8x128xf32, #tpu.memory_space<vmem>>, %arg10: memref<8x128xf32, #tpu.memory_space<vmem>>, %arg11: memref<8x128xf32, #tpu.memory_space<vmem>>) attributes {dimension_semantics = [#tpu.dimension_semantics<parallel>, #tpu.dimension_semantics<arbitrary>], iteration_bounds = array<i64: 1, 1>, scalar_prefetch = 0 : i64, scratch_operands = 4 : i64, tpu.core_type = #tpu.core_type<tc>, window_params = [{transform_indices = @transform_0, window_bounds = array<i64: 8, 8, 512>}, {pipeline_mode = #tpu.pipeline_mode<synchronous>, transform_indices = @transform_1, window_bounds = array<i64: 128, 512>}, {pipeline_mode = #tpu.pipeline_mode<synchronous>, transform_indices = @transform_2, window_bounds = array<i64: 128, 512>}, {pipeline_mode = #tpu.pipeline_mode<synchronous>, transform_indices = @transform_3, window_bounds = array<i64: 128, 512>}, {pipeline_mode = #tpu.pipeline_mode<synchronous>, transform_indices = @transform_4, window_bounds = array<i64: 1, 512>}, {transform_indices = @transform_5, window_bounds = array<i64: 8, 8, 128>}]} {
    %c0_i32 = arith.constant 0 : i32
    %0 = arith.cmpi eq, %arg1, %c0_i32 : i32
    %1 = arith.extui %0 : i1 to i32
    %c0_i32_0 = arith.constant 0 : i32
    %2 = arith.cmpi ne, %1, %c0_i32_0 : i32
    scf.if %2 {
      %cst_128 = arith.constant 0.000000e+00 : f32
      %545 = vector.broadcast %cst_128 : f32 to vector<8x128xf32>
      %c0_129 = arith.constant 0 : index
      %c0_130 = arith.constant 0 : index
      %546 = vector.load %arg8[%c0_129, %c0_130] : memref<8x128xf32, #tpu.memory_space<vmem>>, vector<8x128xf32>
      tpu.vector_store %arg8[%c0_129, %c0_130], %545 {strides = array<i32>} : memref<8x128xf32, #tpu.memory_space<vmem>>, vector<8x128xf32>,
      %cst_131 = arith.constant 0.000000e+00 : f32
      %547 = vector.broadcast %cst_131 : f32 to vector<8x128xf32>
      %c0_132 = arith.constant 0 : index
      %c0_133 = arith.constant 0 : index
      %548 = vector.load %arg9[%c0_132, %c0_133] : memref<8x128xf32, #tpu.memory_space<vmem>>, vector<8x128xf32>
      tpu.vector_store %arg9[%c0_132, %c0_133], %547 {strides = array<i32>} : memref<8x128xf32, #tpu.memory_space<vmem>>, vector<8x128xf32>,
      %cst_134 = arith.constant 0.000000e+00 : f32
      %549 = vector.broadcast %cst_134 : f32 to vector<8x128xf32>
      %c0_135 = arith.constant 0 : index
      %c0_136 = arith.constant 0 : index
      %550 = vector.load %arg10[%c0_135, %c0_136] : memref<8x128xf32, #tpu.memory_space<vmem>>, vector<8x128xf32>
      tpu.vector_store %arg10[%c0_135, %c0_136], %549 {strides = array<i32>} : memref<8x128xf32, #tpu.memory_space<vmem>>, vector<8x128xf32>,
      %cst_137 = arith.constant 0.000000e+00 : f32
      %551 = vector.broadcast %cst_137 : f32 to vector<8x128xf32>
      %c0_138 = arith.constant 0 : index
      %c0_139 = arith.constant 0 : index
      %552 = vector.load %arg11[%c0_138, %c0_139] : memref<8x128xf32, #tpu.memory_space<vmem>>, vector<8x128xf32>
      tpu.vector_store %arg11[%c0_138, %c0_139], %551 {strides = array<i32>} : memref<8x128xf32, #tpu.memory_space<vmem>>, vector<8x128xf32>,
    } else {
    }
    %c0 = arith.constant 0 : index
    %c0_1 = arith.constant 0 : index
    %3 = vector.load %arg3[%c0, %c0_1] : memref<128x512xbf16, #tpu.memory_space<vmem>>, vector<128x512xbf16>
    %c0_2 = arith.constant 0 : index
    %c0_3 = arith.constant 0 : index
    %4 = vector.load %arg4[%c0_2, %c0_3] : memref<128x512xbf16, #tpu.memory_space<vmem>>, vector<128x512xbf16>
    %c0_4 = arith.constant 0 : index
    %c0_5 = arith.constant 0 : index
    %5 = vector.load %arg5[%c0_4, %c0_5] : memref<128x512xbf16, #tpu.memory_space<vmem>>, vector<128x512xbf16>
    %c0_6 = arith.constant 0 : index
    %c0_7 = arith.constant 0 : index
    %6 = vector.load %arg6[%c0_6, %c0_7] : memref<1x512xf32, #tpu.memory_space<vmem>>, vector<1x512xf32>
    %7 = vector.shape_cast %6 : vector<1x512xf32> to vector<1x512xf32>
    %8 = vector.broadcast %7 : vector<1x512xf32> to vector<8x512xf32>
    %c0_8 = arith.constant 0 : index
    %c0_9 = arith.constant 0 : index
    %9 = vector.load %arg8[%c0_8, %c0_9] : memref<8x128xf32, #tpu.memory_space<vmem>>, vector<8x128xf32>
    %c0_10 = arith.constant 0 : index
    %c0_11 = arith.constant 0 : index
    %10 = vector.load %arg9[%c0_10, %c0_11] : memref<8x128xf32, #tpu.memory_space<vmem>>, vector<8x128xf32>
    %c0_12 = arith.constant 0 : index
    %c0_13 = arith.constant 0 : index
    %11 = vector.load %arg10[%c0_12, %c0_13] : memref<8x128xf32, #tpu.memory_space<vmem>>, vector<8x128xf32>
    %c0_14 = arith.constant 0 : index
    %c0_15 = arith.constant 0 : index
    %12 = vector.load %arg11[%c0_14, %c0_15] : memref<8x128xf32, #tpu.memory_space<vmem>>, vector<8x128xf32>
    %c0_i32_16 = arith.constant 0 : i32
    %13 = arith.index_cast %c0_i32_16 : i32 to index
    %c0_17 = arith.constant 0 : index
    %c0_18 = arith.constant 0 : index
    %14 = vector.load %arg2[%13, %c0_17, %c0_18] : memref<8x8x512xf32, #tpu.memory_space<vmem>>, vector<1x8x512xf32>
    %15 = vector.shape_cast %14 : vector<1x8x512xf32> to vector<8x512xf32>
    %16 = arith.truncf %9 : vector<8x128xf32> to vector<8x128xbf16>
    %cst = arith.constant dense<0.000000e+00> : vector<8x512xf32>
    %17 = tpu.matmul %16, %3, %cst {dimension_numbers = #tpu.dot_dimension_numbers<[1], [0], [0], [1], [0, 0, 1, 1], [], []>} : vector<8x128xbf16>, vector<128x512xbf16>, vector<8x512xf32> -> vector<8x512xf32>
    %18 = arith.addf %15, %17 : vector<8x512xf32>
    %19 = vector.extract_strided_slice %18 {offsets = [0, 0], sizes = [8, 128], strides = [1, 1]} : vector<8x512xf32> to vector<8x128xf32>
    %20 = arith.negf %19 : vector<8x128xf32>
    %21 = math.exp %20 : vector<8x128xf32>
    %cst_19 = arith.constant 1.000000e+00 : f32
    %22 = vector.broadcast %cst_19 : f32 to vector<8x128xf32>
    %23 = arith.addf %22, %21 : vector<8x128xf32>
    %24 = arith.divf %22, %23 : vector<8x128xf32>
    %25 = vector.extract_strided_slice %18 {offsets = [0, 128], sizes = [8, 128], strides = [1, 1]} : vector<8x512xf32> to vector<8x128xf32>
    %26 = arith.negf %25 : vector<8x128xf32>
    %27 = math.exp %26 : vector<8x128xf32>
    %cst_20 = arith.constant 1.000000e+00 : f32
    %28 = vector.broadcast %cst_20 : f32 to vector<8x128xf32>
    %29 = arith.addf %28, %27 : vector<8x128xf32>
    %30 = arith.divf %28, %29 : vector<8x128xf32>
    %31 = vector.extract_strided_slice %18 {offsets = [0, 256], sizes = [8, 128], strides = [1, 1]} : vector<8x512xf32> to vector<8x128xf32>
    %32 = math.tanh %31 : vector<8x128xf32>
    %33 = vector.extract_strided_slice %18 {offsets = [0, 384], sizes = [8, 128], strides = [1, 1]} : vector<8x512xf32> to vector<8x128xf32>
    %34 = arith.negf %33 : vector<8x128xf32>
    %35 = math.exp %34 : vector<8x128xf32>
    %cst_21 = arith.constant 1.000000e+00 : f32
    %36 = vector.broadcast %cst_21 : f32 to vector<8x128xf32>
    %37 = arith.addf %36, %35 : vector<8x128xf32>
    %38 = arith.divf %36, %37 : vector<8x128xf32>
    %39 = arith.mulf %30, %10 : vector<8x128xf32>
    %40 = arith.mulf %24, %32 : vector<8x128xf32>
    %41 = arith.addf %39, %40 : vector<8x128xf32>
    %42 = math.tanh %41 : vector<8x128xf32>
    %43 = arith.mulf %38, %42 : vector<8x128xf32>
    %44 = arith.truncf %43 : vector<8x128xf32> to vector<8x128xbf16>
    %cst_22 = arith.constant dense<0.000000e+00> : vector<8x512xf32>
    %45 = tpu.matmul %44, %4, %cst_22 {dimension_numbers = #tpu.dot_dimension_numbers<[1], [0], [0], [1], [0, 0, 1, 1], [], []>} : vector<8x128xbf16>, vector<128x512xbf16>, vector<8x512xf32> -> vector<8x512xf32>
    %46 = arith.truncf %11 : vector<8x128xf32> to vector<8x128xbf16>
    %cst_23 = arith.constant dense<0.000000e+00> : vector<8x512xf32>
    %47 = tpu.matmul %46, %5, %cst_23 {dimension_numbers = #tpu.dot_dimension_numbers<[1], [0], [0], [1], [0, 0, 1, 1], [], []>} : vector<8x128xbf16>, vector<128x512xbf16>, vector<8x512xf32> -> vector<8x512xf32>
    %48 = arith.addf %45, %47 : vector<8x512xf32>
    %49 = arith.addf %48, %8 : vector<8x512xf32>
    %50 = vector.extract_strided_slice %49 {offsets = [0, 0], sizes = [8, 128], strides = [1, 1]} : vector<8x512xf32> to vector<8x128xf32>
    %51 = arith.negf %50 : vector<8x128xf32>
    %52 = math.exp %51 : vector<8x128xf32>
    %cst_24 = arith.constant 1.000000e+00 : f32
    %53 = vector.broadcast %cst_24 : f32 to vector<8x128xf32>
    %54 = arith.addf %53, %52 : vector<8x128xf32>
    %55 = arith.divf %53, %54 : vector<8x128xf32>
    %56 = vector.extract_strided_slice %49 {offsets = [0, 128], sizes = [8, 128], strides = [1, 1]} : vector<8x512xf32> to vector<8x128xf32>
    %57 = arith.negf %56 : vector<8x128xf32>
    %58 = math.exp %57 : vector<8x128xf32>
    %cst_25 = arith.constant 1.000000e+00 : f32
    %59 = vector.broadcast %cst_25 : f32 to vector<8x128xf32>
    %60 = arith.addf %59, %58 : vector<8x128xf32>
    %61 = arith.divf %59, %60 : vector<8x128xf32>
    %62 = vector.extract_strided_slice %49 {offsets = [0, 256], sizes = [8, 128], strides = [1, 1]} : vector<8x512xf32> to vector<8x128xf32>
    %63 = math.tanh %62 : vector<8x128xf32>
    %64 = vector.extract_strided_slice %49 {offsets = [0, 384], sizes = [8, 128], strides = [1, 1]} : vector<8x512xf32> to vector<8x128xf32>
    %65 = arith.negf %64 : vector<8x128xf32>
    %66 = math.exp %65 : vector<8x128xf32>
    %cst_26 = arith.constant 1.000000e+00 : f32
    %67 = vector.broadcast %cst_26 : f32 to vector<8x128xf32>
    %68 = arith.addf %67, %66 : vector<8x128xf32>
    %69 = arith.divf %67, %68 : vector<8x128xf32>
    %70 = arith.mulf %61, %12 : vector<8x128xf32>
    %71 = arith.mulf %55, %63 : vector<8x128xf32>
    %72 = arith.addf %70, %71 : vector<8x128xf32>
    %73 = math.tanh %72 : vector<8x128xf32>
    %74 = arith.mulf %69, %73 : vector<8x128xf32>
    %75 = arith.index_cast %c0_i32_16 : i32 to index
    %c0_27 = arith.constant 0 : index
    %c0_28 = arith.constant 0 : index
    %76 = vector.load %arg7[%75, %c0_27, %c0_28] : memref<8x8x128xf32, #tpu.memory_space<vmem>>, vector<1x8x128xf32>
    %77 = vector.shape_cast %76 : vector<1x8x128xf32> to vector<8x128xf32>
    %78 = vector.shape_cast %74 : vector<8x128xf32> to vector<1x8x128xf32>
    tpu.vector_store %arg7[%75, %c0_27, %c0_28], %78 {strides = array<i32>} : memref<8x8x128xf32, #tpu.memory_space<vmem>>, vector<1x8x128xf32>,
    %c1_i32 = arith.constant 1 : i32
    %79 = arith.index_cast %c1_i32 : i32 to index
    %c0_29 = arith.constant 0 : index
    %c0_30 = arith.constant 0 : index
    %80 = vector.load %arg2[%79, %c0_29, %c0_30] : memref<8x8x512xf32, #tpu.memory_space<vmem>>, vector<1x8x512xf32>
    %81 = vector.shape_cast %80 : vector<1x8x512xf32> to vector<8x512xf32>
    %82 = arith.truncf %43 : vector<8x128xf32> to vector<8x128xbf16>
    %cst_31 = arith.constant dense<0.000000e+00> : vector<8x512xf32>
    %83 = tpu.matmul %82, %3, %cst_31 {dimension_numbers = #tpu.dot_dimension_numbers<[1], [0], [0], [1], [0, 0, 1, 1], [], []>} : vector<8x128xbf16>, vector<128x512xbf16>, vector<8x512xf32> -> vector<8x512xf32>
    %84 = arith.addf %81, %83 : vector<8x512xf32>
    %85 = vector.extract_strided_slice %84 {offsets = [0, 0], sizes = [8, 128], strides = [1, 1]} : vector<8x512xf32> to vector<8x128xf32>
    %86 = arith.negf %85 : vector<8x128xf32>
    %87 = math.exp %86 : vector<8x128xf32>
    %cst_32 = arith.constant 1.000000e+00 : f32
    %88 = vector.broadcast %cst_32 : f32 to vector<8x128xf32>
    %89 = arith.addf %88, %87 : vector<8x128xf32>
    %90 = arith.divf %88, %89 : vector<8x128xf32>
    %91 = vector.extract_strided_slice %84 {offsets = [0, 128], sizes = [8, 128], strides = [1, 1]} : vector<8x512xf32> to vector<8x128xf32>
    %92 = arith.negf %91 : vector<8x128xf32>
    %93 = math.exp %92 : vector<8x128xf32>
    %cst_33 = arith.constant 1.000000e+00 : f32
    %94 = vector.broadcast %cst_33 : f32 to vector<8x128xf32>
    %95 = arith.addf %94, %93 : vector<8x128xf32>
    %96 = arith.divf %94, %95 : vector<8x128xf32>
    %97 = vector.extract_strided_slice %84 {offsets = [0, 256], sizes = [8, 128], strides = [1, 1]} : vector<8x512xf32> to vector<8x128xf32>
    %98 = math.tanh %97 : vector<8x128xf32>
    %99 = vector.extract_strided_slice %84 {offsets = [0, 384], sizes = [8, 128], strides = [1, 1]} : vector<8x512xf32> to vector<8x128xf32>
    %100 = arith.negf %99 : vector<8x128xf32>
    %101 = math.exp %100 : vector<8x128xf32>
    %cst_34 = arith.constant 1.000000e+00 : f32
    %102 = vector.broadcast %cst_34 : f32 to vector<8x128xf32>
    %103 = arith.addf %102, %101 : vector<8x128xf32>
    %104 = arith.divf %102, %103 : vector<8x128xf32>
    %105 = arith.mulf %96, %41 : vector<8x128xf32>
    %106 = arith.mulf %90, %98 : vector<8x128xf32>
    %107 = arith.addf %105, %106 : vector<8x128xf32>
    %108 = math.tanh %107 : vector<8x128xf32>
    %109 = arith.mulf %104, %108 : vector<8x128xf32>
    %110 = arith.truncf %109 : vector<8x128xf32> to vector<8x128xbf16>
    %cst_35 = arith.constant dense<0.000000e+00> : vector<8x512xf32>
    %111 = tpu.matmul %110, %4, %cst_35 {dimension_numbers = #tpu.dot_dimension_numbers<[1], [0], [0], [1], [0, 0, 1, 1], [], []>} : vector<8x128xbf16>, vector<128x512xbf16>, vector<8x512xf32> -> vector<8x512xf32>
    %112 = arith.truncf %74 : vector<8x128xf32> to vector<8x128xbf16>
    %cst_36 = arith.constant dense<0.000000e+00> : vector<8x512xf32>
    %113 = tpu.matmul %112, %5, %cst_36 {dimension_numbers = #tpu.dot_dimension_numbers<[1], [0], [0], [1], [0, 0, 1, 1], [], []>} : vector<8x128xbf16>, vector<128x512xbf16>, vector<8x512xf32> -> vector<8x512xf32>
    %114 = arith.addf %111, %113 : vector<8x512xf32>
    %115 = arith.addf %114, %8 : vector<8x512xf32>
    %116 = vector.extract_strided_slice %115 {offsets = [0, 0], sizes = [8, 128], strides = [1, 1]} : vector<8x512xf32> to vector<8x128xf32>
    %117 = arith.negf %116 : vector<8x128xf32>
    %118 = math.exp %117 : vector<8x128xf32>
    %cst_37 = arith.constant 1.000000e+00 : f32
    %119 = vector.broadcast %cst_37 : f32 to vector<8x128xf32>
    %120 = arith.addf %119, %118 : vector<8x128xf32>
    %121 = arith.divf %119, %120 : vector<8x128xf32>
    %122 = vector.extract_strided_slice %115 {offsets = [0, 128], sizes = [8, 128], strides = [1, 1]} : vector<8x512xf32> to vector<8x128xf32>
    %123 = arith.negf %122 : vector<8x128xf32>
    %124 = math.exp %123 : vector<8x128xf32>
    %cst_38 = arith.constant 1.000000e+00 : f32
    %125 = vector.broadcast %cst_38 : f32 to vector<8x128xf32>
    %126 = arith.addf %125, %124 : vector<8x128xf32>
    %127 = arith.divf %125, %126 : vector<8x128xf32>
    %128 = vector.extract_strided_slice %115 {offsets = [0, 256], sizes = [8, 128], strides = [1, 1]} : vector<8x512xf32> to vector<8x128xf32>
    %129 = math.tanh %128 : vector<8x128xf32>
    %130 = vector.extract_strided_slice %115 {offsets = [0, 384], sizes = [8, 128], strides = [1, 1]} : vector<8x512xf32> to vector<8x128xf32>
    %131 = arith.negf %130 : vector<8x128xf32>
    %132 = math.exp %131 : vector<8x128xf32>
    %cst_39 = arith.constant 1.000000e+00 : f32
    %133 = vector.broadcast %cst_39 : f32 to vector<8x128xf32>
    %134 = arith.addf %133, %132 : vector<8x128xf32>
    %135 = arith.divf %133, %134 : vector<8x128xf32>
    %136 = arith.mulf %127, %72 : vector<8x128xf32>
    %137 = arith.mulf %121, %129 : vector<8x128xf32>
    %138 = arith.addf %136, %137 : vector<8x128xf32>
    %139 = math.tanh %138 : vector<8x128xf32>
    %140 = arith.mulf %135, %139 : vector<8x128xf32>
    %141 = arith.index_cast %c1_i32 : i32 to index
    %c0_40 = arith.constant 0 : index
    %c0_41 = arith.constant 0 : index
    %142 = vector.load %arg7[%141, %c0_40, %c0_41] : memref<8x8x128xf32, #tpu.memory_space<vmem>>, vector<1x8x128xf32>
    %143 = vector.shape_cast %142 : vector<1x8x128xf32> to vector<8x128xf32>
    %144 = vector.shape_cast %140 : vector<8x128xf32> to vector<1x8x128xf32>
    tpu.vector_store %arg7[%141, %c0_40, %c0_41], %144 {strides = array<i32>} : memref<8x8x128xf32, #tpu.memory_space<vmem>>, vector<1x8x128xf32>,
    %c2_i32 = arith.constant 2 : i32
    %145 = arith.index_cast %c2_i32 : i32 to index
    %c0_42 = arith.constant 0 : index
    %c0_43 = arith.constant 0 : index
    %146 = vector.load %arg2[%145, %c0_42, %c0_43] : memref<8x8x512xf32, #tpu.memory_space<vmem>>, vector<1x8x512xf32>
    %147 = vector.shape_cast %146 : vector<1x8x512xf32> to vector<8x512xf32>
    %148 = arith.truncf %109 : vector<8x128xf32> to vector<8x128xbf16>
    %cst_44 = arith.constant dense<0.000000e+00> : vector<8x512xf32>
    %149 = tpu.matmul %148, %3, %cst_44 {dimension_numbers = #tpu.dot_dimension_numbers<[1], [0], [0], [1], [0, 0, 1, 1], [], []>} : vector<8x128xbf16>, vector<128x512xbf16>, vector<8x512xf32> -> vector<8x512xf32>
    %150 = arith.addf %147, %149 : vector<8x512xf32>
    %151 = vector.extract_strided_slice %150 {offsets = [0, 0], sizes = [8, 128], strides = [1, 1]} : vector<8x512xf32> to vector<8x128xf32>
    %152 = arith.negf %151 : vector<8x128xf32>
    %153 = math.exp %152 : vector<8x128xf32>
    %cst_45 = arith.constant 1.000000e+00 : f32
    %154 = vector.broadcast %cst_45 : f32 to vector<8x128xf32>
    %155 = arith.addf %154, %153 : vector<8x128xf32>
    %156 = arith.divf %154, %155 : vector<8x128xf32>
    %157 = vector.extract_strided_slice %150 {offsets = [0, 128], sizes = [8, 128], strides = [1, 1]} : vector<8x512xf32> to vector<8x128xf32>
    %158 = arith.negf %157 : vector<8x128xf32>
    %159 = math.exp %158 : vector<8x128xf32>
    %cst_46 = arith.constant 1.000000e+00 : f32
    %160 = vector.broadcast %cst_46 : f32 to vector<8x128xf32>
    %161 = arith.addf %160, %159 : vector<8x128xf32>
    %162 = arith.divf %160, %161 : vector<8x128xf32>
    %163 = vector.extract_strided_slice %150 {offsets = [0, 256], sizes = [8, 128], strides = [1, 1]} : vector<8x512xf32> to vector<8x128xf32>
    %164 = math.tanh %163 : vector<8x128xf32>
    %165 = vector.extract_strided_slice %150 {offsets = [0, 384], sizes = [8, 128], strides = [1, 1]} : vector<8x512xf32> to vector<8x128xf32>
    %166 = arith.negf %165 : vector<8x128xf32>
    %167 = math.exp %166 : vector<8x128xf32>
    %cst_47 = arith.constant 1.000000e+00 : f32
    %168 = vector.broadcast %cst_47 : f32 to vector<8x128xf32>
    %169 = arith.addf %168, %167 : vector<8x128xf32>
    %170 = arith.divf %168, %169 : vector<8x128xf32>
    %171 = arith.mulf %162, %107 : vector<8x128xf32>
    %172 = arith.mulf %156, %164 : vector<8x128xf32>
    %173 = arith.addf %171, %172 : vector<8x128xf32>
    %174 = math.tanh %173 : vector<8x128xf32>
    %175 = arith.mulf %170, %174 : vector<8x128xf32>
    %176 = arith.truncf %175 : vector<8x128xf32> to vector<8x128xbf16>
    %cst_48 = arith.constant dense<0.000000e+00> : vector<8x512xf32>
    %177 = tpu.matmul %176, %4, %cst_48 {dimension_numbers = #tpu.dot_dimension_numbers<[1], [0], [0], [1], [0, 0, 1, 1], [], []>} : vector<8x128xbf16>, vector<128x512xbf16>, vector<8x512xf32> -> vector<8x512xf32>
    %178 = arith.truncf %140 : vector<8x128xf32> to vector<8x128xbf16>
    %cst_49 = arith.constant dense<0.000000e+00> : vector<8x512xf32>
    %179 = tpu.matmul %178, %5, %cst_49 {dimension_numbers = #tpu.dot_dimension_numbers<[1], [0], [0], [1], [0, 0, 1, 1], [], []>} : vector<8x128xbf16>, vector<128x512xbf16>, vector<8x512xf32> -> vector<8x512xf32>
    %180 = arith.addf %177, %179 : vector<8x512xf32>
    %181 = arith.addf %180, %8 : vector<8x512xf32>
    %182 = vector.extract_strided_slice %181 {offsets = [0, 0], sizes = [8, 128], strides = [1, 1]} : vector<8x512xf32> to vector<8x128xf32>
    %183 = arith.negf %182 : vector<8x128xf32>
    %184 = math.exp %183 : vector<8x128xf32>
    %cst_50 = arith.constant 1.000000e+00 : f32
    %185 = vector.broadcast %cst_50 : f32 to vector<8x128xf32>
    %186 = arith.addf %185, %184 : vector<8x128xf32>
    %187 = arith.divf %185, %186 : vector<8x128xf32>
    %188 = vector.extract_strided_slice %181 {offsets = [0, 128], sizes = [8, 128], strides = [1, 1]} : vector<8x512xf32> to vector<8x128xf32>
    %189 = arith.negf %188 : vector<8x128xf32>
    %190 = math.exp %189 : vector<8x128xf32>
    %cst_51 = arith.constant 1.000000e+00 : f32
    %191 = vector.broadcast %cst_51 : f32 to vector<8x128xf32>
    %192 = arith.addf %191, %190 : vector<8x128xf32>
    %193 = arith.divf %191, %192 : vector<8x128xf32>
    %194 = vector.extract_strided_slice %181 {offsets = [0, 256], sizes = [8, 128], strides = [1, 1]} : vector<8x512xf32> to vector<8x128xf32>
    %195 = math.tanh %194 : vector<8x128xf32>
    %196 = vector.extract_strided_slice %181 {offsets = [0, 384], sizes = [8, 128], strides = [1, 1]} : vector<8x512xf32> to vector<8x128xf32>
    %197 = arith.negf %196 : vector<8x128xf32>
    %198 = math.exp %197 : vector<8x128xf32>
    %cst_52 = arith.constant 1.000000e+00 : f32
    %199 = vector.broadcast %cst_52 : f32 to vector<8x128xf32>
    %200 = arith.addf %199, %198 : vector<8x128xf32>
    %201 = arith.divf %199, %200 : vector<8x128xf32>
    %202 = arith.mulf %193, %138 : vector<8x128xf32>
    %203 = arith.mulf %187, %195 : vector<8x128xf32>
    %204 = arith.addf %202, %203 : vector<8x128xf32>
    %205 = math.tanh %204 : vector<8x128xf32>
    %206 = arith.mulf %201, %205 : vector<8x128xf32>
    %207 = arith.index_cast %c2_i32 : i32 to index
    %c0_53 = arith.constant 0 : index
    %c0_54 = arith.constant 0 : index
    %208 = vector.load %arg7[%207, %c0_53, %c0_54] : memref<8x8x128xf32, #tpu.memory_space<vmem>>, vector<1x8x128xf32>
    %209 = vector.shape_cast %208 : vector<1x8x128xf32> to vector<8x128xf32>
    %210 = vector.shape_cast %206 : vector<8x128xf32> to vector<1x8x128xf32>
    tpu.vector_store %arg7[%207, %c0_53, %c0_54], %210 {strides = array<i32>} : memref<8x8x128xf32, #tpu.memory_space<vmem>>, vector<1x8x128xf32>,
    %c3_i32 = arith.constant 3 : i32
    %211 = arith.index_cast %c3_i32 : i32 to index
    %c0_55 = arith.constant 0 : index
    %c0_56 = arith.constant 0 : index
    %212 = vector.load %arg2[%211, %c0_55, %c0_56] : memref<8x8x512xf32, #tpu.memory_space<vmem>>, vector<1x8x512xf32>
    %213 = vector.shape_cast %212 : vector<1x8x512xf32> to vector<8x512xf32>
    %214 = arith.truncf %175 : vector<8x128xf32> to vector<8x128xbf16>
    %cst_57 = arith.constant dense<0.000000e+00> : vector<8x512xf32>
    %215 = tpu.matmul %214, %3, %cst_57 {dimension_numbers = #tpu.dot_dimension_numbers<[1], [0], [0], [1], [0, 0, 1, 1], [], []>} : vector<8x128xbf16>, vector<128x512xbf16>, vector<8x512xf32> -> vector<8x512xf32>
    %216 = arith.addf %213, %215 : vector<8x512xf32>
    %217 = vector.extract_strided_slice %216 {offsets = [0, 0], sizes = [8, 128], strides = [1, 1]} : vector<8x512xf32> to vector<8x128xf32>
    %218 = arith.negf %217 : vector<8x128xf32>
    %219 = math.exp %218 : vector<8x128xf32>
    %cst_58 = arith.constant 1.000000e+00 : f32
    %220 = vector.broadcast %cst_58 : f32 to vector<8x128xf32>
    %221 = arith.addf %220, %219 : vector<8x128xf32>
    %222 = arith.divf %220, %221 : vector<8x128xf32>
    %223 = vector.extract_strided_slice %216 {offsets = [0, 128], sizes = [8, 128], strides = [1, 1]} : vector<8x512xf32> to vector<8x128xf32>
    %224 = arith.negf %223 : vector<8x128xf32>
    %225 = math.exp %224 : vector<8x128xf32>
    %cst_59 = arith.constant 1.000000e+00 : f32
    %226 = vector.broadcast %cst_59 : f32 to vector<8x128xf32>
    %227 = arith.addf %226, %225 : vector<8x128xf32>
    %228 = arith.divf %226, %227 : vector<8x128xf32>
    %229 = vector.extract_strided_slice %216 {offsets = [0, 256], sizes = [8, 128], strides = [1, 1]} : vector<8x512xf32> to vector<8x128xf32>
    %230 = math.tanh %229 : vector<8x128xf32>
    %231 = vector.extract_strided_slice %216 {offsets = [0, 384], sizes = [8, 128], strides = [1, 1]} : vector<8x512xf32> to vector<8x128xf32>
    %232 = arith.negf %231 : vector<8x128xf32>
    %233 = math.exp %232 : vector<8x128xf32>
    %cst_60 = arith.constant 1.000000e+00 : f32
    %234 = vector.broadcast %cst_60 : f32 to vector<8x128xf32>
    %235 = arith.addf %234, %233 : vector<8x128xf32>
    %236 = arith.divf %234, %235 : vector<8x128xf32>
    %237 = arith.mulf %228, %173 : vector<8x128xf32>
    %238 = arith.mulf %222, %230 : vector<8x128xf32>
    %239 = arith.addf %237, %238 : vector<8x128xf32>
    %240 = math.tanh %239 : vector<8x128xf32>
    %241 = arith.mulf %236, %240 : vector<8x128xf32>
    %242 = arith.truncf %241 : vector<8x128xf32> to vector<8x128xbf16>
    %cst_61 = arith.constant dense<0.000000e+00> : vector<8x512xf32>
    %243 = tpu.matmul %242, %4, %cst_61 {dimension_numbers = #tpu.dot_dimension_numbers<[1], [0], [0], [1], [0, 0, 1, 1], [], []>} : vector<8x128xbf16>, vector<128x512xbf16>, vector<8x512xf32> -> vector<8x512xf32>
    %244 = arith.truncf %206 : vector<8x128xf32> to vector<8x128xbf16>
    %cst_62 = arith.constant dense<0.000000e+00> : vector<8x512xf32>
    %245 = tpu.matmul %244, %5, %cst_62 {dimension_numbers = #tpu.dot_dimension_numbers<[1], [0], [0], [1], [0, 0, 1, 1], [], []>} : vector<8x128xbf16>, vector<128x512xbf16>, vector<8x512xf32> -> vector<8x512xf32>
    %246 = arith.addf %243, %245 : vector<8x512xf32>
    %247 = arith.addf %246, %8 : vector<8x512xf32>
    %248 = vector.extract_strided_slice %247 {offsets = [0, 0], sizes = [8, 128], strides = [1, 1]} : vector<8x512xf32> to vector<8x128xf32>
    %249 = arith.negf %248 : vector<8x128xf32>
    %250 = math.exp %249 : vector<8x128xf32>
    %cst_63 = arith.constant 1.000000e+00 : f32
    %251 = vector.broadcast %cst_63 : f32 to vector<8x128xf32>
    %252 = arith.addf %251, %250 : vector<8x128xf32>
    %253 = arith.divf %251, %252 : vector<8x128xf32>
    %254 = vector.extract_strided_slice %247 {offsets = [0, 128], sizes = [8, 128], strides = [1, 1]} : vector<8x512xf32> to vector<8x128xf32>
    %255 = arith.negf %254 : vector<8x128xf32>
    %256 = math.exp %255 : vector<8x128xf32>
    %cst_64 = arith.constant 1.000000e+00 : f32
    %257 = vector.broadcast %cst_64 : f32 to vector<8x128xf32>
    %258 = arith.addf %257, %256 : vector<8x128xf32>
    %259 = arith.divf %257, %258 : vector<8x128xf32>
    %260 = vector.extract_strided_slice %247 {offsets = [0, 256], sizes = [8, 128], strides = [1, 1]} : vector<8x512xf32> to vector<8x128xf32>
    %261 = math.tanh %260 : vector<8x128xf32>
    %262 = vector.extract_strided_slice %247 {offsets = [0, 384], sizes = [8, 128], strides = [1, 1]} : vector<8x512xf32> to vector<8x128xf32>
    %263 = arith.negf %262 : vector<8x128xf32>
    %264 = math.exp %263 : vector<8x128xf32>
    %cst_65 = arith.constant 1.000000e+00 : f32
    %265 = vector.broadcast %cst_65 : f32 to vector<8x128xf32>
    %266 = arith.addf %265, %264 : vector<8x128xf32>
    %267 = arith.divf %265, %266 : vector<8x128xf32>
    %268 = arith.mulf %259, %204 : vector<8x128xf32>
    %269 = arith.mulf %253, %261 : vector<8x128xf32>
    %270 = arith.addf %268, %269 : vector<8x128xf32>
    %271 = math.tanh %270 : vector<8x128xf32>
    %272 = arith.mulf %267, %271 : vector<8x128xf32>
    %273 = arith.index_cast %c3_i32 : i32 to index
    %c0_66 = arith.constant 0 : index
    %c0_67 = arith.constant 0 : index
    %274 = vector.load %arg7[%273, %c0_66, %c0_67] : memref<8x8x128xf32, #tpu.memory_space<vmem>>, vector<1x8x128xf32>
    %275 = vector.shape_cast %274 : vector<1x8x128xf32> to vector<8x128xf32>
    %276 = vector.shape_cast %272 : vector<8x128xf32> to vector<1x8x128xf32>
    tpu.vector_store %arg7[%273, %c0_66, %c0_67], %276 {strides = array<i32>} : memref<8x8x128xf32, #tpu.memory_space<vmem>>, vector<1x8x128xf32>,
    %c4_i32 = arith.constant 4 : i32
    %277 = arith.index_cast %c4_i32 : i32 to index
    %c0_68 = arith.constant 0 : index
    %c0_69 = arith.constant 0 : index
    %278 = vector.load %arg2[%277, %c0_68, %c0_69] : memref<8x8x512xf32, #tpu.memory_space<vmem>>, vector<1x8x512xf32>
    %279 = vector.shape_cast %278 : vector<1x8x512xf32> to vector<8x512xf32>
    %280 = arith.truncf %241 : vector<8x128xf32> to vector<8x128xbf16>
    %cst_70 = arith.constant dense<0.000000e+00> : vector<8x512xf32>
    %281 = tpu.matmul %280, %3, %cst_70 {dimension_numbers = #tpu.dot_dimension_numbers<[1], [0], [0], [1], [0, 0, 1, 1], [], []>} : vector<8x128xbf16>, vector<128x512xbf16>, vector<8x512xf32> -> vector<8x512xf32>
    %282 = arith.addf %279, %281 : vector<8x512xf32>
    %283 = vector.extract_strided_slice %282 {offsets = [0, 0], sizes = [8, 128], strides = [1, 1]} : vector<8x512xf32> to vector<8x128xf32>
    %284 = arith.negf %283 : vector<8x128xf32>
    %285 = math.exp %284 : vector<8x128xf32>
    %cst_71 = arith.constant 1.000000e+00 : f32
    %286 = vector.broadcast %cst_71 : f32 to vector<8x128xf32>
    %287 = arith.addf %286, %285 : vector<8x128xf32>
    %288 = arith.divf %286, %287 : vector<8x128xf32>
    %289 = vector.extract_strided_slice %282 {offsets = [0, 128], sizes = [8, 128], strides = [1, 1]} : vector<8x512xf32> to vector<8x128xf32>
    %290 = arith.negf %289 : vector<8x128xf32>
    %291 = math.exp %290 : vector<8x128xf32>
    %cst_72 = arith.constant 1.000000e+00 : f32
    %292 = vector.broadcast %cst_72 : f32 to vector<8x128xf32>
    %293 = arith.addf %292, %291 : vector<8x128xf32>
    %294 = arith.divf %292, %293 : vector<8x128xf32>
    %295 = vector.extract_strided_slice %282 {offsets = [0, 256], sizes = [8, 128], strides = [1, 1]} : vector<8x512xf32> to vector<8x128xf32>
    %296 = math.tanh %295 : vector<8x128xf32>
    %297 = vector.extract_strided_slice %282 {offsets = [0, 384], sizes = [8, 128], strides = [1, 1]} : vector<8x512xf32> to vector<8x128xf32>
    %298 = arith.negf %297 : vector<8x128xf32>
    %299 = math.exp %298 : vector<8x128xf32>
    %cst_73 = arith.constant 1.000000e+00 : f32
    %300 = vector.broadcast %cst_73 : f32 to vector<8x128xf32>
    %301 = arith.addf %300, %299 : vector<8x128xf32>
    %302 = arith.divf %300, %301 : vector<8x128xf32>
    %303 = arith.mulf %294, %239 : vector<8x128xf32>
    %304 = arith.mulf %288, %296 : vector<8x128xf32>
    %305 = arith.addf %303, %304 : vector<8x128xf32>
    %306 = math.tanh %305 : vector<8x128xf32>
    %307 = arith.mulf %302, %306 : vector<8x128xf32>
    %308 = arith.truncf %307 : vector<8x128xf32> to vector<8x128xbf16>
    %cst_74 = arith.constant dense<0.000000e+00> : vector<8x512xf32>
    %309 = tpu.matmul %308, %4, %cst_74 {dimension_numbers = #tpu.dot_dimension_numbers<[1], [0], [0], [1], [0, 0, 1, 1], [], []>} : vector<8x128xbf16>, vector<128x512xbf16>, vector<8x512xf32> -> vector<8x512xf32>
    %310 = arith.truncf %272 : vector<8x128xf32> to vector<8x128xbf16>
    %cst_75 = arith.constant dense<0.000000e+00> : vector<8x512xf32>
    %311 = tpu.matmul %310, %5, %cst_75 {dimension_numbers = #tpu.dot_dimension_numbers<[1], [0], [0], [1], [0, 0, 1, 1], [], []>} : vector<8x128xbf16>, vector<128x512xbf16>, vector<8x512xf32> -> vector<8x512xf32>
    %312 = arith.addf %309, %311 : vector<8x512xf32>
    %313 = arith.addf %312, %8 : vector<8x512xf32>
    %314 = vector.extract_strided_slice %313 {offsets = [0, 0], sizes = [8, 128], strides = [1, 1]} : vector<8x512xf32> to vector<8x128xf32>
    %315 = arith.negf %314 : vector<8x128xf32>
    %316 = math.exp %315 : vector<8x128xf32>
    %cst_76 = arith.constant 1.000000e+00 : f32
    %317 = vector.broadcast %cst_76 : f32 to vector<8x128xf32>
    %318 = arith.addf %317, %316 : vector<8x128xf32>
    %319 = arith.divf %317, %318 : vector<8x128xf32>
    %320 = vector.extract_strided_slice %313 {offsets = [0, 128], sizes = [8, 128], strides = [1, 1]} : vector<8x512xf32> to vector<8x128xf32>
    %321 = arith.negf %320 : vector<8x128xf32>
    %322 = math.exp %321 : vector<8x128xf32>
    %cst_77 = arith.constant 1.000000e+00 : f32
    %323 = vector.broadcast %cst_77 : f32 to vector<8x128xf32>
    %324 = arith.addf %323, %322 : vector<8x128xf32>
    %325 = arith.divf %323, %324 : vector<8x128xf32>
    %326 = vector.extract_strided_slice %313 {offsets = [0, 256], sizes = [8, 128], strides = [1, 1]} : vector<8x512xf32> to vector<8x128xf32>
    %327 = math.tanh %326 : vector<8x128xf32>
    %328 = vector.extract_strided_slice %313 {offsets = [0, 384], sizes = [8, 128], strides = [1, 1]} : vector<8x512xf32> to vector<8x128xf32>
    %329 = arith.negf %328 : vector<8x128xf32>
    %330 = math.exp %329 : vector<8x128xf32>
    %cst_78 = arith.constant 1.000000e+00 : f32
    %331 = vector.broadcast %cst_78 : f32 to vector<8x128xf32>
    %332 = arith.addf %331, %330 : vector<8x128xf32>
    %333 = arith.divf %331, %332 : vector<8x128xf32>
    %334 = arith.mulf %325, %270 : vector<8x128xf32>
    %335 = arith.mulf %319, %327 : vector<8x128xf32>
    %336 = arith.addf %334, %335 : vector<8x128xf32>
    %337 = math.tanh %336 : vector<8x128xf32>
    %338 = arith.mulf %333, %337 : vector<8x128xf32>
    %339 = arith.index_cast %c4_i32 : i32 to index
    %c0_79 = arith.constant 0 : index
    %c0_80 = arith.constant 0 : index
    %340 = vector.load %arg7[%339, %c0_79, %c0_80] : memref<8x8x128xf32, #tpu.memory_space<vmem>>, vector<1x8x128xf32>
    %341 = vector.shape_cast %340 : vector<1x8x128xf32> to vector<8x128xf32>
    %342 = vector.shape_cast %338 : vector<8x128xf32> to vector<1x8x128xf32>
    tpu.vector_store %arg7[%339, %c0_79, %c0_80], %342 {strides = array<i32>} : memref<8x8x128xf32, #tpu.memory_space<vmem>>, vector<1x8x128xf32>,
    %c5_i32 = arith.constant 5 : i32
    %343 = arith.index_cast %c5_i32 : i32 to index
    %c0_81 = arith.constant 0 : index
    %c0_82 = arith.constant 0 : index
    %344 = vector.load %arg2[%343, %c0_81, %c0_82] : memref<8x8x512xf32, #tpu.memory_space<vmem>>, vector<1x8x512xf32>
    %345 = vector.shape_cast %344 : vector<1x8x512xf32> to vector<8x512xf32>
    %346 = arith.truncf %307 : vector<8x128xf32> to vector<8x128xbf16>
    %cst_83 = arith.constant dense<0.000000e+00> : vector<8x512xf32>
    %347 = tpu.matmul %346, %3, %cst_83 {dimension_numbers = #tpu.dot_dimension_numbers<[1], [0], [0], [1], [0, 0, 1, 1], [], []>} : vector<8x128xbf16>, vector<128x512xbf16>, vector<8x512xf32> -> vector<8x512xf32>
    %348 = arith.addf %345, %347 : vector<8x512xf32>
    %349 = vector.extract_strided_slice %348 {offsets = [0, 0], sizes = [8, 128], strides = [1, 1]} : vector<8x512xf32> to vector<8x128xf32>
    %350 = arith.negf %349 : vector<8x128xf32>
    %351 = math.exp %350 : vector<8x128xf32>
    %cst_84 = arith.constant 1.000000e+00 : f32
    %352 = vector.broadcast %cst_84 : f32 to vector<8x128xf32>
    %353 = arith.addf %352, %351 : vector<8x128xf32>
    %354 = arith.divf %352, %353 : vector<8x128xf32>
    %355 = vector.extract_strided_slice %348 {offsets = [0, 128], sizes = [8, 128], strides = [1, 1]} : vector<8x512xf32> to vector<8x128xf32>
    %356 = arith.negf %355 : vector<8x128xf32>
    %357 = math.exp %356 : vector<8x128xf32>
    %cst_85 = arith.constant 1.000000e+00 : f32
    %358 = vector.broadcast %cst_85 : f32 to vector<8x128xf32>
    %359 = arith.addf %358, %357 : vector<8x128xf32>
    %360 = arith.divf %358, %359 : vector<8x128xf32>
    %361 = vector.extract_strided_slice %348 {offsets = [0, 256], sizes = [8, 128], strides = [1, 1]} : vector<8x512xf32> to vector<8x128xf32>
    %362 = math.tanh %361 : vector<8x128xf32>
    %363 = vector.extract_strided_slice %348 {offsets = [0, 384], sizes = [8, 128], strides = [1, 1]} : vector<8x512xf32> to vector<8x128xf32>
    %364 = arith.negf %363 : vector<8x128xf32>
    %365 = math.exp %364 : vector<8x128xf32>
    %cst_86 = arith.constant 1.000000e+00 : f32
    %366 = vector.broadcast %cst_86 : f32 to vector<8x128xf32>
    %367 = arith.addf %366, %365 : vector<8x128xf32>
    %368 = arith.divf %366, %367 : vector<8x128xf32>
    %369 = arith.mulf %360, %305 : vector<8x128xf32>
    %370 = arith.mulf %354, %362 : vector<8x128xf32>
    %371 = arith.addf %369, %370 : vector<8x128xf32>
    %372 = math.tanh %371 : vector<8x128xf32>
    %373 = arith.mulf %368, %372 : vector<8x128xf32>
    %374 = arith.truncf %373 : vector<8x128xf32> to vector<8x128xbf16>
    %cst_87 = arith.constant dense<0.000000e+00> : vector<8x512xf32>
    %375 = tpu.matmul %374, %4, %cst_87 {dimension_numbers = #tpu.dot_dimension_numbers<[1], [0], [0], [1], [0, 0, 1, 1], [], []>} : vector<8x128xbf16>, vector<128x512xbf16>, vector<8x512xf32> -> vector<8x512xf32>
    %376 = arith.truncf %338 : vector<8x128xf32> to vector<8x128xbf16>
    %cst_88 = arith.constant dense<0.000000e+00> : vector<8x512xf32>
    %377 = tpu.matmul %376, %5, %cst_88 {dimension_numbers = #tpu.dot_dimension_numbers<[1], [0], [0], [1], [0, 0, 1, 1], [], []>} : vector<8x128xbf16>, vector<128x512xbf16>, vector<8x512xf32> -> vector<8x512xf32>
    %378 = arith.addf %375, %377 : vector<8x512xf32>
    %379 = arith.addf %378, %8 : vector<8x512xf32>
    %380 = vector.extract_strided_slice %379 {offsets = [0, 0], sizes = [8, 128], strides = [1, 1]} : vector<8x512xf32> to vector<8x128xf32>
    %381 = arith.negf %380 : vector<8x128xf32>
    %382 = math.exp %381 : vector<8x128xf32>
    %cst_89 = arith.constant 1.000000e+00 : f32
    %383 = vector.broadcast %cst_89 : f32 to vector<8x128xf32>
    %384 = arith.addf %383, %382 : vector<8x128xf32>
    %385 = arith.divf %383, %384 : vector<8x128xf32>
    %386 = vector.extract_strided_slice %379 {offsets = [0, 128], sizes = [8, 128], strides = [1, 1]} : vector<8x512xf32> to vector<8x128xf32>
    %387 = arith.negf %386 : vector<8x128xf32>
    %388 = math.exp %387 : vector<8x128xf32>
    %cst_90 = arith.constant 1.000000e+00 : f32
    %389 = vector.broadcast %cst_90 : f32 to vector<8x128xf32>
    %390 = arith.addf %389, %388 : vector<8x128xf32>
    %391 = arith.divf %389, %390 : vector<8x128xf32>
    %392 = vector.extract_strided_slice %379 {offsets = [0, 256], sizes = [8, 128], strides = [1, 1]} : vector<8x512xf32> to vector<8x128xf32>
    %393 = math.tanh %392 : vector<8x128xf32>
    %394 = vector.extract_strided_slice %379 {offsets = [0, 384], sizes = [8, 128], strides = [1, 1]} : vector<8x512xf32> to vector<8x128xf32>
    %395 = arith.negf %394 : vector<8x128xf32>
    %396 = math.exp %395 : vector<8x128xf32>
    %cst_91 = arith.constant 1.000000e+00 : f32
    %397 = vector.broadcast %cst_91 : f32 to vector<8x128xf32>
    %398 = arith.addf %397, %396 : vector<8x128xf32>
    %399 = arith.divf %397, %398 : vector<8x128xf32>
    %400 = arith.mulf %391, %336 : vector<8x128xf32>
    %401 = arith.mulf %385, %393 : vector<8x128xf32>
    %402 = arith.addf %400, %401 : vector<8x128xf32>
    %403 = math.tanh %402 : vector<8x128xf32>
    %404 = arith.mulf %399, %403 : vector<8x128xf32>
    %405 = arith.index_cast %c5_i32 : i32 to index
    %c0_92 = arith.constant 0 : index
    %c0_93 = arith.constant 0 : index
    %406 = vector.load %arg7[%405, %c0_92, %c0_93] : memref<8x8x128xf32, #tpu.memory_space<vmem>>, vector<1x8x128xf32>
    %407 = vector.shape_cast %406 : vector<1x8x128xf32> to vector<8x128xf32>
    %408 = vector.shape_cast %404 : vector<8x128xf32> to vector<1x8x128xf32>
    tpu.vector_store %arg7[%405, %c0_92, %c0_93], %408 {strides = array<i32>} : memref<8x8x128xf32, #tpu.memory_space<vmem>>, vector<1x8x128xf32>,
    %c6_i32 = arith.constant 6 : i32
    %409 = arith.index_cast %c6_i32 : i32 to index
    %c0_94 = arith.constant 0 : index
    %c0_95 = arith.constant 0 : index
    %410 = vector.load %arg2[%409, %c0_94, %c0_95] : memref<8x8x512xf32, #tpu.memory_space<vmem>>, vector<1x8x512xf32>
    %411 = vector.shape_cast %410 : vector<1x8x512xf32> to vector<8x512xf32>
    %412 = arith.truncf %373 : vector<8x128xf32> to vector<8x128xbf16>
    %cst_96 = arith.constant dense<0.000000e+00> : vector<8x512xf32>
    %413 = tpu.matmul %412, %3, %cst_96 {dimension_numbers = #tpu.dot_dimension_numbers<[1], [0], [0], [1], [0, 0, 1, 1], [], []>} : vector<8x128xbf16>, vector<128x512xbf16>, vector<8x512xf32> -> vector<8x512xf32>
    %414 = arith.addf %411, %413 : vector<8x512xf32>
    %415 = vector.extract_strided_slice %414 {offsets = [0, 0], sizes = [8, 128], strides = [1, 1]} : vector<8x512xf32> to vector<8x128xf32>
    %416 = arith.negf %415 : vector<8x128xf32>
    %417 = math.exp %416 : vector<8x128xf32>
    %cst_97 = arith.constant 1.000000e+00 : f32
    %418 = vector.broadcast %cst_97 : f32 to vector<8x128xf32>
    %419 = arith.addf %418, %417 : vector<8x128xf32>
    %420 = arith.divf %418, %419 : vector<8x128xf32>
    %421 = vector.extract_strided_slice %414 {offsets = [0, 128], sizes = [8, 128], strides = [1, 1]} : vector<8x512xf32> to vector<8x128xf32>
    %422 = arith.negf %421 : vector<8x128xf32>
    %423 = math.exp %422 : vector<8x128xf32>
    %cst_98 = arith.constant 1.000000e+00 : f32
    %424 = vector.broadcast %cst_98 : f32 to vector<8x128xf32>
    %425 = arith.addf %424, %423 : vector<8x128xf32>
    %426 = arith.divf %424, %425 : vector<8x128xf32>
    %427 = vector.extract_strided_slice %414 {offsets = [0, 256], sizes = [8, 128], strides = [1, 1]} : vector<8x512xf32> to vector<8x128xf32>
    %428 = math.tanh %427 : vector<8x128xf32>
    %429 = vector.extract_strided_slice %414 {offsets = [0, 384], sizes = [8, 128], strides = [1, 1]} : vector<8x512xf32> to vector<8x128xf32>
    %430 = arith.negf %429 : vector<8x128xf32>
    %431 = math.exp %430 : vector<8x128xf32>
    %cst_99 = arith.constant 1.000000e+00 : f32
    %432 = vector.broadcast %cst_99 : f32 to vector<8x128xf32>
    %433 = arith.addf %432, %431 : vector<8x128xf32>
    %434 = arith.divf %432, %433 : vector<8x128xf32>
    %435 = arith.mulf %426, %371 : vector<8x128xf32>
    %436 = arith.mulf %420, %428 : vector<8x128xf32>
    %437 = arith.addf %435, %436 : vector<8x128xf32>
    %438 = math.tanh %437 : vector<8x128xf32>
    %439 = arith.mulf %434, %438 : vector<8x128xf32>
    %440 = arith.truncf %439 : vector<8x128xf32> to vector<8x128xbf16>
    %cst_100 = arith.constant dense<0.000000e+00> : vector<8x512xf32>
    %441 = tpu.matmul %440, %4, %cst_100 {dimension_numbers = #tpu.dot_dimension_numbers<[1], [0], [0], [1], [0, 0, 1, 1], [], []>} : vector<8x128xbf16>, vector<128x512xbf16>, vector<8x512xf32> -> vector<8x512xf32>
    %442 = arith.truncf %404 : vector<8x128xf32> to vector<8x128xbf16>
    %cst_101 = arith.constant dense<0.000000e+00> : vector<8x512xf32>
    %443 = tpu.matmul %442, %5, %cst_101 {dimension_numbers = #tpu.dot_dimension_numbers<[1], [0], [0], [1], [0, 0, 1, 1], [], []>} : vector<8x128xbf16>, vector<128x512xbf16>, vector<8x512xf32> -> vector<8x512xf32>
    %444 = arith.addf %441, %443 : vector<8x512xf32>
    %445 = arith.addf %444, %8 : vector<8x512xf32>
    %446 = vector.extract_strided_slice %445 {offsets = [0, 0], sizes = [8, 128], strides = [1, 1]} : vector<8x512xf32> to vector<8x128xf32>
    %447 = arith.negf %446 : vector<8x128xf32>
    %448 = math.exp %447 : vector<8x128xf32>
    %cst_102 = arith.constant 1.000000e+00 : f32
    %449 = vector.broadcast %cst_102 : f32 to vector<8x128xf32>
    %450 = arith.addf %449, %448 : vector<8x128xf32>
    %451 = arith.divf %449, %450 : vector<8x128xf32>
    %452 = vector.extract_strided_slice %445 {offsets = [0, 128], sizes = [8, 128], strides = [1, 1]} : vector<8x512xf32> to vector<8x128xf32>
    %453 = arith.negf %452 : vector<8x128xf32>
    %454 = math.exp %453 : vector<8x128xf32>
    %cst_103 = arith.constant 1.000000e+00 : f32
    %455 = vector.broadcast %cst_103 : f32 to vector<8x128xf32>
    %456 = arith.addf %455, %454 : vector<8x128xf32>
    %457 = arith.divf %455, %456 : vector<8x128xf32>
    %458 = vector.extract_strided_slice %445 {offsets = [0, 256], sizes = [8, 128], strides = [1, 1]} : vector<8x512xf32> to vector<8x128xf32>
    %459 = math.tanh %458 : vector<8x128xf32>
    %460 = vector.extract_strided_slice %445 {offsets = [0, 384], sizes = [8, 128], strides = [1, 1]} : vector<8x512xf32> to vector<8x128xf32>
    %461 = arith.negf %460 : vector<8x128xf32>
    %462 = math.exp %461 : vector<8x128xf32>
    %cst_104 = arith.constant 1.000000e+00 : f32
    %463 = vector.broadcast %cst_104 : f32 to vector<8x128xf32>
    %464 = arith.addf %463, %462 : vector<8x128xf32>
    %465 = arith.divf %463, %464 : vector<8x128xf32>
    %466 = arith.mulf %457, %402 : vector<8x128xf32>
    %467 = arith.mulf %451, %459 : vector<8x128xf32>
    %468 = arith.addf %466, %467 : vector<8x128xf32>
    %469 = math.tanh %468 : vector<8x128xf32>
    %470 = arith.mulf %465, %469 : vector<8x128xf32>
    %471 = arith.index_cast %c6_i32 : i32 to index
    %c0_105 = arith.constant 0 : index
    %c0_106 = arith.constant 0 : index
    %472 = vector.load %arg7[%471, %c0_105, %c0_106] : memref<8x8x128xf32, #tpu.memory_space<vmem>>, vector<1x8x128xf32>
    %473 = vector.shape_cast %472 : vector<1x8x128xf32> to vector<8x128xf32>
    %474 = vector.shape_cast %470 : vector<8x128xf32> to vector<1x8x128xf32>
    tpu.vector_store %arg7[%471, %c0_105, %c0_106], %474 {strides = array<i32>} : memref<8x8x128xf32, #tpu.memory_space<vmem>>, vector<1x8x128xf32>,
    %c7_i32 = arith.constant 7 : i32
    %475 = arith.index_cast %c7_i32 : i32 to index
    %c0_107 = arith.constant 0 : index
    %c0_108 = arith.constant 0 : index
    %476 = vector.load %arg2[%475, %c0_107, %c0_108] : memref<8x8x512xf32, #tpu.memory_space<vmem>>, vector<1x8x512xf32>
    %477 = vector.shape_cast %476 : vector<1x8x512xf32> to vector<8x512xf32>
    %478 = arith.truncf %439 : vector<8x128xf32> to vector<8x128xbf16>
    %cst_109 = arith.constant dense<0.000000e+00> : vector<8x512xf32>
    %479 = tpu.matmul %478, %3, %cst_109 {dimension_numbers = #tpu.dot_dimension_numbers<[1], [0], [0], [1], [0, 0, 1, 1], [], []>} : vector<8x128xbf16>, vector<128x512xbf16>, vector<8x512xf32> -> vector<8x512xf32>
    %480 = arith.addf %477, %479 : vector<8x512xf32>
    %481 = vector.extract_strided_slice %480 {offsets = [0, 0], sizes = [8, 128], strides = [1, 1]} : vector<8x512xf32> to vector<8x128xf32>
    %482 = arith.negf %481 : vector<8x128xf32>
    %483 = math.exp %482 : vector<8x128xf32>
    %cst_110 = arith.constant 1.000000e+00 : f32
    %484 = vector.broadcast %cst_110 : f32 to vector<8x128xf32>
    %485 = arith.addf %484, %483 : vector<8x128xf32>
    %486 = arith.divf %484, %485 : vector<8x128xf32>
    %487 = vector.extract_strided_slice %480 {offsets = [0, 128], sizes = [8, 128], strides = [1, 1]} : vector<8x512xf32> to vector<8x128xf32>
    %488 = arith.negf %487 : vector<8x128xf32>
    %489 = math.exp %488 : vector<8x128xf32>
    %cst_111 = arith.constant 1.000000e+00 : f32
    %490 = vector.broadcast %cst_111 : f32 to vector<8x128xf32>
    %491 = arith.addf %490, %489 : vector<8x128xf32>
    %492 = arith.divf %490, %491 : vector<8x128xf32>
    %493 = vector.extract_strided_slice %480 {offsets = [0, 256], sizes = [8, 128], strides = [1, 1]} : vector<8x512xf32> to vector<8x128xf32>
    %494 = math.tanh %493 : vector<8x128xf32>
    %495 = vector.extract_strided_slice %480 {offsets = [0, 384], sizes = [8, 128], strides = [1, 1]} : vector<8x512xf32> to vector<8x128xf32>
    %496 = arith.negf %495 : vector<8x128xf32>
    %497 = math.exp %496 : vector<8x128xf32>
    %cst_112 = arith.constant 1.000000e+00 : f32
    %498 = vector.broadcast %cst_112 : f32 to vector<8x128xf32>
    %499 = arith.addf %498, %497 : vector<8x128xf32>
    %500 = arith.divf %498, %499 : vector<8x128xf32>
    %501 = arith.mulf %492, %437 : vector<8x128xf32>
    %502 = arith.mulf %486, %494 : vector<8x128xf32>
    %503 = arith.addf %501, %502 : vector<8x128xf32>
    %504 = math.tanh %503 : vector<8x128xf32>
    %505 = arith.mulf %500, %504 : vector<8x128xf32>
    %506 = arith.truncf %505 : vector<8x128xf32> to vector<8x128xbf16>
    %cst_113 = arith.constant dense<0.000000e+00> : vector<8x512xf32>
    %507 = tpu.matmul %506, %4, %cst_113 {dimension_numbers = #tpu.dot_dimension_numbers<[1], [0], [0], [1], [0, 0, 1, 1], [], []>} : vector<8x128xbf16>, vector<128x512xbf16>, vector<8x512xf32> -> vector<8x512xf32>
    %508 = arith.truncf %470 : vector<8x128xf32> to vector<8x128xbf16>
    %cst_114 = arith.constant dense<0.000000e+00> : vector<8x512xf32>
    %509 = tpu.matmul %508, %5, %cst_114 {dimension_numbers = #tpu.dot_dimension_numbers<[1], [0], [0], [1], [0, 0, 1, 1], [], []>} : vector<8x128xbf16>, vector<128x512xbf16>, vector<8x512xf32> -> vector<8x512xf32>
    %510 = arith.addf %507, %509 : vector<8x512xf32>
    %511 = arith.addf %510, %8 : vector<8x512xf32>
    %512 = vector.extract_strided_slice %511 {offsets = [0, 0], sizes = [8, 128], strides = [1, 1]} : vector<8x512xf32> to vector<8x128xf32>
    %513 = arith.negf %512 : vector<8x128xf32>
    %514 = math.exp %513 : vector<8x128xf32>
    %cst_115 = arith.constant 1.000000e+00 : f32
    %515 = vector.broadcast %cst_115 : f32 to vector<8x128xf32>
    %516 = arith.addf %515, %514 : vector<8x128xf32>
    %517 = arith.divf %515, %516 : vector<8x128xf32>
    %518 = vector.extract_strided_slice %511 {offsets = [0, 128], sizes = [8, 128], strides = [1, 1]} : vector<8x512xf32> to vector<8x128xf32>
    %519 = arith.negf %518 : vector<8x128xf32>
    %520 = math.exp %519 : vector<8x128xf32>
    %cst_116 = arith.constant 1.000000e+00 : f32
    %521 = vector.broadcast %cst_116 : f32 to vector<8x128xf32>
    %522 = arith.addf %521, %520 : vector<8x128xf32>
    %523 = arith.divf %521, %522 : vector<8x128xf32>
    %524 = vector.extract_strided_slice %511 {offsets = [0, 256], sizes = [8, 128], strides = [1, 1]} : vector<8x512xf32> to vector<8x128xf32>
    %525 = math.tanh %524 : vector<8x128xf32>
    %526 = vector.extract_strided_slice %511 {offsets = [0, 384], sizes = [8, 128], strides = [1, 1]} : vector<8x512xf32> to vector<8x128xf32>
    %527 = arith.negf %526 : vector<8x128xf32>
    %528 = math.exp %527 : vector<8x128xf32>
    %cst_117 = arith.constant 1.000000e+00 : f32
    %529 = vector.broadcast %cst_117 : f32 to vector<8x128xf32>
    %530 = arith.addf %529, %528 : vector<8x128xf32>
    %531 = arith.divf %529, %530 : vector<8x128xf32>
    %532 = arith.mulf %523, %468 : vector<8x128xf32>
    %533 = arith.mulf %517, %525 : vector<8x128xf32>
    %534 = arith.addf %532, %533 : vector<8x128xf32>
    %535 = math.tanh %534 : vector<8x128xf32>
    %536 = arith.mulf %531, %535 : vector<8x128xf32>
    %537 = arith.index_cast %c7_i32 : i32 to index
    %c0_118 = arith.constant 0 : index
    %c0_119 = arith.constant 0 : index
    %538 = vector.load %arg7[%537, %c0_118, %c0_119] : memref<8x8x128xf32, #tpu.memory_space<vmem>>, vector<1x8x128xf32>
    %539 = vector.shape_cast %538 : vector<1x8x128xf32> to vector<8x128xf32>
    %540 = vector.shape_cast %536 : vector<8x128xf32> to vector<1x8x128xf32>
    tpu.vector_store %arg7[%537, %c0_118, %c0_119], %540 {strides = array<i32>} : memref<8x8x128xf32, #tpu.memory_space<vmem>>, vector<1x8x128xf32>,
    %c8_i32 = arith.constant 8 : i32
    %c0_120 = arith.constant 0 : index
    %c0_121 = arith.constant 0 : index
    %541 = vector.load %arg8[%c0_120, %c0_121] : memref<8x128xf32, #tpu.memory_space<vmem>>, vector<8x128xf32>
    tpu.vector_store %arg8[%c0_120, %c0_121], %505 {strides = array<i32>} : memref<8x128xf32, #tpu.memory_space<vmem>>, vector<8x128xf32>,
    %c0_122 = arith.constant 0 : index
    %c0_123 = arith.constant 0 : index
    %542 = vector.load %arg9[%c0_122, %c0_123] : memref<8x128xf32, #tpu.memory_space<vmem>>, vector<8x128xf32>
    tpu.vector_store %arg9[%c0_122, %c0_123], %503 {strides = array<i32>} : memref<8x128xf32, #tpu.memory_space<vmem>>, vector<8x128xf32>,
    %c0_124 = arith.constant 0 : index
    %c0_125 = arith.constant 0 : index
    %543 = vector.load %arg10[%c0_124, %c0_125] : memref<8x128xf32, #tpu.memory_space<vmem>>, vector<8x128xf32>
    tpu.vector_store %arg10[%c0_124, %c0_125], %536 {strides = array<i32>} : memref<8x128xf32, #tpu.memory_space<vmem>>, vector<8x128xf32>,
    %c0_126 = arith.constant 0 : index
    %c0_127 = arith.constant 0 : index
    %544 = vector.load %arg11[%c0_126, %c0_127] : memref<8x128xf32, #tpu.memory_space<vmem>>, vector<8x128xf32>
    tpu.vector_store %arg11[%c0_126, %c0_127], %534 {strides = array<i32>} : memref<8x128xf32, #tpu.memory_space<vmem>>, vector<8x128xf32>,
    return
  }
  func.func @transform_0(%arg0: i32, %arg1: i32) -> (i32, i32, i32) {
    %c0_i32 = arith.constant 0 : i32
    %c0_i32_0 = arith.constant 0 : i32
    return %arg1, %arg0, %c0_i32 : i32, i32, i32
  }
  func.func @transform_1(%arg0: i32, %arg1: i32) -> (i32, i32) {
    %c0_i32 = arith.constant 0 : i32
    %c0_i32_0 = arith.constant 0 : i32
    %c0_i32_1 = arith.constant 0 : i32
    return %c0_i32, %c0_i32_0 : i32, i32
  }
  func.func @transform_2(%arg0: i32, %arg1: i32) -> (i32, i32) {
    %c0_i32 = arith.constant 0 : i32
    %c0_i32_0 = arith.constant 0 : i32
    %c0_i32_1 = arith.constant 0 : i32
    return %c0_i32, %c0_i32_0 : i32, i32
  }
  func.func @transform_3(%arg0: i32, %arg1: i32) -> (i32, i32) {
    %c0_i32 = arith.constant 0 : i32
    %c0_i32_0 = arith.constant 0 : i32
    %c0_i32_1 = arith.constant 0 : i32
    return %c0_i32, %c0_i32_0 : i32, i32
  }
  func.func @transform_4(%arg0: i32, %arg1: i32) -> (i32, i32) {
    %c0_i32 = arith.constant 0 : i32
    %c0_i32_0 = arith.constant 0 : i32
    %c0_i32_1 = arith.constant 0 : i32
    return %c0_i32, %c0_i32_0 : i32, i32
  }
  func.func @transform_5(%arg0: i32, %arg1: i32) -> (i32, i32, i32) {
    %c0_i32 = arith.constant 0 : i32
    %c0_i32_0 = arith.constant 0 : i32
    return %arg1, %arg0, %c0_i32 : i32, i32, i32
  }
}

module attributes {stable_mosaic.version = 11 : i64} {
  func.func @_matmul_bias_kernel(%arg0: i32, %arg1: i32, %arg2: i32, %arg3: memref<16x128xbf16, #tpu.memory_space<vmem>>, %arg4: memref<128x128xbf16, #tpu.memory_space<vmem>>, %arg5: memref<1x128xf32, #tpu.memory_space<vmem>>, %arg6: memref<16x128xf32, #tpu.memory_space<vmem>>, %arg7: memref<16x128xf32, #tpu.memory_space<vmem>>) attributes {dimension_semantics = [#tpu.dimension_semantics<parallel>, #tpu.dimension_semantics<parallel>, #tpu.dimension_semantics<arbitrary>], iteration_bounds = array<i64: 1, 1, 1>, scalar_prefetch = 0 : i64, scratch_operands = 1 : i64, tpu.core_type = #tpu.core_type<tc>, window_params = [{transform_indices = @transform_0, window_bounds = array<i64: 16, 128>}, {transform_indices = @transform_1, window_bounds = array<i64: 128, 128>}, {transform_indices = @transform_2, window_bounds = array<i64: 1, 128>}, {transform_indices = @transform_3, window_bounds = array<i64: 16, 128>}]} {
    %c0_i32 = arith.constant 0 : i32
    %0 = arith.cmpi eq, %arg2, %c0_i32 : i32
    %1 = arith.extui %0 : i1 to i32
    %c0_i32_0 = arith.constant 0 : i32
    %2 = arith.cmpi ne, %1, %c0_i32_0 : i32
    scf.if %2 {
      %cst_10 = arith.constant 0.000000e+00 : f32
      %12 = vector.broadcast %cst_10 : f32 to vector<16x128xf32>
      %c0_11 = arith.constant 0 : index
      %c0_12 = arith.constant 0 : index
      %13 = vector.load %arg7[%c0_11, %c0_12] : memref<16x128xf32, #tpu.memory_space<vmem>>, vector<16x128xf32>
      tpu.vector_store %arg7[%c0_11, %c0_12], %12 {strides = array<i32>} : memref<16x128xf32, #tpu.memory_space<vmem>>, vector<16x128xf32>,
    } else {
    }
    %c0 = arith.constant 0 : index
    %c0_1 = arith.constant 0 : index
    %3 = vector.load %arg7[%c0, %c0_1] : memref<16x128xf32, #tpu.memory_space<vmem>>, vector<16x128xf32>
    %c0_2 = arith.constant 0 : index
    %c0_3 = arith.constant 0 : index
    %4 = vector.load %arg3[%c0_2, %c0_3] : memref<16x128xbf16, #tpu.memory_space<vmem>>, vector<16x128xbf16>
    %c0_4 = arith.constant 0 : index
    %c0_5 = arith.constant 0 : index
    %5 = vector.load %arg4[%c0_4, %c0_5] : memref<128x128xbf16, #tpu.memory_space<vmem>>, vector<128x128xbf16>
    %cst = arith.constant dense<0.000000e+00> : vector<16x128xf32>
    %6 = tpu.matmul %4, %5, %cst {dimension_numbers = #tpu.dot_dimension_numbers<[1], [0], [0], [1], [0, 0, 1, 1], [], []>} : vector<16x128xbf16>, vector<128x128xbf16>, vector<16x128xf32> -> vector<16x128xf32>
    %7 = arith.addf %3, %6 : vector<16x128xf32>
    %c0_6 = arith.constant 0 : index
    %c0_7 = arith.constant 0 : index
    %8 = vector.load %arg7[%c0_6, %c0_7] : memref<16x128xf32, #tpu.memory_space<vmem>>, vector<16x128xf32>
    tpu.vector_store %arg7[%c0_6, %c0_7], %7 {strides = array<i32>} : memref<16x128xf32, #tpu.memory_space<vmem>>, vector<16x128xf32>,
    %c0_i32_8 = arith.constant 0 : i32
    %9 = arith.cmpi eq, %arg2, %c0_i32_8 : i32
    %10 = arith.extui %9 : i1 to i32
    %c0_i32_9 = arith.constant 0 : i32
    %11 = arith.cmpi ne, %10, %c0_i32_9 : i32
    scf.if %11 {
      %c0_10 = arith.constant 0 : index
      %c0_11 = arith.constant 0 : index
      %12 = vector.load %arg7[%c0_10, %c0_11] : memref<16x128xf32, #tpu.memory_space<vmem>>, vector<16x128xf32>
      %c0_12 = arith.constant 0 : index
      %c0_13 = arith.constant 0 : index
      %13 = vector.load %arg5[%c0_12, %c0_13] : memref<1x128xf32, #tpu.memory_space<vmem>>, vector<1x128xf32>
      %14 = vector.broadcast %13 : vector<1x128xf32> to vector<16x128xf32>
      %15 = arith.addf %12, %14 : vector<16x128xf32>
      %c0_14 = arith.constant 0 : index
      %c0_15 = arith.constant 0 : index
      %16 = vector.load %arg6[%c0_14, %c0_15] : memref<16x128xf32, #tpu.memory_space<vmem>>, vector<16x128xf32>
      tpu.vector_store %arg6[%c0_14, %c0_15], %15 {strides = array<i32>} : memref<16x128xf32, #tpu.memory_space<vmem>>, vector<16x128xf32>,
    } else {
    }
    return
  }
  func.func @transform_0(%arg0: i32, %arg1: i32, %arg2: i32) -> (i32, i32) {
    %c0_i32 = arith.constant 0 : i32
    return %arg0, %arg2 : i32, i32
  }
  func.func @transform_1(%arg0: i32, %arg1: i32, %arg2: i32) -> (i32, i32) {
    %c0_i32 = arith.constant 0 : i32
    return %arg2, %arg1 : i32, i32
  }
  func.func @transform_2(%arg0: i32, %arg1: i32, %arg2: i32) -> (i32, i32) {
    %c0_i32 = arith.constant 0 : i32
    %c0_i32_0 = arith.constant 0 : i32
    return %c0_i32, %arg1 : i32, i32
  }
  func.func @transform_3(%arg0: i32, %arg1: i32, %arg2: i32) -> (i32, i32) {
    %c0_i32 = arith.constant 0 : i32
    return %arg0, %arg1 : i32, i32
  }
}

</mosaic_0001>

<llo_original>
// kernel: decoder_rnn_forward.3
$region0: #{decoder_rnn_forward.3}
  #allocation0 [shape = 'u32[]', space=smem, size = 0x4, offset = 0x4, fixed_abs, tag = 'smem constant byte address 0x4 - core index']
  #allocation1 [shape = 'u32[144,128]{1,0:T(1,128)}', space=vmem, size = 0x12000, scoped, tag = 'internal scratch']
  #allocation2 [shape = 'f32[16,256]{1,0:T(8,128)}', space=vmem, size = 0x4000, scoped, tag = 'scratch operand']
  %s0 = inlined_call_operand.vmem [shape: bf16[16,128], index: 0, kind: input, shape index: {}]
  %s1 = inlined_call_operand.vmem [shape: bf16[128,512], index: 1, kind: input, shape index: {}]
  %s2 = inlined_call_operand.vmem [shape: f32[1,512], index: 2, kind: input, shape index: {}]
  %s3 = inlined_call_operand.vmem [shape: f32[16,512], index: 3, kind: output, shape index: {}]
  %s4 = sld [smem:[#allocation0]]
  $region110: #{decoder_rnn_forward.3} parent=0
    _
  %s6 = ssub.s32 1, %s4
  %s7 = scalar_select 0, %s6, %s4
  $region1: #{decoder_rnn_forward.3} parent=0
    #allocation3 [shape = 'u8[131072]{0}', space=vmem, size = 0x20000, scoped, tag = 'input window, operand 1']
    #allocation4 [shape = 'u8[32768]{0}', space=vmem, size = 0x8000, scoped, tag = 'output window, operand 0']
    loop: start=0, step=1, limit=4
    $region2: #{decoder_rnn_forward.3} parent=1 // loop_pre_header
      _
    $region3: #{decoder_rnn_forward.3} parent=1 // loop_header
      %s9 = sphi 0, %s13
      %p10 = scmp.ge.s32.totalorder %s9, 4
      %s16 = sphi 0, %s35
      %s17 = sphi 0, %s31
      %s18 = sphi 0, %s27
      %s19 = sphi 0, %s16
      %s20 = sphi 0, %s17
      %s21 = sphi 0, %s18
      %s22 = sphi 0, %s19
      %s23 = sphi 0, %s20
      %s24 = sphi 0, %s21
      %s40 = sphi 0, %s42
      %s43 = sphi 0, %s40
      %s44 = sphi 0, %s43
      %s60 = sphi 0, %s44
      %s68 = sphi 0, %s70
      %s71 = sphi 0, %s68
      %s72 = sphi 0, %s71
      %s88 = sphi 0, %s72
      %s94 = sphi 0, %s96
      %s97 = sphi 0, %s94
      %s98 = sphi 0, %s97
      %s114 = sphi 0, %s98
      %s122 = sphi 0, %s124
      %s125 = sphi 0, %s122
      %s126 = sphi 0, %s125
      %s142 = sphi 0, %s126
    $region4: #{decoder_rnn_forward.3} parent=1 // loop_header_branch
      %12 = sbr.rel (%p10) target = $region8
    $region5: #{decoder_rnn_forward.3} parent=1 // loop_body
      %s14 = ssub.s32 %s9, 1
      %s15 = ssub.s32 %s9, 2
      %s25 = sadd.s32 1, %s18
      %p26 = scmp.ge.s32.totalorder %s25, 1
      %s27 = scalar_select %p26, 0, %s25
      %s28 = sadd.s32 1, %s17
      %s29 = scalar_select %p26, %s28, %s17
      %p30 = scmp.ge.s32.totalorder %s29, 2
      %s31 = scalar_select %p30, 0, %s29
      %s32 = sadd.s32 1, %s16
      %s33 = scalar_select %p30, %s32, %s16
      %p34 = scmp.ge.s32.totalorder %s33, 1
      %s35 = scalar_select %p34, 0, %s33
      %s36 = ssub.s32 %s16, %s35
      %s37 = ssub.s32 %s18, %s27
      %s38 = sor.u32 %s36, %s37
      %p39 = scmp.eq.s32.totalorder %s38, 0
      %s41 = sadd.s32 %s40, 1
      %s42 = scalar_select %p39, %s40, %s41
      %p45 = pneg %p39
      %p46 = scmp.eq.s32.totalorder %s9, 1
      %p47 = por %p45, %p46
      %p48 = scmp.ne.s32.totalorder %s40, %s43
      %p49 = scmp.eq.s32.totalorder %s9, 0
      %p50 = por %p48, %p49
      %p51 = scmp.ne.s32.totalorder %s40, %s43
      %p52 = scmp.eq.s32.totalorder %s14, 1
      %p53 = por %p51, %p52
      %p54 = scmp.ne.s32.totalorder %s43, %s44
      %p55 = scmp.eq.s32.totalorder %s14, 0
      %p56 = por %p54, %p55
      %p57 = scmp.ne.s32.totalorder %s43, %s44
      %p58 = scmp.eq.s32.totalorder %s15, 1
      %p59 = por %p57, %p58
      %p61 = scmp.ne.s32.totalorder %s44, %s60
      %p62 = scmp.eq.s32.totalorder %s15, 0
      %p63 = por %p61, %p62
      %s64 = ssub.s32 %s18, %s27
      %s65 = ssub.s32 %s17, %s31
      %s66 = sor.u32 %s64, %s65
      %p67 = scmp.eq.s32.totalorder %s66, 0
      %s69 = sadd.s32 %s68, 1
      %s70 = scalar_select %p67, %s68, %s69
      %p73 = pneg %p67
      %p74 = scmp.eq.s32.totalorder %s9, 1
      %p75 = por %p73, %p74
      %p76 = scmp.ne.s32.totalorder %s68, %s71
      %p77 = scmp.eq.s32.totalorder %s9, 0
      %p78 = por %p76, %p77
      %p79 = scmp.ne.s32.totalorder %s68, %s71
      %p80 = scmp.eq.s32.totalorder %s14, 1
      %p81 = por %p79, %p80
      %p82 = scmp.ne.s32.totalorder %s71, %s72
      %p83 = scmp.eq.s32.totalorder %s14, 0
      %p84 = por %p82, %p83
      %p85 = scmp.ne.s32.totalorder %s71, %s72
      %p86 = scmp.eq.s32.totalorder %s15, 1
      %p87 = por %p85, %p86
      %p89 = scmp.ne.s32.totalorder %s72, %s88
      %p90 = scmp.eq.s32.totalorder %s15, 0
      %p91 = por %p89, %p90
      %s92 = ssub.s32 %s17, %s31
      %p93 = scmp.eq.s32.totalorder %s92, 0
      %s95 = sadd.s32 %s94, 1
      %s96 = scalar_select %p93, %s94, %s95
      %p99 = pneg %p93
      %p100 = scmp.eq.s32.totalorder %s9, 1
      %p101 = por %p99, %p100
      %p102 = scmp.ne.s32.totalorder %s94, %s97
      %p103 = scmp.eq.s32.totalorder %s9, 0
      %p104 = por %p102, %p103
      %p105 = scmp.ne.s32.totalorder %s94, %s97
      %p106 = scmp.eq.s32.totalorder %s14, 1
      %p107 = por %p105, %p106
      %p108 = scmp.ne.s32.totalorder %s97, %s98
      %p109 = scmp.eq.s32.totalorder %s14, 0
      %p110 = por %p108, %p109
      %p111 = scmp.ne.s32.totalorder %s97, %s98
      %p112 = scmp.eq.s32.totalorder %s15, 1
      %p113 = por %p111, %p112
      %p115 = scmp.ne.s32.totalorder %s98, %s114
      %p116 = scmp.eq.s32.totalorder %s15, 0
      %p117 = por %p115, %p116
      %s118 = ssub.s32 %s16, %s35
      %s119 = ssub.s32 %s17, %s31
      %s120 = sor.u32 %s118, %s119
      %p121 = scmp.eq.s32.totalorder %s120, 0
      %s123 = sadd.s32 %s122, 1
      %s124 = scalar_select %p121, %s122, %s123
      %p127 = pneg %p121
      %p128 = scmp.eq.s32.totalorder %s9, 1
      %p129 = por %p127, %p128
      %p130 = scmp.ne.s32.totalorder %s122, %s125
      %p131 = scmp.eq.s32.totalorder %s9, 0
      %p132 = por %p130, %p131
      %p133 = scmp.ne.s32.totalorder %s122, %s125
      %p134 = scmp.eq.s32.totalorder %s14, 1
      %p135 = por %p133, %p134
      %p136 = scmp.ne.s32.totalorder %s125, %s126
      %p137 = scmp.eq.s32.totalorder %s14, 0
      %p138 = por %p136, %p137
      %p139 = scmp.ne.s32.totalorder %s125, %s126
      %p140 = scmp.eq.s32.totalorder %s15, 1
      %p141 = por %p139, %p140
      %p143 = scmp.ne.s32.totalorder %s126, %s142
      %p144 = scmp.eq.s32.totalorder %s15, 0
      %p145 = por %p143, %p144
      %p146 = scmp.le.s32.totalorder 1, %s9
      %p147 = scmp.lt.s32.totalorder %s9, 3
      %p148 = pnand %p146, %p147
      %p149 = pneg %p148
      // Predicated region
      $region9: #{decoder_rnn_forward.3} parent=5 // pred_check
        _
      $region10: #{decoder_rnn_forward.3} parent=5 // pred_check_branch
        %151 = sbr.rel (%p148) target = $region12
      $region11: #{decoder_rnn_forward.3} parent=5 // pred_region
        %s152 = ssub.s32 %s9, 1
        // Predicated region
        $region13: #{decoder_rnn_forward.3} parent=11 // pred_check
          %p153 = pneg %p56
        $region14: #{decoder_rnn_forward.3} parent=11 // pred_check_branch
          %155 = sbr.rel (%p153) target = $region16
        $region15: #{decoder_rnn_forward.3} parent=11 // pred_region
          %s156 = smul.u32 2, %s19
          %p157 = scmp.lt.s32.totalorder %s156, 1
          %s158 = scalar_select %p157, %s156, 1
          %p159 = scmp.lt.s32.totalorder %s21, 0
          %s160 = scalar_select %p159, %s21, 0
          %s161 = sadd.s32 %s160, %s158
          %s162 = smul.addr %s161, 4
          %s163 = scalar_lea.vmem %s0, %s162
          %s164 = smul.u32 2, %s19
        $region16: #{decoder_rnn_forward.3} parent=11 // pred_fallthru
          _
      $region12: #{decoder_rnn_forward.3} parent=5 // pred_fallthru
        _
      %p165 = scmp.lt.s32.totalorder %s9, 2
      // Predicated region
      $region17: #{decoder_rnn_forward.3} parent=5 // pred_check
        %p166 = pneg %p165
      $region18: #{decoder_rnn_forward.3} parent=5 // pred_check_branch
        %168 = sbr.rel (%p166) target = $region20
      $region19: #{decoder_rnn_forward.3} parent=5 // pred_region
        // Predicated region
        $region21: #{decoder_rnn_forward.3} parent=19 // pred_check
          %p169 = pneg %p78
        $region22: #{decoder_rnn_forward.3} parent=19 // pred_check_branch
          %171 = sbr.rel (%p169) target = $region24
        $region23: #{decoder_rnn_forward.3} parent=19 // pred_region
          %s172 = sand.u32 %s68, 1
          %s173 = sand.u32 %s68, 1
          %s174 = smul.addr %s173, 128
          %s175 = scalar_lea.vmem [#allocation3], %s174
          %s176 = smul.u32 16, %s18
          %s177 = smul.u32 2, %s17
          %s178 = smul.addr %s176, 4
          %s179 = sadd.s32 %s177, %s178
          %s180 = smul.addr %s179, 4
          %s181 = scalar_lea.vmem %s1, %s180
          // Predicated region
          $region25: #{decoder_rnn_forward.3} parent=23 // pred_check
            _
          $region26: #{decoder_rnn_forward.3} parent=23 // pred_check_branch
            %183 = sbr.rel (0) target = $region28
          $region27: #{decoder_rnn_forward.3} parent=23 // pred_region
            // Predicated region
            $region29: #{decoder_rnn_forward.3} parent=27 // pred_check
              _
            $region30: #{decoder_rnn_forward.3} parent=27 // pred_check_branch
              %185 = sbr.rel (0) target = $region32
            $region31: #{decoder_rnn_forward.3} parent=27 // pred_region
              // Predicated region
              $region44: #{decoder_rnn_forward.3} parent=31 // pred_check
                _
              $region45: #{decoder_rnn_forward.3} parent=31 // pred_check_branch
                %230 = sbr.rel (0) target = $region47
              $region46: #{decoder_rnn_forward.3} parent=31 // pred_region
                loop: start=0, step=1, limit=1
                $region48: #{decoder_rnn_forward.3} parent=46 // loop_pre_header
                  _
                $region49: #{decoder_rnn_forward.3} parent=46 // loop_header
                  %s232 = sphi 0, %s236
                  %p233 = scmp.ge.s32.totalorder %s232, 1
                  %s237 = sphi %s181, %s181
                  %s238 = sphi %s175, %s175
                $region50: #{decoder_rnn_forward.3} parent=46 // loop_header_branch
                  %235 = sbr.rel (%p233) target = $region54
                $region51: #{decoder_rnn_forward.3} parent=46 // loop_body
                  %v239 = vld [vmem:[%s237] sm:$0xff]
                  %240 = vst [vmem:[%s238] sm:$0xff] %v239
                  %v241 = vld [vmem:[%s237 + $0x10] sm:$0xff]
                  %242 = vst [vmem:[%s238 + $0x8] sm:$0xff] %v241
                  %v243 = vld [vmem:[%s237 + $0x20] sm:$0xff]
                  %244 = vst [vmem:[%s238 + $0x10] sm:$0xff] %v243
                  %v245 = vld [vmem:[%s237 + $0x30] sm:$0xff]
                  %246 = vst [vmem:[%s238 + $0x18] sm:$0xff] %v245
                  %v247 = vld [vmem:[%s237 + $0x40] sm:$0xff]
                  %248 = vst [vmem:[%s238 + $0x20] sm:$0xff] %v247
                  %v249 = vld [vmem:[%s237 + $0x50] sm:$0xff]
                  %250 = vst [vmem:[%s238 + $0x28] sm:$0xff] %v249
                  %v251 = vld [vmem:[%s237 + $0x60] sm:$0xff]
                  %252 = vst [vmem:[%s238 + $0x30] sm:$0xff] %v251
                  %v253 = vld [vmem:[%s237 + $0x70] sm:$0xff]
                  %254 = vst [vmem:[%s238 + $0x38] sm:$0xff] %v253
                  %v255 = vld [vmem:[%s237 + $0x80] sm:$0xff]
                  %256 = vst [vmem:[%s238 + $0x40] sm:$0xff] %v255
                  %v257 = vld [vmem:[%s237 + $0x90] sm:$0xff]
                  %258 = vst [vmem:[%s238 + $0x48] sm:$0xff] %v257
                  %v259 = vld [vmem:[%s237 + $0xa0] sm:$0xff]
                  %260 = vst [vmem:[%s238 + $0x50] sm:$0xff] %v259
                  %v261 = vld [vmem:[%s237 + $0xb0] sm:$0xff]
                  %262 = vst [vmem:[%s238 + $0x58] sm:$0xff] %v261
                  %v263 = vld [vmem:[%s237 + $0xc0] sm:$0xff]
                  %264 = vst [vmem:[%s238 + $0x60] sm:$0xff] %v263
                  %v265 = vld [vmem:[%s237 + $0xd0] sm:$0xff]
                  %266 = vst [vmem:[%s238 + $0x68] sm:$0xff] %v265
                  %v267 = vld [vmem:[%s237 + $0xe0] sm:$0xff]
                  %268 = vst [vmem:[%s238 + $0x70] sm:$0xff] %v267
                  %v269 = vld [vmem:[%s237 + $0xf0] sm:$0xff]
                  %270 = vst [vmem:[%s238 + $0x78] sm:$0xff] %v269
                $region52: #{decoder_rnn_forward.3} parent=46 // loop_footer
                  %s236 = sadd.s32 1, %s232
                $region53: #{decoder_rnn_forward.3} parent=46 // loop_footer_branch
                  %231 = sbr.rel target = $region49
                $region54: #{decoder_rnn_forward.3} parent=46 // loop_exit
                  _
              $region47: #{decoder_rnn_forward.3} parent=31 // pred_fallthru
                _
              // Predicated region
              $region55: #{decoder_rnn_forward.3} parent=31 // pred_check
                _
              $region56: #{decoder_rnn_forward.3} parent=31 // pred_check_branch
                %272 = sbr.rel target = $region58
              $region57: #{decoder_rnn_forward.3} parent=31 // pred_region
                _
              $region58: #{decoder_rnn_forward.3} parent=31 // pred_fallthru
                _
            $region32: #{decoder_rnn_forward.3} parent=27 // pred_fallthru
              _
            // Predicated region
            $region33: #{decoder_rnn_forward.3} parent=27 // pred_check
              _
            $region34: #{decoder_rnn_forward.3} parent=27 // pred_check_branch
              %187 = sbr.rel target = $region36
            $region35: #{decoder_rnn_forward.3} parent=27 // pred_region
              loop: start=0, step=1, limit=1
              $region37: #{decoder_rnn_forward.3} parent=35 // loop_pre_header
                _
              $region38: #{decoder_rnn_forward.3} parent=35 // loop_header
                %s190 = sphi 0, %s194
                %p191 = scmp.ge.s32.totalorder %s190, 1
                %s195 = sphi %s181, %s181
                %s196 = sphi %s175, %s175
              $region39: #{decoder_rnn_forward.3} parent=35 // loop_header_branch
                %193 = sbr.rel (%p191) target = $region43
              $region40: #{decoder_rnn_forward.3} parent=35 // loop_body
                %v197 = vld [vmem:[%s195] sm:$0xff]
                %198 = vst [vmem:[%s196] sm:$0xff] %v197
                %v199 = vld [vmem:[%s195 + $0x10] sm:$0xff]
                %200 = vst [vmem:[%s196 + $0x8] sm:$0xff] %v199
                %v201 = vld [vmem:[%s195 + $0x20] sm:$0xff]
                %202 = vst [vmem:[%s196 + $0x10] sm:$0xff] %v201
                %v203 = vld [vmem:[%s195 + $0x30] sm:$0xff]
                %204 = vst [vmem:[%s196 + $0x18] sm:$0xff] %v203
                %v205 = vld [vmem:[%s195 + $0x40] sm:$0xff]
                %206 = vst [vmem:[%s196 + $0x20] sm:$0xff] %v205
                %v207 = vld [vmem:[%s195 + $0x50] sm:$0xff]
                %208 = vst [vmem:[%s196 + $0x28] sm:$0xff] %v207
                %v209 = vld [vmem:[%s195 + $0x60] sm:$0xff]
                %210 = vst [vmem:[%s196 + $0x30] sm:$0xff] %v209
                %v211 = vld [vmem:[%s195 + $0x70] sm:$0xff]
                %212 = vst [vmem:[%s196 + $0x38] sm:$0xff] %v211
                %v213 = vld [vmem:[%s195 + $0x80] sm:$0xff]
                %214 = vst [vmem:[%s196 + $0x40] sm:$0xff] %v213
                %v215 = vld [vmem:[%s195 + $0x90] sm:$0xff]
                %216 = vst [vmem:[%s196 + $0x48] sm:$0xff] %v215
                %v217 = vld [vmem:[%s195 + $0xa0] sm:$0xff]
                %218 = vst [vmem:[%s196 + $0x50] sm:$0xff] %v217
                %v219 = vld [vmem:[%s195 + $0xb0] sm:$0xff]
                %220 = vst [vmem:[%s196 + $0x58] sm:$0xff] %v219
                %v221 = vld [vmem:[%s195 + $0xc0] sm:$0xff]
                %222 = vst [vmem:[%s196 + $0x60] sm:$0xff] %v221
                %v223 = vld [vmem:[%s195 + $0xd0] sm:$0xff]
                %224 = vst [vmem:[%s196 + $0x68] sm:$0xff] %v223
                %v225 = vld [vmem:[%s195 + $0xe0] sm:$0xff]
                %226 = vst [vmem:[%s196 + $0x70] sm:$0xff] %v225
                %v227 = vld [vmem:[%s195 + $0xf0] sm:$0xff]
                %228 = vst [vmem:[%s196 + $0x78] sm:$0xff] %v227
              $region41: #{decoder_rnn_forward.3} parent=35 // loop_footer
                %s194 = sadd.s32 1, %s190
              $region42: #{decoder_rnn_forward.3} parent=35 // loop_footer_branch
                %189 = sbr.rel target = $region38
              $region43: #{decoder_rnn_forward.3} parent=35 // loop_exit
                _
            $region36: #{decoder_rnn_forward.3} parent=27 // pred_fallthru
              _
          $region28: #{decoder_rnn_forward.3} parent=23 // pred_fallthru
            _
          %273 = vnop
        $region24: #{decoder_rnn_forward.3} parent=19 // pred_fallthru
          _
        // Predicated region
        $region59: #{decoder_rnn_forward.3} parent=19 // pred_check
          %p274 = pneg %p104
        $region60: #{decoder_rnn_forward.3} parent=19 // pred_check_branch
          %276 = sbr.rel (%p274) target = $region62
        $region61: #{decoder_rnn_forward.3} parent=19 // pred_region
          %s277 = smul.u32 2, %s17
          %p278 = scmp.lt.s32.totalorder %s277, 3
          %s279 = scalar_select %p278, %s277, 3
          %s280 = scalar_lea.vmem %s2, %s279
          %s281 = smul.u32 2, %s17
        $region62: #{decoder_rnn_forward.3} parent=19 // pred_fallthru
          _
      $region20: #{decoder_rnn_forward.3} parent=5 // pred_fallthru
        _
      %p282 = scmp.le.s32.totalorder 1, %s9
      %p283 = scmp.lt.s32.totalorder %s9, 3
      %p284 = pnand %p282, %p283
      %p285 = pneg %p284
      // Predicated region
      $region63: #{decoder_rnn_forward.3} parent=5 // pred_check
        _
      $region64: #{decoder_rnn_forward.3} parent=5 // pred_check_branch
        %287 = sbr.rel (%p284) target = $region66
      $region65: #{decoder_rnn_forward.3} parent=5 // pred_region
        %s288 = ssub.s32 %s9, 1
        %s289 = sand.u32 %s71, 1
        %s290 = sand.u32 %s71, 1
        %s291 = smul.addr %s290, 128
        %s292 = scalar_lea.vmem [#allocation3], %s291
        // Predicated region
        $region67: #{decoder_rnn_forward.3} parent=65 // pred_check
          %p293 = pneg %p84
        $region68: #{decoder_rnn_forward.3} parent=65 // pred_check_branch
          %295 = sbr.rel (%p293) target = $region70
        $region69: #{decoder_rnn_forward.3} parent=65 // pred_region
          _
        $region70: #{decoder_rnn_forward.3} parent=65 // pred_fallthru
          _
        %s296 = smul.u32 2, %s19
        %p297 = scmp.lt.s32.totalorder %s296, 1
        %s298 = scalar_select %p297, %s296, 1
        %p299 = scmp.lt.s32.totalorder %s21, 0
        %s300 = scalar_select %p299, %s21, 0
        %s301 = sadd.s32 %s300, %s298
        %s302 = smul.addr %s301, 4
        %s303 = scalar_lea.vmem %s0, %s302
        %p304 = pneg %p56
        %p305 = pneg %p53
        %s306 = sand.u32 %s71, 1
        %s307 = sand.u32 %s71, 1
        %s308 = smul.addr %s307, 128
        %s309 = scalar_lea.vmem [#allocation3], %s308
        %p310 = pneg %p84
        %p311 = pneg %p81
        %s312 = smul.u32 2, %s20
        %p313 = scmp.lt.s32.totalorder %s312, 3
        %s314 = scalar_select %p313, %s312, 3
        %s315 = scalar_lea.vmem %s2, %s314
        %p316 = pneg %p110
        %p317 = pneg %p107
        %p318 = pneg %p138
        %p319 = pneg %p135
        %s320 = sand.u32 %s125, 1
        %s321 = sand.u32 %s125, 1
        %s322 = smul.addr %s321, 32
        %s323 = scalar_lea.vmem [#allocation4], %s322
        %s324 = smul.u32 2, %s19
        %p325 = scmp.lt.s32.totalorder %s324, 1
        %s326 = scalar_select %p325, %s324, 1
        %p327 = scmp.lt.s32.totalorder %s21, 0
        %s328 = scalar_select %p327, %s21, 0
        %s329 = sadd.s32 %s328, %s326
        %s330 = smul.addr %s329, 4
        %s331 = scalar_lea.vmem %s0, %s330
        %s332 = smul.u32 2, %s19
        %s333 = smul.u32 16, %s21
        %s334 = smul.u32 2, %s20
        %s335 = smul.u32 2, %s20
        %p336 = scmp.lt.s32.totalorder %s335, 3
        %s337 = scalar_select %p336, %s335, 3
        %s338 = scalar_lea.vmem %s2, %s337
        %s339 = smul.u32 2, %s20
        %s340 = smul.u32 2, %s19
        %s341 = smul.u32 2, %s20
        %p343 = scmp.eq.s32.totalorder %s21, 0
        // Predicated region
        $region71: #{decoder_rnn_forward.3} parent=65 // pred_check
          %p344 = pneg %p343
        $region72: #{decoder_rnn_forward.3} parent=65 // pred_check_branch
          %346 = sbr.rel (%p344) target = $region74
        $region73: #{decoder_rnn_forward.3} parent=65 // pred_region
          %347 = vst [vmem:[#allocation2] sm:$0xff] 0.0
          %348 = vst [vmem:[#allocation2 + $0x8] sm:$0xff] 0.0
          %349 = vst [vmem:[#allocation2 + $0x10] sm:$0xff] 0.0
          %350 = vst [vmem:[#allocation2 + $0x18] sm:$0xff] 0.0
        $region74: #{decoder_rnn_forward.3} parent=65 // pred_fallthru
          _
        %v351 = vld [vmem:[#allocation2] sm:$0xff]
        %v352 = vld [vmem:[#allocation2 + $0x8] sm:$0xff]
        %v353 = vld [vmem:[#allocation2 + $0x10] sm:$0xff]
        %v354 = vld [vmem:[#allocation2 + $0x18] sm:$0xff]
        %v355 = vld [vmem:[%s331] sm:$0xf]
        %v356 = vld [vmem:[%s331 + $0x4] sm:$0xf]
        %v357 = vld [vmem:[%s292] sm:$0xff]
        %v358 = vld [vmem:[%s292 + $0x8] sm:$0xff]
        %v359 = vld [vmem:[%s292 + $0x10] sm:$0xff]
        %v360 = vld [vmem:[%s292 + $0x18] sm:$0xff]
        %v361 = vld [vmem:[%s292 + $0x20] sm:$0xff]
        %v362 = vld [vmem:[%s292 + $0x28] sm:$0xff]
        %v363 = vld [vmem:[%s292 + $0x30] sm:$0xff]
        %v364 = vld [vmem:[%s292 + $0x38] sm:$0xff]
        %v365 = vld [vmem:[%s292 + $0x40] sm:$0xff]
        %v366 = vld [vmem:[%s292 + $0x48] sm:$0xff]
        %v367 = vld [vmem:[%s292 + $0x50] sm:$0xff]
        %v368 = vld [vmem:[%s292 + $0x58] sm:$0xff]
        %v369 = vld [vmem:[%s292 + $0x60] sm:$0xff]
        %v370 = vld [vmem:[%s292 + $0x68] sm:$0xff]
        %v371 = vld [vmem:[%s292 + $0x70] sm:$0xff]
        %v372 = vld [vmem:[%s292 + $0x78] sm:$0xff]
        %v375 = vunpack.c.l.b16 %v355
        %v376 = vunpack.c.l.b16 %v356
        %v377 = vpack.c.b16 %v376, %v375
        %v395 = vunpack.c.l.b16 %v357
        %v396 = vunpack.c.h.b16 %v357
        %v397 = vunpack.c.l.b16 %v358
        %v398 = vunpack.c.h.b16 %v358
        %v399 = vunpack.c.l.b16 %v359
        %v400 = vunpack.c.h.b16 %v359
        %v401 = vunpack.c.l.b16 %v360
        %v402 = vunpack.c.h.b16 %v360
        %v403 = vunpack.c.l.b16 %v361
        %v404 = vunpack.c.h.b16 %v361
        %v405 = vunpack.c.l.b16 %v362
        %v406 = vunpack.c.h.b16 %v362
        %v407 = vunpack.c.l.b16 %v363
        %v408 = vunpack.c.h.b16 %v363
        %v409 = vunpack.c.l.b16 %v364
        %v410 = vunpack.c.h.b16 %v364
        %v411 = vunpack.c.l.b16 %v365
        %v412 = vunpack.c.h.b16 %v365
        %v413 = vunpack.c.l.b16 %v366
        %v414 = vunpack.c.h.b16 %v366
        %v415 = vunpack.c.l.b16 %v367
        %v416 = vunpack.c.h.b16 %v367
        %v417 = vunpack.c.l.b16 %v368
        %v418 = vunpack.c.h.b16 %v368
        %v419 = vunpack.c.l.b16 %v369
        %v420 = vunpack.c.h.b16 %v369
        %v421 = vunpack.c.l.b16 %v370
        %v422 = vunpack.c.h.b16 %v370
        %v423 = vunpack.c.l.b16 %v371
        %v424 = vunpack.c.h.b16 %v371
        %v425 = vunpack.c.l.b16 %v372
        %v426 = vunpack.c.h.b16 %v372
        %v427 = vpack.c.b16 %v397, %v395
        %v428 = vpack.c.b16 %v398, %v396
        %v429 = vpack.c.b16 %v401, %v399
        %v430 = vpack.c.b16 %v402, %v400
        %v431 = vpack.c.b16 %v405, %v403
        %v432 = vpack.c.b16 %v406, %v404
        %v433 = vpack.c.b16 %v409, %v407
        %v434 = vpack.c.b16 %v410, %v408
        %v435 = vpack.c.b16 %v413, %v411
        %v436 = vpack.c.b16 %v414, %v412
        %v437 = vpack.c.b16 %v417, %v415
        %v438 = vpack.c.b16 %v418, %v416
        %v439 = vpack.c.b16 %v421, %v419
        %v440 = vpack.c.b16 %v422, %v420
        %v441 = vpack.c.b16 %v425, %v423
        %v442 = vpack.c.b16 %v426, %v424
        %459 = vmatprep.subr.bf16.mxu0 %v428
        %460 = vmatpush1.bf16.msra.mxu0 %v427
        %461 = vmatprep.subr.bf16.mxu0 %v430
        %462 = vmatpush1.bf16.msra.mxu0 %v429
        %463 = vmatprep.subr.bf16.mxu0 %v432
        %464 = vmatpush1.bf16.msra.mxu0 %v431
        %465 = vmatprep.subr.bf16.mxu0 %v434
        %466 = vmatpush1.bf16.msra.mxu0 %v433
        %467 = vmatprep.subr.bf16.mxu0 %v436
        %468 = vmatpush1.bf16.msra.mxu0 %v435
        %469 = vmatprep.subr.bf16.mxu0 %v438
        %470 = vmatpush1.bf16.msra.mxu0 %v437
        %471 = vmatprep.subr.bf16.mxu0 %v440
        %472 = vmatpush1.bf16.msra.mxu0 %v439
        %473 = vmatprep.subr.bf16.mxu0 %v442
        %474 = vmatpush1.bf16.msra.mxu0 %v441
        %475 = vmatprep.subr.bf16.mxu0 0
        %476 = vmatpush1.bf16.msra.mxu0 0
        %477 = vmatprep.subr.bf16.mxu0 0
        %478 = vmatpush1.bf16.msra.mxu0 0
        %479 = vmatprep.subr.bf16.mxu0 0
        %480 = vmatpush1.bf16.msra.mxu0 0
        %481 = vmatprep.subr.bf16.mxu0 0
        %482 = vmatpush1.bf16.msra.mxu0 0
        %483 = vmatprep.subr.bf16.mxu0 0
        %484 = vmatpush1.bf16.msra.mxu0 0
        %485 = vmatprep.subr.bf16.mxu0 0
        %486 = vmatpush1.bf16.msra.mxu0 0
        %487 = vmatprep.subr.bf16.mxu0 0
        %488 = vmatpush1.bf16.msra.mxu0 0
        %489 = vmatprep.subr.bf16.mxu0 0
        %490 = vmatpush1.bf16.msra.mxu0 0
        %491 = vmatprep.mubr.bf16.mxu0 0
        %492 = vmatmul.mubr.bf16.gmra.mrb[0].mxu0 %v377
        %v493 = vpop.f32.mrb[0].mxu0
        %v494 = vadd.f32 0.0, %v493
        %v495 = vpop.f32.mrb[0].mxu0
        %v496 = vadd.f32 0.0, %v495
        %v497 = vpop.f32.mrb[0].mxu0
        %v498 = vadd.f32 0.0, %v497
        %v499 = vpop.f32.mrb[0].mxu0
        %v500 = vadd.f32 0.0, %v499
        %501 = vdwg.mxu0
        %v502 = vadd.f32 %v351, %v494
        %v503 = vadd.f32 %v352, %v496
        %v504 = vadd.f32 %v353, %v498
        %v505 = vadd.f32 %v354, %v500
        %506 = vst [vmem:[#allocation2] sm:$0xff] %v502
        %507 = vst [vmem:[#allocation2 + $0x8] sm:$0xff] %v503
        %508 = vst [vmem:[#allocation2 + $0x10] sm:$0xff] %v504
        %509 = vst [vmem:[#allocation2 + $0x18] sm:$0xff] %v505
        // Predicated region
        $region75: #{decoder_rnn_forward.3} parent=65 // pred_check
          %p510 = pneg %p343
        $region76: #{decoder_rnn_forward.3} parent=65 // pred_check_branch
          %512 = sbr.rel (%p510) target = $region78
        $region77: #{decoder_rnn_forward.3} parent=65 // pred_region
          %v513 = vld [vmem:[#allocation2] sm:$0xff]
          %v514 = vld [vmem:[#allocation2 + $0x8] sm:$0xff]
          %v515 = vld [vmem:[#allocation2 + $0x10] sm:$0xff]
          %v516 = vld [vmem:[#allocation2 + $0x18] sm:$0xff]
          %v517 = vld [vmem:[%s338] sm:$0x3]
          %v519 = vlaneseq
          %v520 = vshrl.u32 %v519, 7
          %v521 = vsub.s32 0, %v520
          %v522 = vrot.slane %v517, %v521
          %v523 = vlaneseq
          %v524 = vshrl.u32 %v523, 7
          %v525 = vsub.s32 1, %v524
          %v526 = vrot.slane %v517, %v525
          %v529 = vadd.f32 %v513, %v522
          %v530 = vadd.f32 %v514, %v526
          %v531 = vadd.f32 %v515, %v522
          %v532 = vadd.f32 %v516, %v526
          %533 = vst [vmem:[%s323] sm:$0xff] %v529
          %534 = vst [vmem:[%s323 + $0x8] sm:$0xff] %v530
          %535 = vst [vmem:[%s323 + $0x10] sm:$0xff] %v531
          %536 = vst [vmem:[%s323 + $0x18] sm:$0xff] %v532
        $region78: #{decoder_rnn_forward.3} parent=65 // pred_fallthru
          _
        %s537 = sand.u32 %s125, 1
        %s538 = sand.u32 %s125, 1
        %s539 = smul.addr %s538, 32
        %s540 = scalar_lea.vmem [#allocation4], %s539
        // Predicated region
        $region79: #{decoder_rnn_forward.3} parent=65 // pred_check
          %p541 = pneg %p135
        $region80: #{decoder_rnn_forward.3} parent=65 // pred_check_branch
          %543 = sbr.rel (%p541) target = $region82
        $region81: #{decoder_rnn_forward.3} parent=65 // pred_region
          %s544 = smul.u32 2, %s19
          %s545 = smul.u32 2, %s20
          %s546 = smul.addr %s544, 4
          %s547 = sadd.s32 %s545, %s546
          %s548 = smul.addr %s547, 8
          %s549 = scalar_lea.vmem %s3, %s548
          // Predicated region
          $region83: #{decoder_rnn_forward.3} parent=81 // pred_check
            _
          $region84: #{decoder_rnn_forward.3} parent=81 // pred_check_branch
            %551 = sbr.rel (0) target = $region86
          $region85: #{decoder_rnn_forward.3} parent=81 // pred_region
            // Predicated region
            $region87: #{decoder_rnn_forward.3} parent=85 // pred_check
              _
            $region88: #{decoder_rnn_forward.3} parent=85 // pred_check_branch
              %553 = sbr.rel (0) target = $region90
            $region89: #{decoder_rnn_forward.3} parent=85 // pred_region
              loop: start=0, step=1, limit=1
              $region91: #{decoder_rnn_forward.3} parent=89 // loop_pre_header
                _
              $region92: #{decoder_rnn_forward.3} parent=89 // loop_header
                %s555 = sphi 0, %s559
                %p556 = scmp.ge.s32.totalorder %s555, 1
                %s560 = sphi %s540, %s540
                %s561 = sphi %s549, %s549
              $region93: #{decoder_rnn_forward.3} parent=89 // loop_header_branch
                %558 = sbr.rel (%p556) target = $region97
              $region94: #{decoder_rnn_forward.3} parent=89 // loop_body
                %v562 = vld [vmem:[%s560] sm:$0xff]
                %563 = vst [vmem:[%s561] sm:$0xff] %v562
                %v564 = vld [vmem:[%s560 + $0x8] sm:$0xff]
                %565 = vst [vmem:[%s561 + $0x8] sm:$0xff] %v564
                %v566 = vld [vmem:[%s560 + $0x10] sm:$0xff]
                %567 = vst [vmem:[%s561 + $0x20] sm:$0xff] %v566
                %v568 = vld [vmem:[%s560 + $0x18] sm:$0xff]
                %569 = vst [vmem:[%s561 + $0x28] sm:$0xff] %v568
              $region95: #{decoder_rnn_forward.3} parent=89 // loop_footer
                %s559 = sadd.s32 1, %s555
              $region96: #{decoder_rnn_forward.3} parent=89 // loop_footer_branch
                %554 = sbr.rel target = $region92
              $region97: #{decoder_rnn_forward.3} parent=89 // loop_exit
                _
            $region90: #{decoder_rnn_forward.3} parent=85 // pred_fallthru
              _
            // Predicated region
            $region98: #{decoder_rnn_forward.3} parent=85 // pred_check
              _
            $region99: #{decoder_rnn_forward.3} parent=85 // pred_check_branch
              %571 = sbr.rel target = $region101
            $region100: #{decoder_rnn_forward.3} parent=85 // pred_region
              _
            $region101: #{decoder_rnn_forward.3} parent=85 // pred_fallthru
              _
          $region86: #{decoder_rnn_forward.3} parent=81 // pred_fallthru
            _
          %572 = vnop
        $region82: #{decoder_rnn_forward.3} parent=65 // pred_fallthru
          _
      $region66: #{decoder_rnn_forward.3} parent=5 // pred_fallthru
        _
      %p573 = scmp.le.s32.totalorder 2, %s9
      // Predicated region
      $region102: #{decoder_rnn_forward.3} parent=5 // pred_check
        %p574 = pneg %p573
      $region103: #{decoder_rnn_forward.3} parent=5 // pred_check_branch
        %576 = sbr.rel (%p574) target = $region105
      $region104: #{decoder_rnn_forward.3} parent=5 // pred_region
        %s577 = ssub.s32 %s9, 2
        // Predicated region
        $region106: #{decoder_rnn_forward.3} parent=104 // pred_check
          %p578 = pneg %p141
        $region107: #{decoder_rnn_forward.3} parent=104 // pred_check_branch
          %580 = sbr.rel (%p578) target = $region109
        $region108: #{decoder_rnn_forward.3} parent=104 // pred_region
          %s581 = sand.u32 %s126, 1
          %s582 = sand.u32 %s126, 1
          %s583 = smul.addr %s582, 32
          %s584 = scalar_lea.vmem [#allocation4], %s583
        $region109: #{decoder_rnn_forward.3} parent=104 // pred_fallthru
          _
      $region105: #{decoder_rnn_forward.3} parent=5 // pred_fallthru
        _
    $region6: #{decoder_rnn_forward.3} parent=1 // loop_footer
      %s13 = sadd.s32 1, %s9
    $region7: #{decoder_rnn_forward.3} parent=1 // loop_footer_branch
      %8 = sbr.rel target = $region3
    $region8: #{decoder_rnn_forward.3} parent=1 // loop_exit
      _

// kernel: decoder_rnn_forward.5
$region0: #{decoder_rnn_forward.5}
  #allocation0 [shape = 'u32[]', space=smem, size = 0x4, offset = 0x4, fixed_abs, tag = 'smem constant byte address 0x4 - core index']
  #allocation1 [shape = 'u32[144,128]{1,0:T(1,128)}', space=vmem, size = 0x12000, scoped, tag = 'internal scratch']
  #allocation2 [shape = 'f32[16,128]{1,0:T(8,128)}', space=vmem, size = 0x2000, scoped, tag = 'scratch operand']
  %s0 = inlined_call_operand.vmem [shape: bf16[16,128], index: 0, kind: input, shape index: {}]
  %s1 = inlined_call_operand.vmem [shape: bf16[128,128], index: 1, kind: input, shape index: {}]
  %s2 = inlined_call_operand.vmem [shape: f32[1,128], index: 2, kind: input, shape index: {}]
  %s3 = inlined_call_operand.vmem [shape: f32[16,128], index: 3, kind: output, shape index: {}]
  %s4 = sld [smem:[#allocation0]]
  $region30: #{decoder_rnn_forward.5} parent=0
    _
  %s6 = ssub.s32 1, %s4
  %s7 = scalar_select 0, %s6, %s4
  // Predicated region
  $region2: #{decoder_rnn_forward.5} parent=0 // pred_check
    _
  $region3: #{decoder_rnn_forward.5} parent=0 // pred_check_branch
    %9 = sbr.rel (0) target = $region5
  $region4: #{decoder_rnn_forward.5} parent=0 // pred_region
    _
  $region5: #{decoder_rnn_forward.5} parent=0 // pred_fallthru
    _
  // Predicated region
  $region6: #{decoder_rnn_forward.5} parent=0 // pred_check
    _
  $region7: #{decoder_rnn_forward.5} parent=0 // pred_check_branch
    %11 = sbr.rel (0) target = $region9
  $region8: #{decoder_rnn_forward.5} parent=0 // pred_region
    _
  $region9: #{decoder_rnn_forward.5} parent=0 // pred_fallthru
    _
  // Predicated region
  $region10: #{decoder_rnn_forward.5} parent=0 // pred_check
    _
  $region11: #{decoder_rnn_forward.5} parent=0 // pred_check_branch
    %13 = sbr.rel (0) target = $region13
  $region12: #{decoder_rnn_forward.5} parent=0 // pred_region
    _
  $region13: #{decoder_rnn_forward.5} parent=0 // pred_fallthru
    _
  %p15 = scmp.eq.s32.totalorder 0, 0
  // Predicated region
  $region14: #{decoder_rnn_forward.5} parent=0 // pred_check
    %p16 = pneg %p15
  $region15: #{decoder_rnn_forward.5} parent=0 // pred_check_branch
    %18 = sbr.rel (%p16) target = $region17
  $region16: #{decoder_rnn_forward.5} parent=0 // pred_region
    %19 = vst [vmem:[#allocation2] sm:$0xff] 0.0
    %20 = vst [vmem:[#allocation2 + $0x8] sm:$0xff] 0.0
  $region17: #{decoder_rnn_forward.5} parent=0 // pred_fallthru
    _
  %v21 = vld [vmem:[#allocation2] sm:$0xff]
  %v22 = vld [vmem:[#allocation2 + $0x8] sm:$0xff]
  %v23 = vld [vmem:[%s0] sm:$0xf]
  %v24 = vld [vmem:[%s0 + $0x4] sm:$0xf]
  %v25 = vld [vmem:[%s1] sm:$0xf]
  %v26 = vld [vmem:[%s1 + $0x4] sm:$0xf]
  %v27 = vld [vmem:[%s1 + $0x8] sm:$0xf]
  %v28 = vld [vmem:[%s1 + $0xc] sm:$0xf]
  %v29 = vld [vmem:[%s1 + $0x10] sm:$0xf]
  %v30 = vld [vmem:[%s1 + $0x14] sm:$0xf]
  %v31 = vld [vmem:[%s1 + $0x18] sm:$0xf]
  %v32 = vld [vmem:[%s1 + $0x1c] sm:$0xf]
  %v33 = vld [vmem:[%s1 + $0x20] sm:$0xf]
  %v34 = vld [vmem:[%s1 + $0x24] sm:$0xf]
  %v35 = vld [vmem:[%s1 + $0x28] sm:$0xf]
  %v36 = vld [vmem:[%s1 + $0x2c] sm:$0xf]
  %v37 = vld [vmem:[%s1 + $0x30] sm:$0xf]
  %v38 = vld [vmem:[%s1 + $0x34] sm:$0xf]
  %v39 = vld [vmem:[%s1 + $0x38] sm:$0xf]
  %v40 = vld [vmem:[%s1 + $0x3c] sm:$0xf]
  %v43 = vunpack.c.l.b16 %v23
  %v44 = vunpack.c.l.b16 %v24
  %v45 = vpack.c.b16 %v44, %v43
  %v63 = vunpack.c.l.b16 %v25
  %v64 = vunpack.c.l.b16 %v26
  %v65 = vunpack.c.l.b16 %v27
  %v66 = vunpack.c.l.b16 %v28
  %v67 = vunpack.c.l.b16 %v29
  %v68 = vunpack.c.l.b16 %v30
  %v69 = vunpack.c.l.b16 %v31
  %v70 = vunpack.c.l.b16 %v32
  %v71 = vunpack.c.l.b16 %v33
  %v72 = vunpack.c.l.b16 %v34
  %v73 = vunpack.c.l.b16 %v35
  %v74 = vunpack.c.l.b16 %v36
  %v75 = vunpack.c.l.b16 %v37
  %v76 = vunpack.c.l.b16 %v38
  %v77 = vunpack.c.l.b16 %v39
  %v78 = vunpack.c.l.b16 %v40
  %v79 = vpack.c.b16 %v64, %v63
  %v80 = vpack.c.b16 %v66, %v65
  %v81 = vpack.c.b16 %v68, %v67
  %v82 = vpack.c.b16 %v70, %v69
  %v83 = vpack.c.b16 %v72, %v71
  %v84 = vpack.c.b16 %v74, %v73
  %v85 = vpack.c.b16 %v76, %v75
  %v86 = vpack.c.b16 %v78, %v77
  %95 = vmatprep.subr.bf16.mxu0 0
  %96 = vmatpush1.bf16.msra.mxu0 %v79
  %97 = vmatprep.subr.bf16.mxu0 0
  %98 = vmatpush1.bf16.msra.mxu0 %v80
  %99 = vmatprep.subr.bf16.mxu0 0
  %100 = vmatpush1.bf16.msra.mxu0 %v81
  %101 = vmatprep.subr.bf16.mxu0 0
  %102 = vmatpush1.bf16.msra.mxu0 %v82
  %103 = vmatprep.subr.bf16.mxu0 0
  %104 = vmatpush1.bf16.msra.mxu0 %v83
  %105 = vmatprep.subr.bf16.mxu0 0
  %106 = vmatpush1.bf16.msra.mxu0 %v84
  %107 = vmatprep.subr.bf16.mxu0 0
  %108 = vmatpush1.bf16.msra.mxu0 %v85
  %109 = vmatprep.subr.bf16.mxu0 0
  %110 = vmatpush1.bf16.msra.mxu0 %v86
  %111 = vmatprep.subr.bf16.mxu0 0
  %112 = vmatpush1.bf16.msra.mxu0 0
  %113 = vmatprep.subr.bf16.mxu0 0
  %114 = vmatpush1.bf16.msra.mxu0 0
  %115 = vmatprep.subr.bf16.mxu0 0
  %116 = vmatpush1.bf16.msra.mxu0 0
  %117 = vmatprep.subr.bf16.mxu0 0
  %118 = vmatpush1.bf16.msra.mxu0 0
  %119 = vmatprep.subr.bf16.mxu0 0
  %120 = vmatpush1.bf16.msra.mxu0 0
  %121 = vmatprep.subr.bf16.mxu0 0
  %122 = vmatpush1.bf16.msra.mxu0 0
  %123 = vmatprep.subr.bf16.mxu0 0
  %124 = vmatpush1.bf16.msra.mxu0 0
  %125 = vmatprep.subr.bf16.mxu0 0
  %126 = vmatpush1.bf16.msra.mxu0 0
  %127 = vmatprep.mubr.bf16.mxu0 0
  %128 = vmatmul.mubr.bf16.gmra.mrb[0].mxu0 %v45
  %v129 = vpop.f32.mrb[0].mxu0
  %v130 = vadd.f32 0.0, %v129
  %v131 = vpop.f32.mrb[0].mxu0
  %v132 = vpop.f32.mrb[0].mxu0
  %v133 = vadd.f32 0.0, %v132
  %v134 = vpop.f32.mrb[0].mxu0
  %135 = vdwg.mxu0
  %v136 = vadd.f32 %v21, %v130
  %v137 = vadd.f32 %v22, %v133
  %138 = vst [vmem:[#allocation2] sm:$0xff] %v136
  %139 = vst [vmem:[#allocation2 + $0x8] sm:$0xff] %v137
  // Predicated region
  $region18: #{decoder_rnn_forward.5} parent=0 // pred_check
    %p140 = pneg %p15
  $region19: #{decoder_rnn_forward.5} parent=0 // pred_check_branch
    %142 = sbr.rel (%p140) target = $region21
  $region20: #{decoder_rnn_forward.5} parent=0 // pred_region
    %v143 = vld [vmem:[#allocation2] sm:$0xff]
    %v144 = vld [vmem:[#allocation2 + $0x8] sm:$0xff]
    %v145 = vld [vmem:[%s2] sm:$0x1]
    %v147 = vlaneseq
    %v148 = vshrl.u32 %v147, 7
    %v149 = vsub.s32 0, %v148
    %v150 = vrot.slane %v145, %v149
    %v152 = vadd.f32 %v143, %v150
    %v153 = vadd.f32 %v144, %v150
    %154 = vst [vmem:[%s3] sm:$0xff] %v152
    %155 = vst [vmem:[%s3 + $0x8] sm:$0xff] %v153
  $region21: #{decoder_rnn_forward.5} parent=0 // pred_fallthru
    _
  // Predicated region
  $region22: #{decoder_rnn_forward.5} parent=0 // pred_check
    _
  $region23: #{decoder_rnn_forward.5} parent=0 // pred_check_branch
    %157 = sbr.rel (0) target = $region25
  $region24: #{decoder_rnn_forward.5} parent=0 // pred_region
    _
  $region25: #{decoder_rnn_forward.5} parent=0 // pred_fallthru
    _
  // Predicated region
  $region26: #{decoder_rnn_forward.5} parent=0 // pred_check
    _
  $region27: #{decoder_rnn_forward.5} parent=0 // pred_check_branch
    %159 = sbr.rel (0) target = $region29
  $region28: #{decoder_rnn_forward.5} parent=0 // pred_region
    _
  $region29: #{decoder_rnn_forward.5} parent=0 // pred_fallthru
    _

// kernel: decoder_rnn_forward.4
$region0: #{decoder_rnn_forward.4}
  #allocation0 [shape = 'u32[]', space=smem, size = 0x4, offset = 0x4, fixed_abs, tag = 'smem constant byte address 0x4 - core index']
  #allocation1 [shape = 'u32[144,128]{1,0:T(1,128)}', space=vmem, size = 0x12000, scoped, tag = 'internal scratch']
  #allocation2 [shape = 'f32[8,128]{1,0:T(8,128)}', space=vmem, size = 0x1000, scoped, tag = 'scratch operand']
  #allocation3 [shape = 'f32[8,128]{1,0:T(8,128)}', space=vmem, size = 0x1000, scoped, tag = 'scratch operand']
  #allocation4 [shape = 'f32[8,128]{1,0:T(8,128)}', space=vmem, size = 0x1000, scoped, tag = 'scratch operand']
  #allocation5 [shape = 'f32[8,128]{1,0:T(8,128)}', space=vmem, size = 0x1000, scoped, tag = 'scratch operand']
  %s0 = inlined_call_operand.vmem [shape: f32[8,8,512], index: 0, kind: input, shape index: {}]
  %s1 = inlined_call_operand.vmem [shape: bf16[128,512], index: 1, kind: input, shape index: {}]
  %s2 = inlined_call_operand.vmem [shape: bf16[128,512], index: 2, kind: input, shape index: {}]
  %s3 = inlined_call_operand.vmem [shape: bf16[128,512], index: 3, kind: input, shape index: {}]
  %s4 = inlined_call_operand.vmem [shape: f32[1,512], index: 4, kind: input, shape index: {}]
  %s5 = inlined_call_operand.vmem [shape: f32[8,8,128], index: 5, kind: output, shape index: {}]
  %s6 = sld [smem:[#allocation0]]
  $region34: #{decoder_rnn_forward.4} parent=0
    _
  %s8 = ssub.s32 1, %s6
  %s9 = scalar_select 0, %s8, %s6
  // Predicated region
  $region2: #{decoder_rnn_forward.4} parent=0 // pred_check
    _
  $region3: #{decoder_rnn_forward.4} parent=0 // pred_check_branch
    %11 = sbr.rel (0) target = $region5
  $region4: #{decoder_rnn_forward.4} parent=0 // pred_region
    _
  $region5: #{decoder_rnn_forward.4} parent=0 // pred_fallthru
    _
  // Predicated region
  $region6: #{decoder_rnn_forward.4} parent=0 // pred_check
    _
  $region7: #{decoder_rnn_forward.4} parent=0 // pred_check_branch
    %13 = sbr.rel (0) target = $region9
  $region8: #{decoder_rnn_forward.4} parent=0 // pred_region
    _
  $region9: #{decoder_rnn_forward.4} parent=0 // pred_fallthru
    _
  // Predicated region
  $region10: #{decoder_rnn_forward.4} parent=0 // pred_check
    _
  $region11: #{decoder_rnn_forward.4} parent=0 // pred_check_branch
    %15 = sbr.rel (0) target = $region13
  $region12: #{decoder_rnn_forward.4} parent=0 // pred_region
    _
  $region13: #{decoder_rnn_forward.4} parent=0 // pred_fallthru
    _
  // Predicated region
  $region14: #{decoder_rnn_forward.4} parent=0 // pred_check
    _
  $region15: #{decoder_rnn_forward.4} parent=0 // pred_check_branch
    %17 = sbr.rel (0) target = $region17
  $region16: #{decoder_rnn_forward.4} parent=0 // pred_region
    _
  $region17: #{decoder_rnn_forward.4} parent=0 // pred_fallthru
    _
  // Predicated region
  $region18: #{decoder_rnn_forward.4} parent=0 // pred_check
    _
  $region19: #{decoder_rnn_forward.4} parent=0 // pred_check_branch
    %19 = sbr.rel (0) target = $region21
  $region20: #{decoder_rnn_forward.4} parent=0 // pred_region
    _
  $region21: #{decoder_rnn_forward.4} parent=0 // pred_fallthru
    _
  %p21 = scmp.eq.s32.totalorder 0, 0
  // Predicated region
  $region22: #{decoder_rnn_forward.4} parent=0 // pred_check
    %p22 = pneg %p21
  $region23: #{decoder_rnn_forward.4} parent=0 // pred_check_branch
    %24 = sbr.rel (%p22) target = $region25
  $region24: #{decoder_rnn_forward.4} parent=0 // pred_region
    %25 = vst [vmem:[#allocation2] sm:$0xff] 0.0
    %26 = vst [vmem:[#allocation3] sm:$0xff] 0.0
    %27 = vst [vmem:[#allocation4] sm:$0xff] 0.0
    %28 = vst [vmem:[#allocation5] sm:$0xff] 0.0
  $region25: #{decoder_rnn_forward.4} parent=0 // pred_fallthru
    _
  %v29 = vld [vmem:[%s1] sm:$0xff]
  %v30 = vld [vmem:[%s1 + $0x8] sm:$0xff]
  %v31 = vld [vmem:[%s1 + $0x10] sm:$0xff]
  %v32 = vld [vmem:[%s1 + $0x18] sm:$0xff]
  %v33 = vld [vmem:[%s1 + $0x20] sm:$0xff]
  %v34 = vld [vmem:[%s1 + $0x28] sm:$0xff]
  %v35 = vld [vmem:[%s1 + $0x30] sm:$0xff]
  %v36 = vld [vmem:[%s1 + $0x38] sm:$0xff]
  %v37 = vld [vmem:[%s1 + $0x40] sm:$0xff]
  %v38 = vld [vmem:[%s1 + $0x48] sm:$0xff]
  %v39 = vld [vmem:[%s1 + $0x50] sm:$0xff]
  %v40 = vld [vmem:[%s1 + $0x58] sm:$0xff]
  %v41 = vld [vmem:[%s1 + $0x60] sm:$0xff]
  %v42 = vld [vmem:[%s1 + $0x68] sm:$0xff]
  %v43 = vld [vmem:[%s1 + $0x70] sm:$0xff]
  %v44 = vld [vmem:[%s1 + $0x78] sm:$0xff]
  %v45 = vld [vmem:[%s1 + $0x80] sm:$0xff]
  %v46 = vld [vmem:[%s1 + $0x88] sm:$0xff]
  %v47 = vld [vmem:[%s1 + $0x90] sm:$0xff]
  %v48 = vld [vmem:[%s1 + $0x98] sm:$0xff]
  %v49 = vld [vmem:[%s1 + $0xa0] sm:$0xff]
  %v50 = vld [vmem:[%s1 + $0xa8] sm:$0xff]
  %v51 = vld [vmem:[%s1 + $0xb0] sm:$0xff]
  %v52 = vld [vmem:[%s1 + $0xb8] sm:$0xff]
  %v53 = vld [vmem:[%s1 + $0xc0] sm:$0xff]
  %v54 = vld [vmem:[%s1 + $0xc8] sm:$0xff]
  %v55 = vld [vmem:[%s1 + $0xd0] sm:$0xff]
  %v56 = vld [vmem:[%s1 + $0xd8] sm:$0xff]
  %v57 = vld [vmem:[%s1 + $0xe0] sm:$0xff]
  %v58 = vld [vmem:[%s1 + $0xe8] sm:$0xff]
  %v59 = vld [vmem:[%s1 + $0xf0] sm:$0xff]
  %v60 = vld [vmem:[%s1 + $0xf8] sm:$0xff]
  %v61 = vld [vmem:[%s2] sm:$0xff]
  %v62 = vld [vmem:[%s2 + $0x8] sm:$0xff]
  %v63 = vld [vmem:[%s2 + $0x10] sm:$0xff]
  %v64 = vld [vmem:[%s2 + $0x18] sm:$0xff]
  %v65 = vld [vmem:[%s2 + $0x20] sm:$0xff]
  %v66 = vld [vmem:[%s2 + $0x28] sm:$0xff]
  %v67 = vld [vmem:[%s2 + $0x30] sm:$0xff]
  %v68 = vld [vmem:[%s2 + $0x38] sm:$0xff]
  %v69 = vld [vmem:[%s2 + $0x40] sm:$0xff]
  %v70 = vld [vmem:[%s2 + $0x48] sm:$0xff]
  %v71 = vld [vmem:[%s2 + $0x50] sm:$0xff]
  %v72 = vld [vmem:[%s2 + $0x58] sm:$0xff]
  %v73 = vld [vmem:[%s2 + $0x60] sm:$0xff]
  %v74 = vld [vmem:[%s2 + $0x68] sm:$0xff]
  %v75 = vld [vmem:[%s2 + $0x70] sm:$0xff]
  %v76 = vld [vmem:[%s2 + $0x78] sm:$0xff]
  %v77 = vld [vmem:[%s2 + $0x80] sm:$0xff]
  %v78 = vld [vmem:[%s2 + $0x88] sm:$0xff]
  %v79 = vld [vmem:[%s2 + $0x90] sm:$0xff]
  %v80 = vld [vmem:[%s2 + $0x98] sm:$0xff]
  %v81 = vld [vmem:[%s2 + $0xa0] sm:$0xff]
  %v82 = vld [vmem:[%s2 + $0xa8] sm:$0xff]
  %v83 = vld [vmem:[%s2 + $0xb0] sm:$0xff]
  %v84 = vld [vmem:[%s2 + $0xb8] sm:$0xff]
  %v85 = vld [vmem:[%s2 + $0xc0] sm:$0xff]
  %v86 = vld [vmem:[%s2 + $0xc8] sm:$0xff]
  %v87 = vld [vmem:[%s2 + $0xd0] sm:$0xff]
  %v88 = vld [vmem:[%s2 + $0xd8] sm:$0xff]
  %v89 = vld [vmem:[%s2 + $0xe0] sm:$0xff]
  %v90 = vld [vmem:[%s2 + $0xe8] sm:$0xff]
  %v91 = vld [vmem:[%s2 + $0xf0] sm:$0xff]
  %v92 = vld [vmem:[%s2 + $0xf8] sm:$0xff]
  %v93 = vld [vmem:[%s3] sm:$0xff]
  %v94 = vld [vmem:[%s3 + $0x8] sm:$0xff]
  %v95 = vld [vmem:[%s3 + $0x10] sm:$0xff]
  %v96 = vld [vmem:[%s3 + $0x18] sm:$0xff]
  %v97 = vld [vmem:[%s3 + $0x20] sm:$0xff]
  %v98 = vld [vmem:[%s3 + $0x28] sm:$0xff]
  %v99 = vld [vmem:[%s3 + $0x30] sm:$0xff]
  %v100 = vld [vmem:[%s3 + $0x38] sm:$0xff]
  %v101 = vld [vmem:[%s3 + $0x40] sm:$0xff]
  %v102 = vld [vmem:[%s3 + $0x48] sm:$0xff]
  %v103 = vld [vmem:[%s3 + $0x50] sm:$0xff]
  %v104 = vld [vmem:[%s3 + $0x58] sm:$0xff]
  %v105 = vld [vmem:[%s3 + $0x60] sm:$0xff]
  %v106 = vld [vmem:[%s3 + $0x68] sm:$0xff]
  %v107 = vld [vmem:[%s3 + $0x70] sm:$0xff]
  %v108 = vld [vmem:[%s3 + $0x78] sm:$0xff]
  %v109 = vld [vmem:[%s3 + $0x80] sm:$0xff]
  %v110 = vld [vmem:[%s3 + $0x88] sm:$0xff]
  %v111 = vld [vmem:[%s3 + $0x90] sm:$0xff]
  %v112 = vld [vmem:[%s3 + $0x98] sm:$0xff]
  %v113 = vld [vmem:[%s3 + $0xa0] sm:$0xff]
  %v114 = vld [vmem:[%s3 + $0xa8] sm:$0xff]
  %v115 = vld [vmem:[%s3 + $0xb0] sm:$0xff]
  %v116 = vld [vmem:[%s3 + $0xb8] sm:$0xff]
  %v117 = vld [vmem:[%s3 + $0xc0] sm:$0xff]
  %v118 = vld [vmem:[%s3 + $0xc8] sm:$0xff]
  %v119 = vld [vmem:[%s3 + $0xd0] sm:$0xff]
  %v120 = vld [vmem:[%s3 + $0xd8] sm:$0xff]
  %v121 = vld [vmem:[%s3 + $0xe0] sm:$0xff]
  %v122 = vld [vmem:[%s3 + $0xe8] sm:$0xff]
  %v123 = vld [vmem:[%s3 + $0xf0] sm:$0xff]
  %v124 = vld [vmem:[%s3 + $0xf8] sm:$0xff]
  %v125 = vld [vmem:[%s4] sm:$0xf]
  %v127 = vlaneseq
  %v128 = vshrl.u32 %v127, 7
  %v129 = vsub.s32 0, %v128
  %v130 = vrot.slane %v125, %v129
  %v131 = vlaneseq
  %v132 = vshrl.u32 %v131, 7
  %v133 = vsub.s32 1, %v132
  %v134 = vrot.slane %v125, %v133
  %v135 = vlaneseq
  %v136 = vshrl.u32 %v135, 7
  %v137 = vsub.s32 2, %v136
  %v138 = vrot.slane %v125, %v137
  %v139 = vlaneseq
  %v140 = vshrl.u32 %v139, 7
  %v141 = vsub.s32 3, %v140
  %v142 = vrot.slane %v125, %v141
  %v147 = vld [vmem:[#allocation2] sm:$0xff]
  %v148 = vld [vmem:[#allocation3] sm:$0xff]
  %v149 = vld [vmem:[#allocation4] sm:$0xff]
  %v150 = vld [vmem:[#allocation5] sm:$0xff]
  %v151 = vld [vmem:[%s0] sm:$0xff]
  %v152 = vld [vmem:[%s0 + $0x8] sm:$0xff]
  %v153 = vld [vmem:[%s0 + $0x10] sm:$0xff]
  %v154 = vld [vmem:[%s0 + $0x18] sm:$0xff]
  %v155 = vpack.c.bf16 %v147, %v147
  %v188 = vunpack.c.l.b16 %v29
  %v189 = vunpack.c.h.b16 %v29
  %v190 = vunpack.c.l.b16 %v30
  %v191 = vunpack.c.h.b16 %v30
  %v192 = vunpack.c.l.b16 %v31
  %v193 = vunpack.c.h.b16 %v31
  %v194 = vunpack.c.l.b16 %v32
  %v195 = vunpack.c.h.b16 %v32
  %v196 = vunpack.c.l.b16 %v33
  %v197 = vunpack.c.h.b16 %v33
  %v198 = vunpack.c.l.b16 %v34
  %v199 = vunpack.c.h.b16 %v34
  %v200 = vunpack.c.l.b16 %v35
  %v201 = vunpack.c.h.b16 %v35
  %v202 = vunpack.c.l.b16 %v36
  %v203 = vunpack.c.h.b16 %v36
  %v204 = vunpack.c.l.b16 %v37
  %v205 = vunpack.c.h.b16 %v37
  %v206 = vunpack.c.l.b16 %v38
  %v207 = vunpack.c.h.b16 %v38
  %v208 = vunpack.c.l.b16 %v39
  %v209 = vunpack.c.h.b16 %v39
  %v210 = vunpack.c.l.b16 %v40
  %v211 = vunpack.c.h.b16 %v40
  %v212 = vunpack.c.l.b16 %v41
  %v213 = vunpack.c.h.b16 %v41
  %v214 = vunpack.c.l.b16 %v42
  %v215 = vunpack.c.h.b16 %v42
  %v216 = vunpack.c.l.b16 %v43
  %v217 = vunpack.c.h.b16 %v43
  %v218 = vunpack.c.l.b16 %v44
  %v219 = vunpack.c.h.b16 %v44
  %v220 = vunpack.c.l.b16 %v45
  %v221 = vunpack.c.h.b16 %v45
  %v222 = vunpack.c.l.b16 %v46
  %v223 = vunpack.c.h.b16 %v46
  %v224 = vunpack.c.l.b16 %v47
  %v225 = vunpack.c.h.b16 %v47
  %v226 = vunpack.c.l.b16 %v48
  %v227 = vunpack.c.h.b16 %v48
  %v228 = vunpack.c.l.b16 %v49
  %v229 = vunpack.c.h.b16 %v49
  %v230 = vunpack.c.l.b16 %v50
  %v231 = vunpack.c.h.b16 %v50
  %v232 = vunpack.c.l.b16 %v51
  %v233 = vunpack.c.h.b16 %v51
  %v234 = vunpack.c.l.b16 %v52
  %v235 = vunpack.c.h.b16 %v52
  %v236 = vunpack.c.l.b16 %v53
  %v237 = vunpack.c.h.b16 %v53
  %v238 = vunpack.c.l.b16 %v54
  %v239 = vunpack.c.h.b16 %v54
  %v240 = vunpack.c.l.b16 %v55
  %v241 = vunpack.c.h.b16 %v55
  %v242 = vunpack.c.l.b16 %v56
  %v243 = vunpack.c.h.b16 %v56
  %v244 = vunpack.c.l.b16 %v57
  %v245 = vunpack.c.h.b16 %v57
  %v246 = vunpack.c.l.b16 %v58
  %v247 = vunpack.c.h.b16 %v58
  %v248 = vunpack.c.l.b16 %v59
  %v249 = vunpack.c.h.b16 %v59
  %v250 = vunpack.c.l.b16 %v60
  %v251 = vunpack.c.h.b16 %v60
  %v252 = vpack.c.b16 %v192, %v188
  %v253 = vpack.c.b16 %v193, %v189
  %v254 = vpack.c.b16 %v194, %v190
  %v255 = vpack.c.b16 %v195, %v191
  %v256 = vpack.c.b16 %v200, %v196
  %v257 = vpack.c.b16 %v201, %v197
  %v258 = vpack.c.b16 %v202, %v198
  %v259 = vpack.c.b16 %v203, %v199
  %v260 = vpack.c.b16 %v208, %v204
  %v261 = vpack.c.b16 %v209, %v205
  %v262 = vpack.c.b16 %v210, %v206
  %v263 = vpack.c.b16 %v211, %v207
  %v264 = vpack.c.b16 %v216, %v212
  %v265 = vpack.c.b16 %v217, %v213
  %v266 = vpack.c.b16 %v218, %v214
  %v267 = vpack.c.b16 %v219, %v215
  %v268 = vpack.c.b16 %v224, %v220
  %v269 = vpack.c.b16 %v225, %v221
  %v270 = vpack.c.b16 %v226, %v222
  %v271 = vpack.c.b16 %v227, %v223
  %v272 = vpack.c.b16 %v232, %v228
  %v273 = vpack.c.b16 %v233, %v229
  %v274 = vpack.c.b16 %v234, %v230
  %v275 = vpack.c.b16 %v235, %v231
  %v276 = vpack.c.b16 %v240, %v236
  %v277 = vpack.c.b16 %v241, %v237
  %v278 = vpack.c.b16 %v242, %v238
  %v279 = vpack.c.b16 %v243, %v239
  %v280 = vpack.c.b16 %v248, %v244
  %v281 = vpack.c.b16 %v249, %v245
  %v282 = vpack.c.b16 %v250, %v246
  %v283 = vpack.c.b16 %v251, %v247
  %316 = vmatprep.subr.bf16.mxu0 %v253
  %317 = vmatpush1.bf16.msra.mxu0 %v252
  %318 = vmatprep.subr.bf16.mxu0 %v257
  %319 = vmatpush1.bf16.msra.mxu0 %v256
  %320 = vmatprep.subr.bf16.mxu0 %v261
  %321 = vmatpush1.bf16.msra.mxu0 %v260
  %322 = vmatprep.subr.bf16.mxu0 %v265
  %323 = vmatpush1.bf16.msra.mxu0 %v264
  %324 = vmatprep.subr.bf16.mxu0 %v269
  %325 = vmatpush1.bf16.msra.mxu0 %v268
  %326 = vmatprep.subr.bf16.mxu0 %v273
  %327 = vmatpush1.bf16.msra.mxu0 %v272
  %328 = vmatprep.subr.bf16.mxu0 %v277
  %329 = vmatpush1.bf16.msra.mxu0 %v276
  %330 = vmatprep.subr.bf16.mxu0 %v281
  %331 = vmatpush1.bf16.msra.mxu0 %v280
  %332 = vmatprep.subr.bf16.mxu0 0
  %333 = vmatpush1.bf16.msra.mxu0 0
  %334 = vmatprep.subr.bf16.mxu0 0
  %335 = vmatpush1.bf16.msra.mxu0 0
  %336 = vmatprep.subr.bf16.mxu0 0
  %337 = vmatpush1.bf16.msra.mxu0 0
  %338 = vmatprep.subr.bf16.mxu0 0
  %339 = vmatpush1.bf16.msra.mxu0 0
  %340 = vmatprep.subr.bf16.mxu0 0
  %341 = vmatpush1.bf16.msra.mxu0 0
  %342 = vmatprep.subr.bf16.mxu0 0
  %343 = vmatpush1.bf16.msra.mxu0 0
  %344 = vmatprep.subr.bf16.mxu0 0
  %345 = vmatpush1.bf16.msra.mxu0 0
  %346 = vmatprep.subr.bf16.mxu0 0
  %347 = vmatpush1.bf16.msra.mxu0 0
  %348 = vmatprep.mubr.bf16.mxu0 0
  %349 = vmatmul.mubr.bf16.gmra.mrb[0].mxu0 %v155
  %v350 = vpop.f32.mrb[0].mxu0
  %v351 = vadd.f32 0.0, %v350
  %v352 = vpop.f32.mrb[0].mxu0
  %v353 = vadd.f32 0.0, %v352
  %v354 = vpop.f32.mrb[0].mxu0
  %v355 = vpop.f32.mrb[0].mxu0
  %356 = vdwg.mxu0
  %357 = vmatprep.subr.bf16.mxu0 %v255
  %358 = vmatpush1.bf16.msra.mxu0 %v254
  %359 = vmatprep.subr.bf16.mxu0 %v259
  %360 = vmatpush1.bf16.msra.mxu0 %v258
  %361 = vmatprep.subr.bf16.mxu0 %v263
  %362 = vmatpush1.bf16.msra.mxu0 %v262
  %363 = vmatprep.subr.bf16.mxu0 %v267
  %364 = vmatpush1.bf16.msra.mxu0 %v266
  %365 = vmatprep.subr.bf16.mxu0 %v271
  %366 = vmatpush1.bf16.msra.mxu0 %v270
  %367 = vmatprep.subr.bf16.mxu0 %v275
  %368 = vmatpush1.bf16.msra.mxu0 %v274
  %369 = vmatprep.subr.bf16.mxu0 %v279
  %370 = vmatpush1.bf16.msra.mxu0 %v278
  %371 = vmatprep.subr.bf16.mxu0 %v283
  %372 = vmatpush1.bf16.msra.mxu0 %v282
  %373 = vmatprep.subr.bf16.mxu0 0
  %374 = vmatpush1.bf16.msra.mxu0 0
  %375 = vmatprep.subr.bf16.mxu0 0
  %376 = vmatpush1.bf16.msra.mxu0 0
  %377 = vmatprep.subr.bf16.mxu0 0
  %378 = vmatpush1.bf16.msra.mxu0 0
  %379 = vmatprep.subr.bf16.mxu0 0
  %380 = vmatpush1.bf16.msra.mxu0 0
  %381 = vmatprep.subr.bf16.mxu0 0
  %382 = vmatpush1.bf16.msra.mxu0 0
  %383 = vmatprep.subr.bf16.mxu0 0
  %384 = vmatpush1.bf16.msra.mxu0 0
  %385 = vmatprep.subr.bf16.mxu0 0
  %386 = vmatpush1.bf16.msra.mxu0 0
  %387 = vmatprep.subr.bf16.mxu0 0
  %388 = vmatpush1.bf16.msra.mxu0 0
  %389 = vmatprep.mubr.bf16.mxu0 0
  %390 = vmatmul.mubr.bf16.gmra.mrb[0].mxu0 %v155
  %v391 = vpop.f32.mrb[0].mxu0
  %v392 = vadd.f32 0.0, %v391
  %v393 = vpop.f32.mrb[0].mxu0
  %v394 = vadd.f32 0.0, %v393
  %v395 = vpop.f32.mrb[0].mxu0
  %v396 = vpop.f32.mrb[0].mxu0
  %397 = vdwg.mxu0
  %v398 = vadd.f32 %v151, %v351
  %v399 = vadd.f32 %v152, %v353
  %v400 = vadd.f32 %v153, %v392
  %v401 = vadd.f32 %v154, %v394
  %v402 = vxor.u32 %v398, 2147483648
  %v403 = vmul.f32 %v402, 1.442695
  %v404 = vpow.pop %v403
  %v405 = vadd.f32 %v404, 1.0
  %v406 = vrcp.pop %v405
  %v407 = vmul.f32 1.0, %v406
  %v408 = vxor.u32 %v399, 2147483648
  %v409 = vmul.f32 %v408, 1.442695
  %v410 = vpow.pop %v409
  %v411 = vadd.f32 %v410, 1.0
  %v412 = vrcp.pop %v411
  %v413 = vmul.f32 1.0, %v412
  %v414 = vtanh.pop %v400
  %v415 = vxor.u32 %v401, 2147483648
  %v416 = vmul.f32 %v415, 1.442695
  %v417 = vpow.pop %v416
  %v418 = vadd.f32 %v417, 1.0
  %v419 = vrcp.pop %v418
  %v420 = vmul.f32 1.0, %v419
  %v421 = vmul.f32 %v413, %v148
  %v422 = vmul.f32 %v407, %v414
  %v423 = vadd.f32 %v421, %v422
  %v424 = vtanh.pop %v423
  %v425 = vmul.f32 %v420, %v424
  %v426 = vpack.c.bf16 %v425, %v425
  %v427 = vpack.c.bf16 %v149, %v149
  %v460 = vunpack.c.l.b16 %v93
  %v461 = vunpack.c.h.b16 %v93
  %v462 = vunpack.c.l.b16 %v94
  %v463 = vunpack.c.h.b16 %v94
  %v464 = vunpack.c.l.b16 %v95
  %v465 = vunpack.c.h.b16 %v95
  %v466 = vunpack.c.l.b16 %v96
  %v467 = vunpack.c.h.b16 %v96
  %v468 = vunpack.c.l.b16 %v97
  %v469 = vunpack.c.h.b16 %v97
  %v470 = vunpack.c.l.b16 %v98
  %v471 = vunpack.c.h.b16 %v98
  %v472 = vunpack.c.l.b16 %v99
  %v473 = vunpack.c.h.b16 %v99
  %v474 = vunpack.c.l.b16 %v100
  %v475 = vunpack.c.h.b16 %v100
  %v476 = vunpack.c.l.b16 %v101
  %v477 = vunpack.c.h.b16 %v101
  %v478 = vunpack.c.l.b16 %v102
  %v479 = vunpack.c.h.b16 %v102
  %v480 = vunpack.c.l.b16 %v103
  %v481 = vunpack.c.h.b16 %v103
  %v482 = vunpack.c.l.b16 %v104
  %v483 = vunpack.c.h.b16 %v104
  %v484 = vunpack.c.l.b16 %v105
  %v485 = vunpack.c.h.b16 %v105
  %v486 = vunpack.c.l.b16 %v106
  %v487 = vunpack.c.h.b16 %v106
  %v488 = vunpack.c.l.b16 %v107
  %v489 = vunpack.c.h.b16 %v107
  %v490 = vunpack.c.l.b16 %v108
  %v491 = vunpack.c.h.b16 %v108
  %v492 = vunpack.c.l.b16 %v109
  %v493 = vunpack.c.h.b16 %v109
  %v494 = vunpack.c.l.b16 %v110
  %v495 = vunpack.c.h.b16 %v110
  %v496 = vunpack.c.l.b16 %v111
  %v497 = vunpack.c.h.b16 %v111
  %v498 = vunpack.c.l.b16 %v112
  %v499 = vunpack.c.h.b16 %v112
  %v500 = vunpack.c.l.b16 %v113
  %v501 = vunpack.c.h.b16 %v113
  %v502 = vunpack.c.l.b16 %v114
  %v503 = vunpack.c.h.b16 %v114
  %v504 = vunpack.c.l.b16 %v115
  %v505 = vunpack.c.h.b16 %v115
  %v506 = vunpack.c.l.b16 %v116
  %v507 = vunpack.c.h.b16 %v116
  %v508 = vunpack.c.l.b16 %v117
  %v509 = vunpack.c.h.b16 %v117
  %v510 = vunpack.c.l.b16 %v118
  %v511 = vunpack.c.h.b16 %v118
  %v512 = vunpack.c.l.b16 %v119
  %v513 = vunpack.c.h.b16 %v119
  %v514 = vunpack.c.l.b16 %v120
  %v515 = vunpack.c.h.b16 %v120
  %v516 = vunpack.c.l.b16 %v121
  %v517 = vunpack.c.h.b16 %v121
  %v518 = vunpack.c.l.b16 %v122
  %v519 = vunpack.c.h.b16 %v122
  %v520 = vunpack.c.l.b16 %v123
  %v521 = vunpack.c.h.b16 %v123
  %v522 = vunpack.c.l.b16 %v124
  %v523 = vunpack.c.h.b16 %v124
  %v524 = vpack.c.b16 %v464, %v460
  %v525 = vpack.c.b16 %v465, %v461
  %v526 = vpack.c.b16 %v466, %v462
  %v527 = vpack.c.b16 %v467, %v463
  %v528 = vpack.c.b16 %v472, %v468
  %v529 = vpack.c.b16 %v473, %v469
  %v530 = vpack.c.b16 %v474, %v470
  %v531 = vpack.c.b16 %v475, %v471
  %v532 = vpack.c.b16 %v480, %v476
  %v533 = vpack.c.b16 %v481, %v477
  %v534 = vpack.c.b16 %v482, %v478
  %v535 = vpack.c.b16 %v483, %v479
  %v536 = vpack.c.b16 %v488, %v484
  %v537 = vpack.c.b16 %v489, %v485
  %v538 = vpack.c.b16 %v490, %v486
  %v539 = vpack.c.b16 %v491, %v487
  %v540 = vpack.c.b16 %v496, %v492
  %v541 = vpack.c.b16 %v497, %v493
  %v542 = vpack.c.b16 %v498, %v494
  %v543 = vpack.c.b16 %v499, %v495
  %v544 = vpack.c.b16 %v504, %v500
  %v545 = vpack.c.b16 %v505, %v501
  %v546 = vpack.c.b16 %v506, %v502
  %v547 = vpack.c.b16 %v507, %v503
  %v548 = vpack.c.b16 %v512, %v508
  %v549 = vpack.c.b16 %v513, %v509
  %v550 = vpack.c.b16 %v514, %v510
  %v551 = vpack.c.b16 %v515, %v511
  %v552 = vpack.c.b16 %v520, %v516
  %v553 = vpack.c.b16 %v521, %v517
  %v554 = vpack.c.b16 %v522, %v518
  %v555 = vpack.c.b16 %v523, %v519
  %588 = vmatprep.subr.bf16.mxu0 %v525
  %589 = vmatpush1.bf16.msra.mxu0 %v524
  %590 = vmatprep.subr.bf16.mxu0 %v529
  %591 = vmatpush1.bf16.msra.mxu0 %v528
  %592 = vmatprep.subr.bf16.mxu0 %v533
  %593 = vmatpush1.bf16.msra.mxu0 %v532
  %594 = vmatprep.subr.bf16.mxu0 %v537
  %595 = vmatpush1.bf16.msra.mxu0 %v536
  %596 = vmatprep.subr.bf16.mxu0 %v541
  %597 = vmatpush1.bf16.msra.mxu0 %v540
  %598 = vmatprep.subr.bf16.mxu0 %v545
  %599 = vmatpush1.bf16.msra.mxu0 %v544
  %600 = vmatprep.subr.bf16.mxu0 %v549
  %601 = vmatpush1.bf16.msra.mxu0 %v548
  %602 = vmatprep.subr.bf16.mxu0 %v553
  %603 = vmatpush1.bf16.msra.mxu0 %v552
  %604 = vmatprep.subr.bf16.mxu0 0
  %605 = vmatpush1.bf16.msra.mxu0 0
  %606 = vmatprep.subr.bf16.mxu0 0
  %607 = vmatpush1.bf16.msra.mxu0 0
  %608 = vmatprep.subr.bf16.mxu0 0
  %609 = vmatpush1.bf16.msra.mxu0 0
  %610 = vmatprep.subr.bf16.mxu0 0
  %611 = vmatpush1.bf16.msra.mxu0 0
  %612 = vmatprep.subr.bf16.mxu0 0
  %613 = vmatpush1.bf16.msra.mxu0 0
  %614 = vmatprep.subr.bf16.mxu0 0
  %615 = vmatpush1.bf16.msra.mxu0 0
  %616 = vmatprep.subr.bf16.mxu0 0
  %617 = vmatpush1.bf16.msra.mxu0 0
  %618 = vmatprep.subr.bf16.mxu0 0
  %619 = vmatpush1.bf16.msra.mxu0 0
  %620 = vmatprep.mubr.bf16.mxu0 0
  %621 = vmatmul.mubr.bf16.gmra.mrb[0].mxu0 %v427
  %v622 = vpop.f32.mrb[0].mxu0
  %v623 = vadd.f32 0.0, %v622
  %v624 = vpop.f32.mrb[0].mxu0
  %v625 = vadd.f32 0.0, %v624
  %v626 = vpop.f32.mrb[0].mxu0
  %v627 = vpop.f32.mrb[0].mxu0
  %628 = vdwg.mxu0
  %629 = vmatprep.subr.bf16.mxu0 %v527
  %630 = vmatpush1.bf16.msra.mxu0 %v526
  %631 = vmatprep.subr.bf16.mxu0 %v531
  %632 = vmatpush1.bf16.msra.mxu0 %v530
  %633 = vmatprep.subr.bf16.mxu0 %v535
  %634 = vmatpush1.bf16.msra.mxu0 %v534
  %635 = vmatprep.subr.bf16.mxu0 %v539
  %636 = vmatpush1.bf16.msra.mxu0 %v538
  %637 = vmatprep.subr.bf16.mxu0 %v543
  %638 = vmatpush1.bf16.msra.mxu0 %v542
  %639 = vmatprep.subr.bf16.mxu0 %v547
  %640 = vmatpush1.bf16.msra.mxu0 %v546
  %641 = vmatprep.subr.bf16.mxu0 %v551
  %642 = vmatpush1.bf16.msra.mxu0 %v550
  %643 = vmatprep.subr.bf16.mxu0 %v555
  %644 = vmatpush1.bf16.msra.mxu0 %v554
  %645 = vmatprep.subr.bf16.mxu0 0
  %646 = vmatpush1.bf16.msra.mxu0 0
  %647 = vmatprep.subr.bf16.mxu0 0
  %648 = vmatpush1.bf16.msra.mxu0 0
  %649 = vmatprep.subr.bf16.mxu0 0
  %650 = vmatpush1.bf16.msra.mxu0 0
  %651 = vmatprep.subr.bf16.mxu0 0
  %652 = vmatpush1.bf16.msra.mxu0 0
  %653 = vmatprep.subr.bf16.mxu0 0
  %654 = vmatpush1.bf16.msra.mxu0 0
  %655 = vmatprep.subr.bf16.mxu0 0
  %656 = vmatpush1.bf16.msra.mxu0 0
  %657 = vmatprep.subr.bf16.mxu0 0
  %658 = vmatpush1.bf16.msra.mxu0 0
  %659 = vmatprep.subr.bf16.mxu0 0
  %660 = vmatpush1.bf16.msra.mxu0 0
  %661 = vmatprep.mubr.bf16.mxu0 0
  %662 = vmatmul.mubr.bf16.gmra.mrb[0].mxu0 %v427
  %v663 = vpop.f32.mrb[0].mxu0
  %v664 = vadd.f32 0.0, %v663
  %v665 = vpop.f32.mrb[0].mxu0
  %v666 = vadd.f32 0.0, %v665
  %v667 = vpop.f32.mrb[0].mxu0
  %v668 = vpop.f32.mrb[0].mxu0
  %669 = vdwg.mxu0
  %v702 = vunpack.c.l.b16 %v61
  %v703 = vunpack.c.h.b16 %v61
  %v704 = vunpack.c.l.b16 %v62
  %v705 = vunpack.c.h.b16 %v62
  %v706 = vunpack.c.l.b16 %v63
  %v707 = vunpack.c.h.b16 %v63
  %v708 = vunpack.c.l.b16 %v64
  %v709 = vunpack.c.h.b16 %v64
  %v710 = vunpack.c.l.b16 %v65
  %v711 = vunpack.c.h.b16 %v65
  %v712 = vunpack.c.l.b16 %v66
  %v713 = vunpack.c.h.b16 %v66
  %v714 = vunpack.c.l.b16 %v67
  %v715 = vunpack.c.h.b16 %v67
  %v716 = vunpack.c.l.b16 %v68
  %v717 = vunpack.c.h.b16 %v68
  %v718 = vunpack.c.l.b16 %v69
  %v719 = vunpack.c.h.b16 %v69
  %v720 = vunpack.c.l.b16 %v70
  %v721 = vunpack.c.h.b16 %v70
  %v722 = vunpack.c.l.b16 %v71
  %v723 = vunpack.c.h.b16 %v71
  %v724 = vunpack.c.l.b16 %v72
  %v725 = vunpack.c.h.b16 %v72
  %v726 = vunpack.c.l.b16 %v73
  %v727 = vunpack.c.h.b16 %v73
  %v728 = vunpack.c.l.b16 %v74
  %v729 = vunpack.c.h.b16 %v74
  %v730 = vunpack.c.l.b16 %v75
  %v731 = vunpack.c.h.b16 %v75
  %v732 = vunpack.c.l.b16 %v76
  %v733 = vunpack.c.h.b16 %v76
  %v734 = vunpack.c.l.b16 %v77
  %v735 = vunpack.c.h.b16 %v77
  %v736 = vunpack.c.l.b16 %v78
  %v737 = vunpack.c.h.b16 %v78
  %v738 = vunpack.c.l.b16 %v79
  %v739 = vunpack.c.h.b16 %v79
  %v740 = vunpack.c.l.b16 %v80
  %v741 = vunpack.c.h.b16 %v80
  %v742 = vunpack.c.l.b16 %v81
  %v743 = vunpack.c.h.b16 %v81
  %v744 = vunpack.c.l.b16 %v82
  %v745 = vunpack.c.h.b16 %v82
  %v746 = vunpack.c.l.b16 %v83
  %v747 = vunpack.c.h.b16 %v83
  %v748 = vunpack.c.l.b16 %v84
  %v749 = vunpack.c.h.b16 %v84
  %v750 = vunpack.c.l.b16 %v85
  %v751 = vunpack.c.h.b16 %v85
  %v752 = vunpack.c.l.b16 %v86
  %v753 = vunpack.c.h.b16 %v86
  %v754 = vunpack.c.l.b16 %v87
  %v755 = vunpack.c.h.b16 %v87
  %v756 = vunpack.c.l.b16 %v88
  %v757 = vunpack.c.h.b16 %v88
  %v758 = vunpack.c.l.b16 %v89
  %v759 = vunpack.c.h.b16 %v89
  %v760 = vunpack.c.l.b16 %v90
  %v761 = vunpack.c.h.b16 %v90
  %v762 = vunpack.c.l.b16 %v91
  %v763 = vunpack.c.h.b16 %v91
  %v764 = vunpack.c.l.b16 %v92
  %v765 = vunpack.c.h.b16 %v92
  %v766 = vpack.c.b16 %v706, %v702
  %v767 = vpack.c.b16 %v707, %v703
  %v768 = vpack.c.b16 %v708, %v704
  %v769 = vpack.c.b16 %v709, %v705
  %v770 = vpack.c.b16 %v714, %v710
  %v771 = vpack.c.b16 %v715, %v711
  %v772 = vpack.c.b16 %v716, %v712
  %v773 = vpack.c.b16 %v717, %v713
  %v774 = vpack.c.b16 %v722, %v718
  %v775 = vpack.c.b16 %v723, %v719
  %v776 = vpack.c.b16 %v724, %v720
  %v777 = vpack.c.b16 %v725, %v721
  %v778 = vpack.c.b16 %v730, %v726
  %v779 = vpack.c.b16 %v731, %v727
  %v780 = vpack.c.b16 %v732, %v728
  %v781 = vpack.c.b16 %v733, %v729
  %v782 = vpack.c.b16 %v738, %v734
  %v783 = vpack.c.b16 %v739, %v735
  %v784 = vpack.c.b16 %v740, %v736
  %v785 = vpack.c.b16 %v741, %v737
  %v786 = vpack.c.b16 %v746, %v742
  %v787 = vpack.c.b16 %v747, %v743
  %v788 = vpack.c.b16 %v748, %v744
  %v789 = vpack.c.b16 %v749, %v745
  %v790 = vpack.c.b16 %v754, %v750
  %v791 = vpack.c.b16 %v755, %v751
  %v792 = vpack.c.b16 %v756, %v752
  %v793 = vpack.c.b16 %v757, %v753
  %v794 = vpack.c.b16 %v762, %v758
  %v795 = vpack.c.b16 %v763, %v759
  %v796 = vpack.c.b16 %v764, %v760
  %v797 = vpack.c.b16 %v765, %v761
  %830 = vmatprep.subr.bf16.mxu0 %v767
  %831 = vmatpush1.bf16.msra.mxu0 %v766
  %832 = vmatprep.subr.bf16.mxu0 %v771
  %833 = vmatpush1.bf16.msra.mxu0 %v770
  %834 = vmatprep.subr.bf16.mxu0 %v775
  %835 = vmatpush1.bf16.msra.mxu0 %v774
  %836 = vmatprep.subr.bf16.mxu0 %v779
  %837 = vmatpush1.bf16.msra.mxu0 %v778
  %838 = vmatprep.subr.bf16.mxu0 %v783
  %839 = vmatpush1.bf16.msra.mxu0 %v782
  %840 = vmatprep.subr.bf16.mxu0 %v787
  %841 = vmatpush1.bf16.msra.mxu0 %v786
  %842 = vmatprep.subr.bf16.mxu0 %v791
  %843 = vmatpush1.bf16.msra.mxu0 %v790
  %844 = vmatprep.subr.bf16.mxu0 %v795
  %845 = vmatpush1.bf16.msra.mxu0 %v794
  %846 = vmatprep.subr.bf16.mxu0 0
  %847 = vmatpush1.bf16.msra.mxu0 0
  %848 = vmatprep.subr.bf16.mxu0 0
  %849 = vmatpush1.bf16.msra.mxu0 0
  %850 = vmatprep.subr.bf16.mxu0 0
  %851 = vmatpush1.bf16.msra.mxu0 0
  %852 = vmatprep.subr.bf16.mxu0 0
  %853 = vmatpush1.bf16.msra.mxu0 0
  %854 = vmatprep.subr.bf16.mxu0 0
  %855 = vmatpush1.bf16.msra.mxu0 0
  %856 = vmatprep.subr.bf16.mxu0 0
  %857 = vmatpush1.bf16.msra.mxu0 0
  %858 = vmatprep.subr.bf16.mxu0 0
  %859 = vmatpush1.bf16.msra.mxu0 0
  %860 = vmatprep.subr.bf16.mxu0 0
  %861 = vmatpush1.bf16.msra.mxu0 0
  %862 = vmatprep.mubr.bf16.mxu0 0
  %863 = vmatmul.mubr.bf16.gmra.mrb[0].mxu0 %v426
  %v864 = vpop.f32.mrb[0].mxu0
  %v865 = vadd.f32 %v623, %v864
  %v866 = vpop.f32.mrb[0].mxu0
  %v867 = vadd.f32 %v625, %v866
  %v868 = vpop.f32.mrb[0].mxu0
  %v869 = vpop.f32.mrb[0].mxu0
  %870 = vdwg.mxu0
  %871 = vmatprep.subr.bf16.mxu0 %v769
  %872 = vmatpush1.bf16.msra.mxu0 %v768
  %873 = vmatprep.subr.bf16.mxu0 %v773
  %874 = vmatpush1.bf16.msra.mxu0 %v772
  %875 = vmatprep.subr.bf16.mxu0 %v777
  %876 = vmatpush1.bf16.msra.mxu0 %v776
  %877 = vmatprep.subr.bf16.mxu0 %v781
  %878 = vmatpush1.bf16.msra.mxu0 %v780
  %879 = vmatprep.subr.bf16.mxu0 %v785
  %880 = vmatpush1.bf16.msra.mxu0 %v784
  %881 = vmatprep.subr.bf16.mxu0 %v789
  %882 = vmatpush1.bf16.msra.mxu0 %v788
  %883 = vmatprep.subr.bf16.mxu0 %v793
  %884 = vmatpush1.bf16.msra.mxu0 %v792
  %885 = vmatprep.subr.bf16.mxu0 %v797
  %886 = vmatpush1.bf16.msra.mxu0 %v796
  %887 = vmatprep.subr.bf16.mxu0 0
  %888 = vmatpush1.bf16.msra.mxu0 0
  %889 = vmatprep.subr.bf16.mxu0 0
  %890 = vmatpush1.bf16.msra.mxu0 0
  %891 = vmatprep.subr.bf16.mxu0 0
  %892 = vmatpush1.bf16.msra.mxu0 0
  %893 = vmatprep.subr.bf16.mxu0 0
  %894 = vmatpush1.bf16.msra.mxu0 0
  %895 = vmatprep.subr.bf16.mxu0 0
  %896 = vmatpush1.bf16.msra.mxu0 0
  %897 = vmatprep.subr.bf16.mxu0 0
  %898 = vmatpush1.bf16.msra.mxu0 0
  %899 = vmatprep.subr.bf16.mxu0 0
  %900 = vmatpush1.bf16.msra.mxu0 0
  %901 = vmatprep.subr.bf16.mxu0 0
  %902 = vmatpush1.bf16.msra.mxu0 0
  %903 = vmatprep.mubr.bf16.mxu0 0
  %904 = vmatmul.mubr.bf16.gmra.mrb[0].mxu0 %v426
  %v905 = vpop.f32.mrb[0].mxu0
  %v906 = vadd.f32 %v664, %v905
  %v907 = vpop.f32.mrb[0].mxu0
  %v908 = vadd.f32 %v666, %v907
  %v909 = vpop.f32.mrb[0].mxu0
  %v910 = vpop.f32.mrb[0].mxu0
  %911 = vdwg.mxu0
  %v912 = vadd.f32 %v865, %v130
  %v913 = vadd.f32 %v867, %v134
  %v914 = vadd.f32 %v906, %v138
  %v915 = vadd.f32 %v908, %v142
  %v916 = vxor.u32 %v912, 2147483648
  %v917 = vmul.f32 %v916, 1.442695
  %v918 = vpow.pop %v917
  %v919 = vadd.f32 %v918, 1.0
  %v920 = vrcp.pop %v919
  %v921 = vmul.f32 1.0, %v920
  %v922 = vxor.u32 %v913, 2147483648
  %v923 = vmul.f32 %v922, 1.442695
  %v924 = vpow.pop %v923
  %v925 = vadd.f32 %v924, 1.0
  %v926 = vrcp.pop %v925
  %v927 = vmul.f32 1.0, %v926
  %v928 = vtanh.pop %v914
  %v929 = vxor.u32 %v915, 2147483648
  %v930 = vmul.f32 %v929, 1.442695
  %v931 = vpow.pop %v930
  %v932 = vadd.f32 %v931, 1.0
  %v933 = vrcp.pop %v932
  %v934 = vmul.f32 1.0, %v933
  %v935 = vmul.f32 %v927, %v150
  %v936 = vmul.f32 %v921, %v928
  %v937 = vadd.f32 %v935, %v936
  %v938 = vtanh.pop %v937
  %v939 = vmul.f32 %v934, %v938
  %940 = vst [vmem:[%s5] sm:$0xff] %v939
  %s941 = scalar_lea.vmem %s0, 32
  %v942 = vld [vmem:[%s941] sm:$0xff]
  %v943 = vld [vmem:[%s941 + $0x8] sm:$0xff]
  %v944 = vld [vmem:[%s941 + $0x10] sm:$0xff]
  %v945 = vld [vmem:[%s941 + $0x18] sm:$0xff]
  %946 = vmatprep.subr.bf16.mxu0 %v253
  %947 = vmatpush1.bf16.msra.mxu0 %v252
  %948 = vmatprep.subr.bf16.mxu0 %v257
  %949 = vmatpush1.bf16.msra.mxu0 %v256
  %950 = vmatprep.subr.bf16.mxu0 %v261
  %951 = vmatpush1.bf16.msra.mxu0 %v260
  %952 = vmatprep.subr.bf16.mxu0 %v265
  %953 = vmatpush1.bf16.msra.mxu0 %v264
  %954 = vmatprep.subr.bf16.mxu0 %v269
  %955 = vmatpush1.bf16.msra.mxu0 %v268
  %956 = vmatprep.subr.bf16.mxu0 %v273
  %957 = vmatpush1.bf16.msra.mxu0 %v272
  %958 = vmatprep.subr.bf16.mxu0 %v277
  %959 = vmatpush1.bf16.msra.mxu0 %v276
  %960 = vmatprep.subr.bf16.mxu0 %v281
  %961 = vmatpush1.bf16.msra.mxu0 %v280
  %962 = vmatprep.subr.bf16.mxu0 0
  %963 = vmatpush1.bf16.msra.mxu0 0
  %964 = vmatprep.subr.bf16.mxu0 0
  %965 = vmatpush1.bf16.msra.mxu0 0
  %966 = vmatprep.subr.bf16.mxu0 0
  %967 = vmatpush1.bf16.msra.mxu0 0
  %968 = vmatprep.subr.bf16.mxu0 0
  %969 = vmatpush1.bf16.msra.mxu0 0
  %970 = vmatprep.subr.bf16.mxu0 0
  %971 = vmatpush1.bf16.msra.mxu0 0
  %972 = vmatprep.subr.bf16.mxu0 0
  %973 = vmatpush1.bf16.msra.mxu0 0
  %974 = vmatprep.subr.bf16.mxu0 0
  %975 = vmatpush1.bf16.msra.mxu0 0
  %976 = vmatprep.subr.bf16.mxu0 0
  %977 = vmatpush1.bf16.msra.mxu0 0
  %978 = vmatprep.mubr.bf16.mxu0 0
  %979 = vmatmul.mubr.bf16.gmra.mrb[0].mxu0 %v426
  %v980 = vpop.f32.mrb[0].mxu0
  %v981 = vadd.f32 0.0, %v980
  %v982 = vpop.f32.mrb[0].mxu0
  %v983 = vadd.f32 0.0, %v982
  %v984 = vpop.f32.mrb[0].mxu0
  %v985 = vpop.f32.mrb[0].mxu0
  %986 = vdwg.mxu0
  %987 = vmatprep.subr.bf16.mxu0 %v255
  %988 = vmatpush1.bf16.msra.mxu0 %v254
  %989 = vmatprep.subr.bf16.mxu0 %v259
  %990 = vmatpush1.bf16.msra.mxu0 %v258
  %991 = vmatprep.subr.bf16.mxu0 %v263
  %992 = vmatpush1.bf16.msra.mxu0 %v262
  %993 = vmatprep.subr.bf16.mxu0 %v267
  %994 = vmatpush1.bf16.msra.mxu0 %v266
  %995 = vmatprep.subr.bf16.mxu0 %v271
  %996 = vmatpush1.bf16.msra.mxu0 %v270
  %997 = vmatprep.subr.bf16.mxu0 %v275
  %998 = vmatpush1.bf16.msra.mxu0 %v274
  %999 = vmatprep.subr.bf16.mxu0 %v279
  %1000 = vmatpush1.bf16.msra.mxu0 %v278
  %1001 = vmatprep.subr.bf16.mxu0 %v283
  %1002 = vmatpush1.bf16.msra.mxu0 %v282
  %1003 = vmatprep.subr.bf16.mxu0 0
  %1004 = vmatpush1.bf16.msra.mxu0 0
  %1005 = vmatprep.subr.bf16.mxu0 0
  %1006 = vmatpush1.bf16.msra.mxu0 0
  %1007 = vmatprep.subr.bf16.mxu0 0
  %1008 = vmatpush1.bf16.msra.mxu0 0
  %1009 = vmatprep.subr.bf16.mxu0 0
  %1010 = vmatpush1.bf16.msra.mxu0 0
  %1011 = vmatprep.subr.bf16.mxu0 0
  %1012 = vmatpush1.bf16.msra.mxu0 0
  %1013 = vmatprep.subr.bf16.mxu0 0
  %1014 = vmatpush1.bf16.msra.mxu0 0
  %1015 = vmatprep.subr.bf16.mxu0 0
  %1016 = vmatpush1.bf16.msra.mxu0 0
  %1017 = vmatprep.subr.bf16.mxu0 0
  %1018 = vmatpush1.bf16.msra.mxu0 0
  %1019 = vmatprep.mubr.bf16.mxu0 0
  %1020 = vmatmul.mubr.bf16.gmra.mrb[0].mxu0 %v426
  %v1021 = vpop.f32.mrb[0].mxu0
  %v1022 = vadd.f32 0.0, %v1021
  %v1023 = vpop.f32.mrb[0].mxu0
  %v1024 = vadd.f32 0.0, %v1023
  %v1025 = vpop.f32.mrb[0].mxu0
  %v1026 = vpop.f32.mrb[0].mxu0
  %1027 = vdwg.mxu0
  %v1028 = vadd.f32 %v942, %v981
  %v1029 = vadd.f32 %v943, %v983
  %v1030 = vadd.f32 %v944, %v1022
  %v1031 = vadd.f32 %v945, %v1024
  %v1032 = vxor.u32 %v1028, 2147483648
  %v1033 = vmul.f32 %v1032, 1.442695
  %v1034 = vpow.pop %v1033
  %v1035 = vadd.f32 %v1034, 1.0
  %v1036 = vrcp.pop %v1035
  %v1037 = vmul.f32 1.0, %v1036
  %v1038 = vxor.u32 %v1029, 2147483648
  %v1039 = vmul.f32 %v1038, 1.442695
  %v1040 = vpow.pop %v1039
  %v1041 = vadd.f32 %v1040, 1.0
  %v1042 = vrcp.pop %v1041
  %v1043 = vmul.f32 1.0, %v1042
  %v1044 = vtanh.pop %v1030
  %v1045 = vxor.u32 %v1031, 2147483648
  %v1046 = vmul.f32 %v1045, 1.442695
  %v1047 = vpow.pop %v1046
  %v1048 = vadd.f32 %v1047, 1.0
  %v1049 = vrcp.pop %v1048
  %v1050 = vmul.f32 1.0, %v1049
  %v1051 = vmul.f32 %v1043, %v423
  %v1052 = vmul.f32 %v1037, %v1044
  %v1053 = vadd.f32 %v1051, %v1052
  %v1054 = vtanh.pop %v1053
  %v1055 = vmul.f32 %v1050, %v1054
  %v1056 = vpack.c.bf16 %v1055, %v1055
  %v1057 = vpack.c.bf16 %v939, %v939
  %1058 = vmatprep.subr.bf16.mxu0 %v525
  %1059 = vmatpush1.bf16.msra.mxu0 %v524
  %1060 = vmatprep.subr.bf16.mxu0 %v529
  %1061 = vmatpush1.bf16.msra.mxu0 %v528
  %1062 = vmatprep.subr.bf16.mxu0 %v533
  %1063 = vmatpush1.bf16.msra.mxu0 %v532
  %1064 = vmatprep.subr.bf16.mxu0 %v537
  %1065 = vmatpush1.bf16.msra.mxu0 %v536
  %1066 = vmatprep.subr.bf16.mxu0 %v541
  %1067 = vmatpush1.bf16.msra.mxu0 %v540
  %1068 = vmatprep.subr.bf16.mxu0 %v545
  %1069 = vmatpush1.bf16.msra.mxu0 %v544
  %1070 = vmatprep.subr.bf16.mxu0 %v549
  %1071 = vmatpush1.bf16.msra.mxu0 %v548
  %1072 = vmatprep.subr.bf16.mxu0 %v553
  %1073 = vmatpush1.bf16.msra.mxu0 %v552
  %1074 = vmatprep.subr.bf16.mxu0 0
  %1075 = vmatpush1.bf16.msra.mxu0 0
  %1076 = vmatprep.subr.bf16.mxu0 0
  %1077 = vmatpush1.bf16.msra.mxu0 0
  %1078 = vmatprep.subr.bf16.mxu0 0
  %1079 = vmatpush1.bf16.msra.mxu0 0
  %1080 = vmatprep.subr.bf16.mxu0 0
  %1081 = vmatpush1.bf16.msra.mxu0 0
  %1082 = vmatprep.subr.bf16.mxu0 0
  %1083 = vmatpush1.bf16.msra.mxu0 0
  %1084 = vmatprep.subr.bf16.mxu0 0
  %1085 = vmatpush1.bf16.msra.mxu0 0
  %1086 = vmatprep.subr.bf16.mxu0 0
  %1087 = vmatpush1.bf16.msra.mxu0 0
  %1088 = vmatprep.subr.bf16.mxu0 0
  %1089 = vmatpush1.bf16.msra.mxu0 0
  %1090 = vmatprep.mubr.bf16.mxu0 0
  %1091 = vmatmul.mubr.bf16.gmra.mrb[0].mxu0 %v1057
  %v1092 = vpop.f32.mrb[0].mxu0
  %v1093 = vadd.f32 0.0, %v1092
  %v1094 = vpop.f32.mrb[0].mxu0
  %v1095 = vadd.f32 0.0, %v1094
  %v1096 = vpop.f32.mrb[0].mxu0
  %v1097 = vpop.f32.mrb[0].mxu0
  %1098 = vdwg.mxu0
  %1099 = vmatprep.subr.bf16.mxu0 %v527
  %1100 = vmatpush1.bf16.msra.mxu0 %v526
  %1101 = vmatprep.subr.bf16.mxu0 %v531
  %1102 = vmatpush1.bf16.msra.mxu0 %v530
  %1103 = vmatprep.subr.bf16.mxu0 %v535
  %1104 = vmatpush1.bf16.msra.mxu0 %v534
  %1105 = vmatprep.subr.bf16.mxu0 %v539
  %1106 = vmatpush1.bf16.msra.mxu0 %v538
  %1107 = vmatprep.subr.bf16.mxu0 %v543
  %1108 = vmatpush1.bf16.msra.mxu0 %v542
  %1109 = vmatprep.subr.bf16.mxu0 %v547
  %1110 = vmatpush1.bf16.msra.mxu0 %v546
  %1111 = vmatprep.subr.bf16.mxu0 %v551
  %1112 = vmatpush1.bf16.msra.mxu0 %v550
  %1113 = vmatprep.subr.bf16.mxu0 %v555
  %1114 = vmatpush1.bf16.msra.mxu0 %v554
  %1115 = vmatprep.subr.bf16.mxu0 0
  %1116 = vmatpush1.bf16.msra.mxu0 0
  %1117 = vmatprep.subr.bf16.mxu0 0
  %1118 = vmatpush1.bf16.msra.mxu0 0
  %1119 = vmatprep.subr.bf16.mxu0 0
  %1120 = vmatpush1.bf16.msra.mxu0 0
  %1121 = vmatprep.subr.bf16.mxu0 0
  %1122 = vmatpush1.bf16.msra.mxu0 0
  %1123 = vmatprep.subr.bf16.mxu0 0
  %1124 = vmatpush1.bf16.msra.mxu0 0
  %1125 = vmatprep.subr.bf16.mxu0 0
  %1126 = vmatpush1.bf16.msra.mxu0 0
  %1127 = vmatprep.subr.bf16.mxu0 0
  %1128 = vmatpush1.bf16.msra.mxu0 0
  %1129 = vmatprep.subr.bf16.mxu0 0
  %1130 = vmatpush1.bf16.msra.mxu0 0
  %1131 = vmatprep.mubr.bf16.mxu0 0
  %1132 = vmatmul.mubr.bf16.gmra.mrb[0].mxu0 %v1057
  %v1133 = vpop.f32.mrb[0].mxu0
  %v1134 = vadd.f32 0.0, %v1133
  %v1135 = vpop.f32.mrb[0].mxu0
  %v1136 = vadd.f32 0.0, %v1135
  %v1137 = vpop.f32.mrb[0].mxu0
  %v1138 = vpop.f32.mrb[0].mxu0
  %1139 = vdwg.mxu0
  %1140 = vmatprep.subr.bf16.mxu0 %v767
  %1141 = vmatpush1.bf16.msra.mxu0 %v766
  %1142 = vmatprep.subr.bf16.mxu0 %v771
  %1143 = vmatpush1.bf16.msra.mxu0 %v770
  %1144 = vmatprep.subr.bf16.mxu0 %v775
  %1145 = vmatpush1.bf16.msra.mxu0 %v774
  %1146 = vmatprep.subr.bf16.mxu0 %v779
  %1147 = vmatpush1.bf16.msra.mxu0 %v778
  %1148 = vmatprep.subr.bf16.mxu0 %v783
  %1149 = vmatpush1.bf16.msra.mxu0 %v782
  %1150 = vmatprep.subr.bf16.mxu0 %v787
  %1151 = vmatpush1.bf16.msra.mxu0 %v786
  %1152 = vmatprep.subr.bf16.mxu0 %v791
  %1153 = vmatpush1.bf16.msra.mxu0 %v790
  %1154 = vmatprep.subr.bf16.mxu0 %v795
  %1155 = vmatpush1.bf16.msra.mxu0 %v794
  %1156 = vmatprep.subr.bf16.mxu0 0
  %1157 = vmatpush1.bf16.msra.mxu0 0
  %1158 = vmatprep.subr.bf16.mxu0 0
  %1159 = vmatpush1.bf16.msra.mxu0 0
  %1160 = vmatprep.subr.bf16.mxu0 0
  %1161 = vmatpush1.bf16.msra.mxu0 0
  %1162 = vmatprep.subr.bf16.mxu0 0
  %1163 = vmatpush1.bf16.msra.mxu0 0
  %1164 = vmatprep.subr.bf16.mxu0 0
  %1165 = vmatpush1.bf16.msra.mxu0 0
  %1166 = vmatprep.subr.bf16.mxu0 0
  %1167 = vmatpush1.bf16.msra.mxu0 0
  %1168 = vmatprep.subr.bf16.mxu0 0
  %1169 = vmatpush1.bf16.msra.mxu0 0
  %1170 = vmatprep.subr.bf16.mxu0 0
  %1171 = vmatpush1.bf16.msra.mxu0 0
  %1172 = vmatprep.mubr.bf16.mxu0 0
  %1173 = vmatmul.mubr.bf16.gmra.mrb[0].mxu0 %v1056
  %v1174 = vpop.f32.mrb[0].mxu0
  %v1175 = vadd.f32 %v1093, %v1174
  %v1176 = vpop.f32.mrb[0].mxu0
  %v1177 = vadd.f32 %v1095, %v1176
  %v1178 = vpop.f32.mrb[0].mxu0
  %v1179 = vpop.f32.mrb[0].mxu0
  %1180 = vdwg.mxu0
  %1181 = vmatprep.subr.bf16.mxu0 %v769
  %1182 = vmatpush1.bf16.msra.mxu0 %v768
  %1183 = vmatprep.subr.bf16.mxu0 %v773
  %1184 = vmatpush1.bf16.msra.mxu0 %v772
  %1185 = vmatprep.subr.bf16.mxu0 %v777
  %1186 = vmatpush1.bf16.msra.mxu0 %v776
  %1187 = vmatprep.subr.bf16.mxu0 %v781
  %1188 = vmatpush1.bf16.msra.mxu0 %v780
  %1189 = vmatprep.subr.bf16.mxu0 %v785
  %1190 = vmatpush1.bf16.msra.mxu0 %v784
  %1191 = vmatprep.subr.bf16.mxu0 %v789
  %1192 = vmatpush1.bf16.msra.mxu0 %v788
  %1193 = vmatprep.subr.bf16.mxu0 %v793
  %1194 = vmatpush1.bf16.msra.mxu0 %v792
  %1195 = vmatprep.subr.bf16.mxu0 %v797
  %1196 = vmatpush1.bf16.msra.mxu0 %v796
  %1197 = vmatprep.subr.bf16.mxu0 0
  %1198 = vmatpush1.bf16.msra.mxu0 0
  %1199 = vmatprep.subr.bf16.mxu0 0
  %1200 = vmatpush1.bf16.msra.mxu0 0
  %1201 = vmatprep.subr.bf16.mxu0 0
  %1202 = vmatpush1.bf16.msra.mxu0 0
  %1203 = vmatprep.subr.bf16.mxu0 0
  %1204 = vmatpush1.bf16.msra.mxu0 0
  %1205 = vmatprep.subr.bf16.mxu0 0
  %1206 = vmatpush1.bf16.msra.mxu0 0
  %1207 = vmatprep.subr.bf16.mxu0 0
  %1208 = vmatpush1.bf16.msra.mxu0 0
  %1209 = vmatprep.subr.bf16.mxu0 0
  %1210 = vmatpush1.bf16.msra.mxu0 0
  %1211 = vmatprep.subr.bf16.mxu0 0
  %1212 = vmatpush1.bf16.msra.mxu0 0
  %1213 = vmatprep.mubr.bf16.mxu0 0
  %1214 = vmatmul.mubr.bf16.gmra.mrb[0].mxu0 %v1056
  %v1215 = vpop.f32.mrb[0].mxu0
  %v1216 = vadd.f32 %v1134, %v1215
  %v1217 = vpop.f32.mrb[0].mxu0
  %v1218 = vadd.f32 %v1136, %v1217
  %v1219 = vpop.f32.mrb[0].mxu0
  %v1220 = vpop.f32.mrb[0].mxu0
  %1221 = vdwg.mxu0
  %v1222 = vadd.f32 %v1175, %v130
  %v1223 = vadd.f32 %v1177, %v134
  %v1224 = vadd.f32 %v1216, %v138
  %v1225 = vadd.f32 %v1218, %v142
  %v1226 = vxor.u32 %v1222, 2147483648
  %v1227 = vmul.f32 %v1226, 1.442695
  %v1228 = vpow.pop %v1227
  %v1229 = vadd.f32 %v1228, 1.0
  %v1230 = vrcp.pop %v1229
  %v1231 = vmul.f32 1.0, %v1230
  %v1232 = vxor.u32 %v1223, 2147483648
  %v1233 = vmul.f32 %v1232, 1.442695
  %v1234 = vpow.pop %v1233
  %v1235 = vadd.f32 %v1234, 1.0
  %v1236 = vrcp.pop %v1235
  %v1237 = vmul.f32 1.0, %v1236
  %v1238 = vtanh.pop %v1224
  %v1239 = vxor.u32 %v1225, 2147483648
  %v1240 = vmul.f32 %v1239, 1.442695
  %v1241 = vpow.pop %v1240
  %v1242 = vadd.f32 %v1241, 1.0
  %v1243 = vrcp.pop %v1242
  %v1244 = vmul.f32 1.0, %v1243
  %v1245 = vmul.f32 %v1237, %v937
  %v1246 = vmul.f32 %v1231, %v1238
  %v1247 = vadd.f32 %v1245, %v1246
  %v1248 = vtanh.pop %v1247
  %v1249 = vmul.f32 %v1244, %v1248
  %s1250 = scalar_lea.vmem %s5, 8
  %1251 = vst [vmem:[%s1250] sm:$0xff] %v1249
  %s1252 = scalar_lea.vmem %s0, 64
  %v1253 = vld [vmem:[%s1252] sm:$0xff]
  %v1254 = vld [vmem:[%s1252 + $0x8] sm:$0xff]
  %v1255 = vld [vmem:[%s1252 + $0x10] sm:$0xff]
  %v1256 = vld [vmem:[%s1252 + $0x18] sm:$0xff]
  %1257 = vmatprep.subr.bf16.mxu0 %v253
  %1258 = vmatpush1.bf16.msra.mxu0 %v252
  %1259 = vmatprep.subr.bf16.mxu0 %v257
  %1260 = vmatpush1.bf16.msra.mxu0 %v256
  %1261 = vmatprep.subr.bf16.mxu0 %v261
  %1262 = vmatpush1.bf16.msra.mxu0 %v260
  %1263 = vmatprep.subr.bf16.mxu0 %v265
  %1264 = vmatpush1.bf16.msra.mxu0 %v264
  %1265 = vmatprep.subr.bf16.mxu0 %v269
  %1266 = vmatpush1.bf16.msra.mxu0 %v268
  %1267 = vmatprep.subr.bf16.mxu0 %v273
  %1268 = vmatpush1.bf16.msra.mxu0 %v272
  %1269 = vmatprep.subr.bf16.mxu0 %v277
  %1270 = vmatpush1.bf16.msra.mxu0 %v276
  %1271 = vmatprep.subr.bf16.mxu0 %v281
  %1272 = vmatpush1.bf16.msra.mxu0 %v280
  %1273 = vmatprep.subr.bf16.mxu0 0
  %1274 = vmatpush1.bf16.msra.mxu0 0
  %1275 = vmatprep.subr.bf16.mxu0 0
  %1276 = vmatpush1.bf16.msra.mxu0 0
  %1277 = vmatprep.subr.bf16.mxu0 0
  %1278 = vmatpush1.bf16.msra.mxu0 0
  %1279 = vmatprep.subr.bf16.mxu0 0
  %1280 = vmatpush1.bf16.msra.mxu0 0
  %1281 = vmatprep.subr.bf16.mxu0 0
  %1282 = vmatpush1.bf16.msra.mxu0 0
  %1283 = vmatprep.subr.bf16.mxu0 0
  %1284 = vmatpush1.bf16.msra.mxu0 0
  %1285 = vmatprep.subr.bf16.mxu0 0
  %1286 = vmatpush1.bf16.msra.mxu0 0
  %1287 = vmatprep.subr.bf16.mxu0 0
  %1288 = vmatpush1.bf16.msra.mxu0 0
  %1289 = vmatprep.mubr.bf16.mxu0 0
  %1290 = vmatmul.mubr.bf16.gmra.mrb[0].mxu0 %v1056
  %v1291 = vpop.f32.mrb[0].mxu0
  %v1292 = vadd.f32 0.0, %v1291
  %v1293 = vpop.f32.mrb[0].mxu0
  %v1294 = vadd.f32 0.0, %v1293
  %v1295 = vpop.f32.mrb[0].mxu0
  %v1296 = vpop.f32.mrb[0].mxu0
  %1297 = vdwg.mxu0
  %1298 = vmatprep.subr.bf16.mxu0 %v255
  %1299 = vmatpush1.bf16.msra.mxu0 %v254
  %1300 = vmatprep.subr.bf16.mxu0 %v259
  %1301 = vmatpush1.bf16.msra.mxu0 %v258
  %1302 = vmatprep.subr.bf16.mxu0 %v263
  %1303 = vmatpush1.bf16.msra.mxu0 %v262
  %1304 = vmatprep.subr.bf16.mxu0 %v267
  %1305 = vmatpush1.bf16.msra.mxu0 %v266
  %1306 = vmatprep.subr.bf16.mxu0 %v271
  %1307 = vmatpush1.bf16.msra.mxu0 %v270
  %1308 = vmatprep.subr.bf16.mxu0 %v275
  %1309 = vmatpush1.bf16.msra.mxu0 %v274
  %1310 = vmatprep.subr.bf16.mxu0 %v279
  %1311 = vmatpush1.bf16.msra.mxu0 %v278
  %1312 = vmatprep.subr.bf16.mxu0 %v283
  %1313 = vmatpush1.bf16.msra.mxu0 %v282
  %1314 = vmatprep.subr.bf16.mxu0 0
  %1315 = vmatpush1.bf16.msra.mxu0 0
  %1316 = vmatprep.subr.bf16.mxu0 0
  %1317 = vmatpush1.bf16.msra.mxu0 0
  %1318 = vmatprep.subr.bf16.mxu0 0
  %1319 = vmatpush1.bf16.msra.mxu0 0
  %1320 = vmatprep.subr.bf16.mxu0 0
  %1321 = vmatpush1.bf16.msra.mxu0 0
  %1322 = vmatprep.subr.bf16.mxu0 0
  %1323 = vmatpush1.bf16.msra.mxu0 0
  %1324 = vmatprep.subr.bf16.mxu0 0
  %1325 = vmatpush1.bf16.msra.mxu0 0
  %1326 = vmatprep.subr.bf16.mxu0 0
  %1327 = vmatpush1.bf16.msra.mxu0 0
  %1328 = vmatprep.subr.bf16.mxu0 0
  %1329 = vmatpush1.bf16.msra.mxu0 0
  %1330 = vmatprep.mubr.bf16.mxu0 0
  %1331 = vmatmul.mubr.bf16.gmra.mrb[0].mxu0 %v1056
  %v1332 = vpop.f32.mrb[0].mxu0
  %v1333 = vadd.f32 0.0, %v1332
  %v1334 = vpop.f32.mrb[0].mxu0
  %v1335 = vadd.f32 0.0, %v1334
  %v1336 = vpop.f32.mrb[0].mxu0
  %v1337 = vpop.f32.mrb[0].mxu0
  %1338 = vdwg.mxu0
  %v1339 = vadd.f32 %v1253, %v1292
  %v1340 = vadd.f32 %v1254, %v1294
  %v1341 = vadd.f32 %v1255, %v1333
  %v1342 = vadd.f32 %v1256, %v1335
  %v1343 = vxor.u32 %v1339, 2147483648
  %v1344 = vmul.f32 %v1343, 1.442695
  %v1345 = vpow.pop %v1344
  %v1346 = vadd.f32 %v1345, 1.0
  %v1347 = vrcp.pop %v1346
  %v1348 = vmul.f32 1.0, %v1347
  %v1349 = vxor.u32 %v1340, 2147483648
  %v1350 = vmul.f32 %v1349, 1.442695
  %v1351 = vpow.pop %v1350
  %v1352 = vadd.f32 %v1351, 1.0
  %v1353 = vrcp.pop %v1352
  %v1354 = vmul.f32 1.0, %v1353
  %v1355 = vtanh.pop %v1341
  %v1356 = vxor.u32 %v1342, 2147483648
  %v1357 = vmul.f32 %v1356, 1.442695
  %v1358 = vpow.pop %v1357
  %v1359 = vadd.f32 %v1358, 1.0
  %v1360 = vrcp.pop %v1359
  %v1361 = vmul.f32 1.0, %v1360
  %v1362 = vmul.f32 %v1354, %v1053
  %v1363 = vmul.f32 %v1348, %v1355
  %v1364 = vadd.f32 %v1362, %v1363
  %v1365 = vtanh.pop %v1364
  %v1366 = vmul.f32 %v1361, %v1365
  %v1367 = vpack.c.bf16 %v1366, %v1366
  %v1368 = vpack.c.bf16 %v1249, %v1249
  %1369 = vmatprep.subr.bf16.mxu0 %v525
  %1370 = vmatpush1.bf16.msra.mxu0 %v524
  %1371 = vmatprep.subr.bf16.mxu0 %v529
  %1372 = vmatpush1.bf16.msra.mxu0 %v528
  %1373 = vmatprep.subr.bf16.mxu0 %v533
  %1374 = vmatpush1.bf16.msra.mxu0 %v532
  %1375 = vmatprep.subr.bf16.mxu0 %v537
  %1376 = vmatpush1.bf16.msra.mxu0 %v536
  %1377 = vmatprep.subr.bf16.mxu0 %v541
  %1378 = vmatpush1.bf16.msra.mxu0 %v540
  %1379 = vmatprep.subr.bf16.mxu0 %v545
  %1380 = vmatpush1.bf16.msra.mxu0 %v544
  %1381 = vmatprep.subr.bf16.mxu0 %v549
  %1382 = vmatpush1.bf16.msra.mxu0 %v548
  %1383 = vmatprep.subr.bf16.mxu0 %v553
  %1384 = vmatpush1.bf16.msra.mxu0 %v552
  %1385 = vmatprep.subr.bf16.mxu0 0
  %1386 = vmatpush1.bf16.msra.mxu0 0
  %1387 = vmatprep.subr.bf16.mxu0 0
  %1388 = vmatpush1.bf16.msra.mxu0 0
  %1389 = vmatprep.subr.bf16.mxu0 0
  %1390 = vmatpush1.bf16.msra.mxu0 0
  %1391 = vmatprep.subr.bf16.mxu0 0
  %1392 = vmatpush1.bf16.msra.mxu0 0
  %1393 = vmatprep.subr.bf16.mxu0 0
  %1394 = vmatpush1.bf16.msra.mxu0 0
  %1395 = vmatprep.subr.bf16.mxu0 0
  %1396 = vmatpush1.bf16.msra.mxu0 0
  %1397 = vmatprep.subr.bf16.mxu0 0
  %1398 = vmatpush1.bf16.msra.mxu0 0
  %1399 = vmatprep.subr.bf16.mxu0 0
  %1400 = vmatpush1.bf16.msra.mxu0 0
  %1401 = vmatprep.mubr.bf16.mxu0 0
  %1402 = vmatmul.mubr.bf16.gmra.mrb[0].mxu0 %v1368
  %v1403 = vpop.f32.mrb[0].mxu0
  %v1404 = vadd.f32 0.0, %v1403
  %v1405 = vpop.f32.mrb[0].mxu0
  %v1406 = vadd.f32 0.0, %v1405
  %v1407 = vpop.f32.mrb[0].mxu0
  %v1408 = vpop.f32.mrb[0].mxu0
  %1409 = vdwg.mxu0
  %1410 = vmatprep.subr.bf16.mxu0 %v527
  %1411 = vmatpush1.bf16.msra.mxu0 %v526
  %1412 = vmatprep.subr.bf16.mxu0 %v531
  %1413 = vmatpush1.bf16.msra.mxu0 %v530
  %1414 = vmatprep.subr.bf16.mxu0 %v535
  %1415 = vmatpush1.bf16.msra.mxu0 %v534
  %1416 = vmatprep.subr.bf16.mxu0 %v539
  %1417 = vmatpush1.bf16.msra.mxu0 %v538
  %1418 = vmatprep.subr.bf16.mxu0 %v543
  %1419 = vmatpush1.bf16.msra.mxu0 %v542
  %1420 = vmatprep.subr.bf16.mxu0 %v547
  %1421 = vmatpush1.bf16.msra.mxu0 %v546
  %1422 = vmatprep.subr.bf16.mxu0 %v551
  %1423 = vmatpush1.bf16.msra.mxu0 %v550
  %1424 = vmatprep.subr.bf16.mxu0 %v555
  %1425 = vmatpush1.bf16.msra.mxu0 %v554
  %1426 = vmatprep.subr.bf16.mxu0 0
  %1427 = vmatpush1.bf16.msra.mxu0 0
  %1428 = vmatprep.subr.bf16.mxu0 0
  %1429 = vmatpush1.bf16.msra.mxu0 0
  %1430 = vmatprep.subr.bf16.mxu0 0
  %1431 = vmatpush1.bf16.msra.mxu0 0
  %1432 = vmatprep.subr.bf16.mxu0 0
  %1433 = vmatpush1.bf16.msra.mxu0 0
  %1434 = vmatprep.subr.bf16.mxu0 0
  %1435 = vmatpush1.bf16.msra.mxu0 0
  %1436 = vmatprep.subr.bf16.mxu0 0
  %1437 = vmatpush1.bf16.msra.mxu0 0
  %1438 = vmatprep.subr.bf16.mxu0 0
  %1439 = vmatpush1.bf16.msra.mxu0 0
  %1440 = vmatprep.subr.bf16.mxu0 0
  %1441 = vmatpush1.bf16.msra.mxu0 0
  %1442 = vmatprep.mubr.bf16.mxu0 0
  %1443 = vmatmul.mubr.bf16.gmra.mrb[0].mxu0 %v1368
  %v1444 = vpop.f32.mrb[0].mxu0
  %v1445 = vadd.f32 0.0, %v1444
  %v1446 = vpop.f32.mrb[0].mxu0
  %v1447 = vadd.f32 0.0, %v1446
  %v1448 = vpop.f32.mrb[0].mxu0
  %v1449 = vpop.f32.mrb[0].mxu0
  %1450 = vdwg.mxu0
  %1451 = vmatprep.subr.bf16.mxu0 %v767
  %1452 = vmatpush1.bf16.msra.mxu0 %v766
  %1453 = vmatprep.subr.bf16.mxu0 %v771
  %1454 = vmatpush1.bf16.msra.mxu0 %v770
  %1455 = vmatprep.subr.bf16.mxu0 %v775
  %1456 = vmatpush1.bf16.msra.mxu0 %v774
  %1457 = vmatprep.subr.bf16.mxu0 %v779
  %1458 = vmatpush1.bf16.msra.mxu0 %v778
  %1459 = vmatprep.subr.bf16.mxu0 %v783
  %1460 = vmatpush1.bf16.msra.mxu0 %v782
  %1461 = vmatprep.subr.bf16.mxu0 %v787
  %1462 = vmatpush1.bf16.msra.mxu0 %v786
  %1463 = vmatprep.subr.bf16.mxu0 %v791
  %1464 = vmatpush1.bf16.msra.mxu0 %v790
  %1465 = vmatprep.subr.bf16.mxu0 %v795
  %1466 = vmatpush1.bf16.msra.mxu0 %v794
  %1467 = vmatprep.subr.bf16.mxu0 0
  %1468 = vmatpush1.bf16.msra.mxu0 0
  %1469 = vmatprep.subr.bf16.mxu0 0
  %1470 = vmatpush1.bf16.msra.mxu0 0
  %1471 = vmatprep.subr.bf16.mxu0 0
  %1472 = vmatpush1.bf16.msra.mxu0 0
  %1473 = vmatprep.subr.bf16.mxu0 0
  %1474 = vmatpush1.bf16.msra.mxu0 0
  %1475 = vmatprep.subr.bf16.mxu0 0
  %1476 = vmatpush1.bf16.msra.mxu0 0
  %1477 = vmatprep.subr.bf16.mxu0 0
  %1478 = vmatpush1.bf16.msra.mxu0 0
  %1479 = vmatprep.subr.bf16.mxu0 0
  %1480 = vmatpush1.bf16.msra.mxu0 0
  %1481 = vmatprep.subr.bf16.mxu0 0
  %1482 = vmatpush1.bf16.msra.mxu0 0
  %1483 = vmatprep.mubr.bf16.mxu0 0
  %1484 = vmatmul.mubr.bf16.gmra.mrb[0].mxu0 %v1367
  %v1485 = vpop.f32.mrb[0].mxu0
  %v1486 = vadd.f32 %v1404, %v1485
  %v1487 = vpop.f32.mrb[0].mxu0
  %v1488 = vadd.f32 %v1406, %v1487
  %v1489 = vpop.f32.mrb[0].mxu0
  %v1490 = vpop.f32.mrb[0].mxu0
  %1491 = vdwg.mxu0
  %1492 = vmatprep.subr.bf16.mxu0 %v769
  %1493 = vmatpush1.bf16.msra.mxu0 %v768
  %1494 = vmatprep.subr.bf16.mxu0 %v773
  %1495 = vmatpush1.bf16.msra.mxu0 %v772
  %1496 = vmatprep.subr.bf16.mxu0 %v777
  %1497 = vmatpush1.bf16.msra.mxu0 %v776
  %1498 = vmatprep.subr.bf16.mxu0 %v781
  %1499 = vmatpush1.bf16.msra.mxu0 %v780
  %1500 = vmatprep.subr.bf16.mxu0 %v785
  %1501 = vmatpush1.bf16.msra.mxu0 %v784
  %1502 = vmatprep.subr.bf16.mxu0 %v789
  %1503 = vmatpush1.bf16.msra.mxu0 %v788
  %1504 = vmatprep.subr.bf16.mxu0 %v793
  %1505 = vmatpush1.bf16.msra.mxu0 %v792
  %1506 = vmatprep.subr.bf16.mxu0 %v797
  %1507 = vmatpush1.bf16.msra.mxu0 %v796
  %1508 = vmatprep.subr.bf16.mxu0 0
  %1509 = vmatpush1.bf16.msra.mxu0 0
  %1510 = vmatprep.subr.bf16.mxu0 0
  %1511 = vmatpush1.bf16.msra.mxu0 0
  %1512 = vmatprep.subr.bf16.mxu0 0
  %1513 = vmatpush1.bf16.msra.mxu0 0
  %1514 = vmatprep.subr.bf16.mxu0 0
  %1515 = vmatpush1.bf16.msra.mxu0 0
  %1516 = vmatprep.subr.bf16.mxu0 0
  %1517 = vmatpush1.bf16.msra.mxu0 0
  %1518 = vmatprep.subr.bf16.mxu0 0
  %1519 = vmatpush1.bf16.msra.mxu0 0
  %1520 = vmatprep.subr.bf16.mxu0 0
  %1521 = vmatpush1.bf16.msra.mxu0 0
  %1522 = vmatprep.subr.bf16.mxu0 0
  %1523 = vmatpush1.bf16.msra.mxu0 0
  %1524 = vmatprep.mubr.bf16.mxu0 0
  %1525 = vmatmul.mubr.bf16.gmra.mrb[0].mxu0 %v1367
  %v1526 = vpop.f32.mrb[0].mxu0
  %v1527 = vadd.f32 %v1445, %v1526
  %v1528 = vpop.f32.mrb[0].mxu0
  %v1529 = vadd.f32 %v1447, %v1528
  %v1530 = vpop.f32.mrb[0].mxu0
  %v1531 = vpop.f32.mrb[0].mxu0
  %1532 = vdwg.mxu0
  %v1533 = vadd.f32 %v1486, %v130
  %v1534 = vadd.f32 %v1488, %v134
  %v1535 = vadd.f32 %v1527, %v138
  %v1536 = vadd.f32 %v1529, %v142
  %v1537 = vxor.u32 %v1533, 2147483648
  %v1538 = vmul.f32 %v1537, 1.442695
  %v1539 = vpow.pop %v1538
  %v1540 = vadd.f32 %v1539, 1.0
  %v1541 = vrcp.pop %v1540
  %v1542 = vmul.f32 1.0, %v1541
  %v1543 = vxor.u32 %v1534, 2147483648
  %v1544 = vmul.f32 %v1543, 1.442695
  %v1545 = vpow.pop %v1544
  %v1546 = vadd.f32 %v1545, 1.0
  %v1547 = vrcp.pop %v1546
  %v1548 = vmul.f32 1.0, %v1547
  %v1549 = vtanh.pop %v1535
  %v1550 = vxor.u32 %v1536, 2147483648
  %v1551 = vmul.f32 %v1550, 1.442695
  %v1552 = vpow.pop %v1551
  %v1553 = vadd.f32 %v1552, 1.0
  %v1554 = vrcp.pop %v1553
  %v1555 = vmul.f32 1.0, %v1554
  %v1556 = vmul.f32 %v1548, %v1247
  %v1557 = vmul.f32 %v1542, %v1549
  %v1558 = vadd.f32 %v1556, %v1557
  %v1559 = vtanh.pop %v1558
  %v1560 = vmul.f32 %v1555, %v1559
  %s1561 = scalar_lea.vmem %s5, 16
  %1562 = vst [vmem:[%s1561] sm:$0xff] %v1560
  %s1563 = scalar_lea.vmem %s0, 96
  %v1564 = vld [vmem:[%s1563] sm:$0xff]
  %v1565 = vld [vmem:[%s1563 + $0x8] sm:$0xff]
  %v1566 = vld [vmem:[%s1563 + $0x10] sm:$0xff]
  %v1567 = vld [vmem:[%s1563 + $0x18] sm:$0xff]
  %1568 = vmatprep.subr.bf16.mxu0 %v253
  %1569 = vmatpush1.bf16.msra.mxu0 %v252
  %1570 = vmatprep.subr.bf16.mxu0 %v257
  %1571 = vmatpush1.bf16.msra.mxu0 %v256
  %1572 = vmatprep.subr.bf16.mxu0 %v261
  %1573 = vmatpush1.bf16.msra.mxu0 %v260
  %1574 = vmatprep.subr.bf16.mxu0 %v265
  %1575 = vmatpush1.bf16.msra.mxu0 %v264
  %1576 = vmatprep.subr.bf16.mxu0 %v269
  %1577 = vmatpush1.bf16.msra.mxu0 %v268
  %1578 = vmatprep.subr.bf16.mxu0 %v273
  %1579 = vmatpush1.bf16.msra.mxu0 %v272
  %1580 = vmatprep.subr.bf16.mxu0 %v277
  %1581 = vmatpush1.bf16.msra.mxu0 %v276
  %1582 = vmatprep.subr.bf16.mxu0 %v281
  %1583 = vmatpush1.bf16.msra.mxu0 %v280
  %1584 = vmatprep.subr.bf16.mxu0 0
  %1585 = vmatpush1.bf16.msra.mxu0 0
  %1586 = vmatprep.subr.bf16.mxu0 0
  %1587 = vmatpush1.bf16.msra.mxu0 0
  %1588 = vmatprep.subr.bf16.mxu0 0
  %1589 = vmatpush1.bf16.msra.mxu0 0
  %1590 = vmatprep.subr.bf16.mxu0 0
  %1591 = vmatpush1.bf16.msra.mxu0 0
  %1592 = vmatprep.subr.bf16.mxu0 0
  %1593 = vmatpush1.bf16.msra.mxu0 0
  %1594 = vmatprep.subr.bf16.mxu0 0
  %1595 = vmatpush1.bf16.msra.mxu0 0
  %1596 = vmatprep.subr.bf16.mxu0 0
  %1597 = vmatpush1.bf16.msra.mxu0 0
  %1598 = vmatprep.subr.bf16.mxu0 0
  %1599 = vmatpush1.bf16.msra.mxu0 0
  %1600 = vmatprep.mubr.bf16.mxu0 0
  %1601 = vmatmul.mubr.bf16.gmra.mrb[0].mxu0 %v1367
  %v1602 = vpop.f32.mrb[0].mxu0
  %v1603 = vadd.f32 0.0, %v1602
  %v1604 = vpop.f32.mrb[0].mxu0
  %v1605 = vadd.f32 0.0, %v1604
  %v1606 = vpop.f32.mrb[0].mxu0
  %v1607 = vpop.f32.mrb[0].mxu0
  %1608 = vdwg.mxu0
  %1609 = vmatprep.subr.bf16.mxu0 %v255
  %1610 = vmatpush1.bf16.msra.mxu0 %v254
  %1611 = vmatprep.subr.bf16.mxu0 %v259
  %1612 = vmatpush1.bf16.msra.mxu0 %v258
  %1613 = vmatprep.subr.bf16.mxu0 %v263
  %1614 = vmatpush1.bf16.msra.mxu0 %v262
  %1615 = vmatprep.subr.bf16.mxu0 %v267
  %1616 = vmatpush1.bf16.msra.mxu0 %v266
  %1617 = vmatprep.subr.bf16.mxu0 %v271
  %1618 = vmatpush1.bf16.msra.mxu0 %v270
  %1619 = vmatprep.subr.bf16.mxu0 %v275
  %1620 = vmatpush1.bf16.msra.mxu0 %v274
  %1621 = vmatprep.subr.bf16.mxu0 %v279
  %1622 = vmatpush1.bf16.msra.mxu0 %v278
  %1623 = vmatprep.subr.bf16.mxu0 %v283
  %1624 = vmatpush1.bf16.msra.mxu0 %v282
  %1625 = vmatprep.subr.bf16.mxu0 0
  %1626 = vmatpush1.bf16.msra.mxu0 0
  %1627 = vmatprep.subr.bf16.mxu0 0
  %1628 = vmatpush1.bf16.msra.mxu0 0
  %1629 = vmatprep.subr.bf16.mxu0 0
  %1630 = vmatpush1.bf16.msra.mxu0 0
  %1631 = vmatprep.subr.bf16.mxu0 0
  %1632 = vmatpush1.bf16.msra.mxu0 0
  %1633 = vmatprep.subr.bf16.mxu0 0
  %1634 = vmatpush1.bf16.msra.mxu0 0
  %1635 = vmatprep.subr.bf16.mxu0 0
  %1636 = vmatpush1.bf16.msra.mxu0 0
  %1637 = vmatprep.subr.bf16.mxu0 0
  %1638 = vmatpush1.bf16.msra.mxu0 0
  %1639 = vmatprep.subr.bf16.mxu0 0
  %1640 = vmatpush1.bf16.msra.mxu0 0
  %1641 = vmatprep.mubr.bf16.mxu0 0
  %1642 = vmatmul.mubr.bf16.gmra.mrb[0].mxu0 %v1367
  %v1643 = vpop.f32.mrb[0].mxu0
  %v1644 = vadd.f32 0.0, %v1643
  %v1645 = vpop.f32.mrb[0].mxu0
  %v1646 = vadd.f32 0.0, %v1645
  %v1647 = vpop.f32.mrb[0].mxu0
  %v1648 = vpop.f32.mrb[0].mxu0
  %1649 = vdwg.mxu0
  %v1650 = vadd.f32 %v1564, %v1603
  %v1651 = vadd.f32 %v1565, %v1605
  %v1652 = vadd.f32 %v1566, %v1644
  %v1653 = vadd.f32 %v1567, %v1646
  %v1654 = vxor.u32 %v1650, 2147483648
  %v1655 = vmul.f32 %v1654, 1.442695
  %v1656 = vpow.pop %v1655
  %v1657 = vadd.f32 %v1656, 1.0
  %v1658 = vrcp.pop %v1657
  %v1659 = vmul.f32 1.0, %v1658
  %v1660 = vxor.u32 %v1651, 2147483648
  %v1661 = vmul.f32 %v1660, 1.442695
  %v1662 = vpow.pop %v1661
  %v1663 = vadd.f32 %v1662, 1.0
  %v1664 = vrcp.pop %v1663
  %v1665 = vmul.f32 1.0, %v1664
  %v1666 = vtanh.pop %v1652
  %v1667 = vxor.u32 %v1653, 2147483648
  %v1668 = vmul.f32 %v1667, 1.442695
  %v1669 = vpow.pop %v1668
  %v1670 = vadd.f32 %v1669, 1.0
  %v1671 = vrcp.pop %v1670
  %v1672 = vmul.f32 1.0, %v1671
  %v1673 = vmul.f32 %v1665, %v1364
  %v1674 = vmul.f32 %v1659, %v1666
  %v1675 = vadd.f32 %v1673, %v1674
  %v1676 = vtanh.pop %v1675
  %v1677 = vmul.f32 %v1672, %v1676
  %v1678 = vpack.c.bf16 %v1677, %v1677
  %v1679 = vpack.c.bf16 %v1560, %v1560
  %1680 = vmatprep.subr.bf16.mxu0 %v525
  %1681 = vmatpush1.bf16.msra.mxu0 %v524
  %1682 = vmatprep.subr.bf16.mxu0 %v529
  %1683 = vmatpush1.bf16.msra.mxu0 %v528
  %1684 = vmatprep.subr.bf16.mxu0 %v533
  %1685 = vmatpush1.bf16.msra.mxu0 %v532
  %1686 = vmatprep.subr.bf16.mxu0 %v537
  %1687 = vmatpush1.bf16.msra.mxu0 %v536
  %1688 = vmatprep.subr.bf16.mxu0 %v541
  %1689 = vmatpush1.bf16.msra.mxu0 %v540
  %1690 = vmatprep.subr.bf16.mxu0 %v545
  %1691 = vmatpush1.bf16.msra.mxu0 %v544
  %1692 = vmatprep.subr.bf16.mxu0 %v549
  %1693 = vmatpush1.bf16.msra.mxu0 %v548
  %1694 = vmatprep.subr.bf16.mxu0 %v553
  %1695 = vmatpush1.bf16.msra.mxu0 %v552
  %1696 = vmatprep.subr.bf16.mxu0 0
  %1697 = vmatpush1.bf16.msra.mxu0 0
  %1698 = vmatprep.subr.bf16.mxu0 0
  %1699 = vmatpush1.bf16.msra.mxu0 0
  %1700 = vmatprep.subr.bf16.mxu0 0
  %1701 = vmatpush1.bf16.msra.mxu0 0
  %1702 = vmatprep.subr.bf16.mxu0 0
  %1703 = vmatpush1.bf16.msra.mxu0 0
  %1704 = vmatprep.subr.bf16.mxu0 0
  %1705 = vmatpush1.bf16.msra.mxu0 0
  %1706 = vmatprep.subr.bf16.mxu0 0
  %1707 = vmatpush1.bf16.msra.mxu0 0
  %1708 = vmatprep.subr.bf16.mxu0 0
  %1709 = vmatpush1.bf16.msra.mxu0 0
  %1710 = vmatprep.subr.bf16.mxu0 0
  %1711 = vmatpush1.bf16.msra.mxu0 0
  %1712 = vmatprep.mubr.bf16.mxu0 0
  %1713 = vmatmul.mubr.bf16.gmra.mrb[0].mxu0 %v1679
  %v1714 = vpop.f32.mrb[0].mxu0
  %v1715 = vadd.f32 0.0, %v1714
  %v1716 = vpop.f32.mrb[0].mxu0
  %v1717 = vadd.f32 0.0, %v1716
  %v1718 = vpop.f32.mrb[0].mxu0
  %v1719 = vpop.f32.mrb[0].mxu0
  %1720 = vdwg.mxu0
  %1721 = vmatprep.subr.bf16.mxu0 %v527
  %1722 = vmatpush1.bf16.msra.mxu0 %v526
  %1723 = vmatprep.subr.bf16.mxu0 %v531
  %1724 = vmatpush1.bf16.msra.mxu0 %v530
  %1725 = vmatprep.subr.bf16.mxu0 %v535
  %1726 = vmatpush1.bf16.msra.mxu0 %v534
  %1727 = vmatprep.subr.bf16.mxu0 %v539
  %1728 = vmatpush1.bf16.msra.mxu0 %v538
  %1729 = vmatprep.subr.bf16.mxu0 %v543
  %1730 = vmatpush1.bf16.msra.mxu0 %v542
  %1731 = vmatprep.subr.bf16.mxu0 %v547
  %1732 = vmatpush1.bf16.msra.mxu0 %v546
  %1733 = vmatprep.subr.bf16.mxu0 %v551
  %1734 = vmatpush1.bf16.msra.mxu0 %v550
  %1735 = vmatprep.subr.bf16.mxu0 %v555
  %1736 = vmatpush1.bf16.msra.mxu0 %v554
  %1737 = vmatprep.subr.bf16.mxu0 0
  %1738 = vmatpush1.bf16.msra.mxu0 0
  %1739 = vmatprep.subr.bf16.mxu0 0
  %1740 = vmatpush1.bf16.msra.mxu0 0
  %1741 = vmatprep.subr.bf16.mxu0 0
  %1742 = vmatpush1.bf16.msra.mxu0 0
  %1743 = vmatprep.subr.bf16.mxu0 0
  %1744 = vmatpush1.bf16.msra.mxu0 0
  %1745 = vmatprep.subr.bf16.mxu0 0
  %1746 = vmatpush1.bf16.msra.mxu0 0
  %1747 = vmatprep.subr.bf16.mxu0 0
  %1748 = vmatpush1.bf16.msra.mxu0 0
  %1749 = vmatprep.subr.bf16.mxu0 0
  %1750 = vmatpush1.bf16.msra.mxu0 0
  %1751 = vmatprep.subr.bf16.mxu0 0
  %1752 = vmatpush1.bf16.msra.mxu0 0
  %1753 = vmatprep.mubr.bf16.mxu0 0
  %1754 = vmatmul.mubr.bf16.gmra.mrb[0].mxu0 %v1679
  %v1755 = vpop.f32.mrb[0].mxu0
  %v1756 = vadd.f32 0.0, %v1755
  %v1757 = vpop.f32.mrb[0].mxu0
  %v1758 = vadd.f32 0.0, %v1757
  %v1759 = vpop.f32.mrb[0].mxu0
  %v1760 = vpop.f32.mrb[0].mxu0
  %1761 = vdwg.mxu0
  %1762 = vmatprep.subr.bf16.mxu0 %v767
  %1763 = vmatpush1.bf16.msra.mxu0 %v766
  %1764 = vmatprep.subr.bf16.mxu0 %v771
  %1765 = vmatpush1.bf16.msra.mxu0 %v770
  %1766 = vmatprep.subr.bf16.mxu0 %v775
  %1767 = vmatpush1.bf16.msra.mxu0 %v774
  %1768 = vmatprep.subr.bf16.mxu0 %v779
  %1769 = vmatpush1.bf16.msra.mxu0 %v778
  %1770 = vmatprep.subr.bf16.mxu0 %v783
  %1771 = vmatpush1.bf16.msra.mxu0 %v782
  %1772 = vmatprep.subr.bf16.mxu0 %v787
  %1773 = vmatpush1.bf16.msra.mxu0 %v786
  %1774 = vmatprep.subr.bf16.mxu0 %v791
  %1775 = vmatpush1.bf16.msra.mxu0 %v790
  %1776 = vmatprep.subr.bf16.mxu0 %v795
  %1777 = vmatpush1.bf16.msra.mxu0 %v794
  %1778 = vmatprep.subr.bf16.mxu0 0
  %1779 = vmatpush1.bf16.msra.mxu0 0
  %1780 = vmatprep.subr.bf16.mxu0 0
  %1781 = vmatpush1.bf16.msra.mxu0 0
  %1782 = vmatprep.subr.bf16.mxu0 0
  %1783 = vmatpush1.bf16.msra.mxu0 0
  %1784 = vmatprep.subr.bf16.mxu0 0
  %1785 = vmatpush1.bf16.msra.mxu0 0
  %1786 = vmatprep.subr.bf16.mxu0 0
  %1787 = vmatpush1.bf16.msra.mxu0 0
  %1788 = vmatprep.subr.bf16.mxu0 0
  %1789 = vmatpush1.bf16.msra.mxu0 0
  %1790 = vmatprep.subr.bf16.mxu0 0
  %1791 = vmatpush1.bf16.msra.mxu0 0
  %1792 = vmatprep.subr.bf16.mxu0 0
  %1793 = vmatpush1.bf16.msra.mxu0 0
  %1794 = vmatprep.mubr.bf16.mxu0 0
  %1795 = vmatmul.mubr.bf16.gmra.mrb[0].mxu0 %v1678
  %v1796 = vpop.f32.mrb[0].mxu0
  %v1797 = vadd.f32 %v1715, %v1796
  %v1798 = vpop.f32.mrb[0].mxu0
  %v1799 = vadd.f32 %v1717, %v1798
  %v1800 = vpop.f32.mrb[0].mxu0
  %v1801 = vpop.f32.mrb[0].mxu0
  %1802 = vdwg.mxu0
  %1803 = vmatprep.subr.bf16.mxu0 %v769
  %1804 = vmatpush1.bf16.msra.mxu0 %v768
  %1805 = vmatprep.subr.bf16.mxu0 %v773
  %1806 = vmatpush1.bf16.msra.mxu0 %v772
  %1807 = vmatprep.subr.bf16.mxu0 %v777
  %1808 = vmatpush1.bf16.msra.mxu0 %v776
  %1809 = vmatprep.subr.bf16.mxu0 %v781
  %1810 = vmatpush1.bf16.msra.mxu0 %v780
  %1811 = vmatprep.subr.bf16.mxu0 %v785
  %1812 = vmatpush1.bf16.msra.mxu0 %v784
  %1813 = vmatprep.subr.bf16.mxu0 %v789
  %1814 = vmatpush1.bf16.msra.mxu0 %v788
  %1815 = vmatprep.subr.bf16.mxu0 %v793
  %1816 = vmatpush1.bf16.msra.mxu0 %v792
  %1817 = vmatprep.subr.bf16.mxu0 %v797
  %1818 = vmatpush1.bf16.msra.mxu0 %v796
  %1819 = vmatprep.subr.bf16.mxu0 0
  %1820 = vmatpush1.bf16.msra.mxu0 0
  %1821 = vmatprep.subr.bf16.mxu0 0
  %1822 = vmatpush1.bf16.msra.mxu0 0
  %1823 = vmatprep.subr.bf16.mxu0 0
  %1824 = vmatpush1.bf16.msra.mxu0 0
  %1825 = vmatprep.subr.bf16.mxu0 0
  %1826 = vmatpush1.bf16.msra.mxu0 0
  %1827 = vmatprep.subr.bf16.mxu0 0
  %1828 = vmatpush1.bf16.msra.mxu0 0
  %1829 = vmatprep.subr.bf16.mxu0 0
  %1830 = vmatpush1.bf16.msra.mxu0 0
  %1831 = vmatprep.subr.bf16.mxu0 0
  %1832 = vmatpush1.bf16.msra.mxu0 0
  %1833 = vmatprep.subr.bf16.mxu0 0
  %1834 = vmatpush1.bf16.msra.mxu0 0
  %1835 = vmatprep.mubr.bf16.mxu0 0
  %1836 = vmatmul.mubr.bf16.gmra.mrb[0].mxu0 %v1678
  %v1837 = vpop.f32.mrb[0].mxu0
  %v1838 = vadd.f32 %v1756, %v1837
  %v1839 = vpop.f32.mrb[0].mxu0
  %v1840 = vadd.f32 %v1758, %v1839
  %v1841 = vpop.f32.mrb[0].mxu0
  %v1842 = vpop.f32.mrb[0].mxu0
  %1843 = vdwg.mxu0
  %v1844 = vadd.f32 %v1797, %v130
  %v1845 = vadd.f32 %v1799, %v134
  %v1846 = vadd.f32 %v1838, %v138
  %v1847 = vadd.f32 %v1840, %v142
  %v1848 = vxor.u32 %v1844, 2147483648
  %v1849 = vmul.f32 %v1848, 1.442695
  %v1850 = vpow.pop %v1849
  %v1851 = vadd.f32 %v1850, 1.0
  %v1852 = vrcp.pop %v1851
  %v1853 = vmul.f32 1.0, %v1852
  %v1854 = vxor.u32 %v1845, 2147483648
  %v1855 = vmul.f32 %v1854, 1.442695
  %v1856 = vpow.pop %v1855
  %v1857 = vadd.f32 %v1856, 1.0
  %v1858 = vrcp.pop %v1857
  %v1859 = vmul.f32 1.0, %v1858
  %v1860 = vtanh.pop %v1846
  %v1861 = vxor.u32 %v1847, 2147483648
  %v1862 = vmul.f32 %v1861, 1.442695
  %v1863 = vpow.pop %v1862
  %v1864 = vadd.f32 %v1863, 1.0
  %v1865 = vrcp.pop %v1864
  %v1866 = vmul.f32 1.0, %v1865
  %v1867 = vmul.f32 %v1859, %v1558
  %v1868 = vmul.f32 %v1853, %v1860
  %v1869 = vadd.f32 %v1867, %v1868
  %v1870 = vtanh.pop %v1869
  %v1871 = vmul.f32 %v1866, %v1870
  %s1872 = scalar_lea.vmem %s5, 24
  %1873 = vst [vmem:[%s1872] sm:$0xff] %v1871
  %s1874 = scalar_lea.vmem %s0, 128
  %v1875 = vld [vmem:[%s1874] sm:$0xff]
  %v1876 = vld [vmem:[%s1874 + $0x8] sm:$0xff]
  %v1877 = vld [vmem:[%s1874 + $0x10] sm:$0xff]
  %v1878 = vld [vmem:[%s1874 + $0x18] sm:$0xff]
  %1879 = vmatprep.subr.bf16.mxu0 %v253
  %1880 = vmatpush1.bf16.msra.mxu0 %v252
  %1881 = vmatprep.subr.bf16.mxu0 %v257
  %1882 = vmatpush1.bf16.msra.mxu0 %v256
  %1883 = vmatprep.subr.bf16.mxu0 %v261
  %1884 = vmatpush1.bf16.msra.mxu0 %v260
  %1885 = vmatprep.subr.bf16.mxu0 %v265
  %1886 = vmatpush1.bf16.msra.mxu0 %v264
  %1887 = vmatprep.subr.bf16.mxu0 %v269
  %1888 = vmatpush1.bf16.msra.mxu0 %v268
  %1889 = vmatprep.subr.bf16.mxu0 %v273
  %1890 = vmatpush1.bf16.msra.mxu0 %v272
  %1891 = vmatprep.subr.bf16.mxu0 %v277
  %1892 = vmatpush1.bf16.msra.mxu0 %v276
  %1893 = vmatprep.subr.bf16.mxu0 %v281
  %1894 = vmatpush1.bf16.msra.mxu0 %v280
  %1895 = vmatprep.subr.bf16.mxu0 0
  %1896 = vmatpush1.bf16.msra.mxu0 0
  %1897 = vmatprep.subr.bf16.mxu0 0
  %1898 = vmatpush1.bf16.msra.mxu0 0
  %1899 = vmatprep.subr.bf16.mxu0 0
  %1900 = vmatpush1.bf16.msra.mxu0 0
  %1901 = vmatprep.subr.bf16.mxu0 0
  %1902 = vmatpush1.bf16.msra.mxu0 0
  %1903 = vmatprep.subr.bf16.mxu0 0
  %1904 = vmatpush1.bf16.msra.mxu0 0
  %1905 = vmatprep.subr.bf16.mxu0 0
  %1906 = vmatpush1.bf16.msra.mxu0 0
  %1907 = vmatprep.subr.bf16.mxu0 0
  %1908 = vmatpush1.bf16.msra.mxu0 0
  %1909 = vmatprep.subr.bf16.mxu0 0
  %1910 = vmatpush1.bf16.msra.mxu0 0
  %1911 = vmatprep.mubr.bf16.mxu0 0
  %1912 = vmatmul.mubr.bf16.gmra.mrb[0].mxu0 %v1678
  %v1913 = vpop.f32.mrb[0].mxu0
  %v1914 = vadd.f32 0.0, %v1913
  %v1915 = vpop.f32.mrb[0].mxu0
  %v1916 = vadd.f32 0.0, %v1915
  %v1917 = vpop.f32.mrb[0].mxu0
  %v1918 = vpop.f32.mrb[0].mxu0
  %1919 = vdwg.mxu0
  %1920 = vmatprep.subr.bf16.mxu0 %v255
  %1921 = vmatpush1.bf16.msra.mxu0 %v254
  %1922 = vmatprep.subr.bf16.mxu0 %v259
  %1923 = vmatpush1.bf16.msra.mxu0 %v258
  %1924 = vmatprep.subr.bf16.mxu0 %v263
  %1925 = vmatpush1.bf16.msra.mxu0 %v262
  %1926 = vmatprep.subr.bf16.mxu0 %v267
  %1927 = vmatpush1.bf16.msra.mxu0 %v266
  %1928 = vmatprep.subr.bf16.mxu0 %v271
  %1929 = vmatpush1.bf16.msra.mxu0 %v270
  %1930 = vmatprep.subr.bf16.mxu0 %v275
  %1931 = vmatpush1.bf16.msra.mxu0 %v274
  %1932 = vmatprep.subr.bf16.mxu0 %v279
  %1933 = vmatpush1.bf16.msra.mxu0 %v278
  %1934 = vmatprep.subr.bf16.mxu0 %v283
  %1935 = vmatpush1.bf16.msra.mxu0 %v282
  %1936 = vmatprep.subr.bf16.mxu0 0
  %1937 = vmatpush1.bf16.msra.mxu0 0
  %1938 = vmatprep.subr.bf16.mxu0 0
  %1939 = vmatpush1.bf16.msra.mxu0 0
  %1940 = vmatprep.subr.bf16.mxu0 0
  %1941 = vmatpush1.bf16.msra.mxu0 0
  %1942 = vmatprep.subr.bf16.mxu0 0
  %1943 = vmatpush1.bf16.msra.mxu0 0
  %1944 = vmatprep.subr.bf16.mxu0 0
  %1945 = vmatpush1.bf16.msra.mxu0 0
  %1946 = vmatprep.subr.bf16.mxu0 0
  %1947 = vmatpush1.bf16.msra.mxu0 0
  %1948 = vmatprep.subr.bf16.mxu0 0
  %1949 = vmatpush1.bf16.msra.mxu0 0
  %1950 = vmatprep.subr.bf16.mxu0 0
  %1951 = vmatpush1.bf16.msra.mxu0 0
  %1952 = vmatprep.mubr.bf16.mxu0 0
  %1953 = vmatmul.mubr.bf16.gmra.mrb[0].mxu0 %v1678
  %v1954 = vpop.f32.mrb[0].mxu0
  %v1955 = vadd.f32 0.0, %v1954
  %v1956 = vpop.f32.mrb[0].mxu0
  %v1957 = vadd.f32 0.0, %v1956
  %v1958 = vpop.f32.mrb[0].mxu0
  %v1959 = vpop.f32.mrb[0].mxu0
  %1960 = vdwg.mxu0
  %v1961 = vadd.f32 %v1875, %v1914
  %v1962 = vadd.f32 %v1876, %v1916
  %v1963 = vadd.f32 %v1877, %v1955
  %v1964 = vadd.f32 %v1878, %v1957
  %v1965 = vxor.u32 %v1961, 2147483648
  %v1966 = vmul.f32 %v1965, 1.442695
  %v1967 = vpow.pop %v1966
  %v1968 = vadd.f32 %v1967, 1.0
  %v1969 = vrcp.pop %v1968
  %v1970 = vmul.f32 1.0, %v1969
  %v1971 = vxor.u32 %v1962, 2147483648
  %v1972 = vmul.f32 %v1971, 1.442695
  %v1973 = vpow.pop %v1972
  %v1974 = vadd.f32 %v1973, 1.0
  %v1975 = vrcp.pop %v1974
  %v1976 = vmul.f32 1.0, %v1975
  %v1977 = vtanh.pop %v1963
  %v1978 = vxor.u32 %v1964, 2147483648
  %v1979 = vmul.f32 %v1978, 1.442695
  %v1980 = vpow.pop %v1979
  %v1981 = vadd.f32 %v1980, 1.0
  %v1982 = vrcp.pop %v1981
  %v1983 = vmul.f32 1.0, %v1982
  %v1984 = vmul.f32 %v1976, %v1675
  %v1985 = vmul.f32 %v1970, %v1977
  %v1986 = vadd.f32 %v1984, %v1985
  %v1987 = vtanh.pop %v1986
  %v1988 = vmul.f32 %v1983, %v1987
  %v1989 = vpack.c.bf16 %v1988, %v1988
  %v1990 = vpack.c.bf16 %v1871, %v1871
  %1991 = vmatprep.subr.bf16.mxu0 %v525
  %1992 = vmatpush1.bf16.msra.mxu0 %v524
  %1993 = vmatprep.subr.bf16.mxu0 %v529
  %1994 = vmatpush1.bf16.msra.mxu0 %v528
  %1995 = vmatprep.subr.bf16.mxu0 %v533
  %1996 = vmatpush1.bf16.msra.mxu0 %v532
  %1997 = vmatprep.subr.bf16.mxu0 %v537
  %1998 = vmatpush1.bf16.msra.mxu0 %v536
  %1999 = vmatprep.subr.bf16.mxu0 %v541
  %2000 = vmatpush1.bf16.msra.mxu0 %v540
  %2001 = vmatprep.subr.bf16.mxu0 %v545
  %2002 = vmatpush1.bf16.msra.mxu0 %v544
  %2003 = vmatprep.subr.bf16.mxu0 %v549
  %2004 = vmatpush1.bf16.msra.mxu0 %v548
  %2005 = vmatprep.subr.bf16.mxu0 %v553
  %2006 = vmatpush1.bf16.msra.mxu0 %v552
  %2007 = vmatprep.subr.bf16.mxu0 0
  %2008 = vmatpush1.bf16.msra.mxu0 0
  %2009 = vmatprep.subr.bf16.mxu0 0
  %2010 = vmatpush1.bf16.msra.mxu0 0
  %2011 = vmatprep.subr.bf16.mxu0 0
  %2012 = vmatpush1.bf16.msra.mxu0 0
  %2013 = vmatprep.subr.bf16.mxu0 0
  %2014 = vmatpush1.bf16.msra.mxu0 0
  %2015 = vmatprep.subr.bf16.mxu0 0
  %2016 = vmatpush1.bf16.msra.mxu0 0
  %2017 = vmatprep.subr.bf16.mxu0 0
  %2018 = vmatpush1.bf16.msra.mxu0 0
  %2019 = vmatprep.subr.bf16.mxu0 0
  %2020 = vmatpush1.bf16.msra.mxu0 0
  %2021 = vmatprep.subr.bf16.mxu0 0
  %2022 = vmatpush1.bf16.msra.mxu0 0
  %2023 = vmatprep.mubr.bf16.mxu0 0
  %2024 = vmatmul.mubr.bf16.gmra.mrb[0].mxu0 %v1990
  %v2025 = vpop.f32.mrb[0].mxu0
  %v2026 = vadd.f32 0.0, %v2025
  %v2027 = vpop.f32.mrb[0].mxu0
  %v2028 = vadd.f32 0.0, %v2027
  %v2029 = vpop.f32.mrb[0].mxu0
  %v2030 = vpop.f32.mrb[0].mxu0
  %2031 = vdwg.mxu0
  %2032 = vmatprep.subr.bf16.mxu0 %v527
  %2033 = vmatpush1.bf16.msra.mxu0 %v526
  %2034 = vmatprep.subr.bf16.mxu0 %v531
  %2035 = vmatpush1.bf16.msra.mxu0 %v530
  %2036 = vmatprep.subr.bf16.mxu0 %v535
  %2037 = vmatpush1.bf16.msra.mxu0 %v534
  %2038 = vmatprep.subr.bf16.mxu0 %v539
  %2039 = vmatpush1.bf16.msra.mxu0 %v538
  %2040 = vmatprep.subr.bf16.mxu0 %v543
  %2041 = vmatpush1.bf16.msra.mxu0 %v542
  %2042 = vmatprep.subr.bf16.mxu0 %v547
  %2043 = vmatpush1.bf16.msra.mxu0 %v546
  %2044 = vmatprep.subr.bf16.mxu0 %v551
  %2045 = vmatpush1.bf16.msra.mxu0 %v550
  %2046 = vmatprep.subr.bf16.mxu0 %v555
  %2047 = vmatpush1.bf16.msra.mxu0 %v554
  %2048 = vmatprep.subr.bf16.mxu0 0
  %2049 = vmatpush1.bf16.msra.mxu0 0
  %2050 = vmatprep.subr.bf16.mxu0 0
  %2051 = vmatpush1.bf16.msra.mxu0 0
  %2052 = vmatprep.subr.bf16.mxu0 0
  %2053 = vmatpush1.bf16.msra.mxu0 0
  %2054 = vmatprep.subr.bf16.mxu0 0
  %2055 = vmatpush1.bf16.msra.mxu0 0
  %2056 = vmatprep.subr.bf16.mxu0 0
  %2057 = vmatpush1.bf16.msra.mxu0 0
  %2058 = vmatprep.subr.bf16.mxu0 0
  %2059 = vmatpush1.bf16.msra.mxu0 0
  %2060 = vmatprep.subr.bf16.mxu0 0
  %2061 = vmatpush1.bf16.msra.mxu0 0
  %2062 = vmatprep.subr.bf16.mxu0 0
  %2063 = vmatpush1.bf16.msra.mxu0 0
  %2064 = vmatprep.mubr.bf16.mxu0 0
  %2065 = vmatmul.mubr.bf16.gmra.mrb[0].mxu0 %v1990
  %v2066 = vpop.f32.mrb[0].mxu0
  %v2067 = vadd.f32 0.0, %v2066
  %v2068 = vpop.f32.mrb[0].mxu0
  %v2069 = vadd.f32 0.0, %v2068
  %v2070 = vpop.f32.mrb[0].mxu0
  %v2071 = vpop.f32.mrb[0].mxu0
  %2072 = vdwg.mxu0
  %2073 = vmatprep.subr.bf16.mxu0 %v767
  %2074 = vmatpush1.bf16.msra.mxu0 %v766
  %2075 = vmatprep.subr.bf16.mxu0 %v771
  %2076 = vmatpush1.bf16.msra.mxu0 %v770
  %2077 = vmatprep.subr.bf16.mxu0 %v775
  %2078 = vmatpush1.bf16.msra.mxu0 %v774
  %2079 = vmatprep.subr.bf16.mxu0 %v779
  %2080 = vmatpush1.bf16.msra.mxu0 %v778
  %2081 = vmatprep.subr.bf16.mxu0 %v783
  %2082 = vmatpush1.bf16.msra.mxu0 %v782
  %2083 = vmatprep.subr.bf16.mxu0 %v787
  %2084 = vmatpush1.bf16.msra.mxu0 %v786
  %2085 = vmatprep.subr.bf16.mxu0 %v791
  %2086 = vmatpush1.bf16.msra.mxu0 %v790
  %2087 = vmatprep.subr.bf16.mxu0 %v795
  %2088 = vmatpush1.bf16.msra.mxu0 %v794
  %2089 = vmatprep.subr.bf16.mxu0 0
  %2090 = vmatpush1.bf16.msra.mxu0 0
  %2091 = vmatprep.subr.bf16.mxu0 0
  %2092 = vmatpush1.bf16.msra.mxu0 0
  %2093 = vmatprep.subr.bf16.mxu0 0
  %2094 = vmatpush1.bf16.msra.mxu0 0
  %2095 = vmatprep.subr.bf16.mxu0 0
  %2096 = vmatpush1.bf16.msra.mxu0 0
  %2097 = vmatprep.subr.bf16.mxu0 0
  %2098 = vmatpush1.bf16.msra.mxu0 0
  %2099 = vmatprep.subr.bf16.mxu0 0
  %2100 = vmatpush1.bf16.msra.mxu0 0
  %2101 = vmatprep.subr.bf16.mxu0 0
  %2102 = vmatpush1.bf16.msra.mxu0 0
  %2103 = vmatprep.subr.bf16.mxu0 0
  %2104 = vmatpush1.bf16.msra.mxu0 0
  %2105 = vmatprep.mubr.bf16.mxu0 0
  %2106 = vmatmul.mubr.bf16.gmra.mrb[0].mxu0 %v1989
  %v2107 = vpop.f32.mrb[0].mxu0
  %v2108 = vadd.f32 %v2026, %v2107
  %v2109 = vpop.f32.mrb[0].mxu0
  %v2110 = vadd.f32 %v2028, %v2109
  %v2111 = vpop.f32.mrb[0].mxu0
  %v2112 = vpop.f32.mrb[0].mxu0
  %2113 = vdwg.mxu0
  %2114 = vmatprep.subr.bf16.mxu0 %v769
  %2115 = vmatpush1.bf16.msra.mxu0 %v768
  %2116 = vmatprep.subr.bf16.mxu0 %v773
  %2117 = vmatpush1.bf16.msra.mxu0 %v772
  %2118 = vmatprep.subr.bf16.mxu0 %v777
  %2119 = vmatpush1.bf16.msra.mxu0 %v776
  %2120 = vmatprep.subr.bf16.mxu0 %v781
  %2121 = vmatpush1.bf16.msra.mxu0 %v780
  %2122 = vmatprep.subr.bf16.mxu0 %v785
  %2123 = vmatpush1.bf16.msra.mxu0 %v784
  %2124 = vmatprep.subr.bf16.mxu0 %v789
  %2125 = vmatpush1.bf16.msra.mxu0 %v788
  %2126 = vmatprep.subr.bf16.mxu0 %v793
  %2127 = vmatpush1.bf16.msra.mxu0 %v792
  %2128 = vmatprep.subr.bf16.mxu0 %v797
  %2129 = vmatpush1.bf16.msra.mxu0 %v796
  %2130 = vmatprep.subr.bf16.mxu0 0
  %2131 = vmatpush1.bf16.msra.mxu0 0
  %2132 = vmatprep.subr.bf16.mxu0 0
  %2133 = vmatpush1.bf16.msra.mxu0 0
  %2134 = vmatprep.subr.bf16.mxu0 0
  %2135 = vmatpush1.bf16.msra.mxu0 0
  %2136 = vmatprep.subr.bf16.mxu0 0
  %2137 = vmatpush1.bf16.msra.mxu0 0
  %2138 = vmatprep.subr.bf16.mxu0 0
  %2139 = vmatpush1.bf16.msra.mxu0 0
  %2140 = vmatprep.subr.bf16.mxu0 0
  %2141 = vmatpush1.bf16.msra.mxu0 0
  %2142 = vmatprep.subr.bf16.mxu0 0
  %2143 = vmatpush1.bf16.msra.mxu0 0
  %2144 = vmatprep.subr.bf16.mxu0 0
  %2145 = vmatpush1.bf16.msra.mxu0 0
  %2146 = vmatprep.mubr.bf16.mxu0 0
  %2147 = vmatmul.mubr.bf16.gmra.mrb[0].mxu0 %v1989
  %v2148 = vpop.f32.mrb[0].mxu0
  %v2149 = vadd.f32 %v2067, %v2148
  %v2150 = vpop.f32.mrb[0].mxu0
  %v2151 = vadd.f32 %v2069, %v2150
  %v2152 = vpop.f32.mrb[0].mxu0
  %v2153 = vpop.f32.mrb[0].mxu0
  %2154 = vdwg.mxu0
  %v2155 = vadd.f32 %v2108, %v130
  %v2156 = vadd.f32 %v2110, %v134
  %v2157 = vadd.f32 %v2149, %v138
  %v2158 = vadd.f32 %v2151, %v142
  %v2159 = vxor.u32 %v2155, 2147483648
  %v2160 = vmul.f32 %v2159, 1.442695
  %v2161 = vpow.pop %v2160
  %v2162 = vadd.f32 %v2161, 1.0
  %v2163 = vrcp.pop %v2162
  %v2164 = vmul.f32 1.0, %v2163
  %v2165 = vxor.u32 %v2156, 2147483648
  %v2166 = vmul.f32 %v2165, 1.442695
  %v2167 = vpow.pop %v2166
  %v2168 = vadd.f32 %v2167, 1.0
  %v2169 = vrcp.pop %v2168
  %v2170 = vmul.f32 1.0, %v2169
  %v2171 = vtanh.pop %v2157
  %v2172 = vxor.u32 %v2158, 2147483648
  %v2173 = vmul.f32 %v2172, 1.442695
  %v2174 = vpow.pop %v2173
  %v2175 = vadd.f32 %v2174, 1.0
  %v2176 = vrcp.pop %v2175
  %v2177 = vmul.f32 1.0, %v2176
  %v2178 = vmul.f32 %v2170, %v1869
  %v2179 = vmul.f32 %v2164, %v2171
  %v2180 = vadd.f32 %v2178, %v2179
  %v2181 = vtanh.pop %v2180
  %v2182 = vmul.f32 %v2177, %v2181
  %s2183 = scalar_lea.vmem %s5, 32
  %2184 = vst [vmem:[%s2183] sm:$0xff] %v2182
  %s2185 = scalar_lea.vmem %s0, 160
  %v2186 = vld [vmem:[%s2185] sm:$0xff]
  %v2187 = vld [vmem:[%s2185 + $0x8] sm:$0xff]
  %v2188 = vld [vmem:[%s2185 + $0x10] sm:$0xff]
  %v2189 = vld [vmem:[%s2185 + $0x18] sm:$0xff]
  %2190 = vmatprep.subr.bf16.mxu0 %v253
  %2191 = vmatpush1.bf16.msra.mxu0 %v252
  %2192 = vmatprep.subr.bf16.mxu0 %v257
  %2193 = vmatpush1.bf16.msra.mxu0 %v256
  %2194 = vmatprep.subr.bf16.mxu0 %v261
  %2195 = vmatpush1.bf16.msra.mxu0 %v260
  %2196 = vmatprep.subr.bf16.mxu0 %v265
  %2197 = vmatpush1.bf16.msra.mxu0 %v264
  %2198 = vmatprep.subr.bf16.mxu0 %v269
  %2199 = vmatpush1.bf16.msra.mxu0 %v268
  %2200 = vmatprep.subr.bf16.mxu0 %v273
  %2201 = vmatpush1.bf16.msra.mxu0 %v272
  %2202 = vmatprep.subr.bf16.mxu0 %v277
  %2203 = vmatpush1.bf16.msra.mxu0 %v276
  %2204 = vmatprep.subr.bf16.mxu0 %v281
  %2205 = vmatpush1.bf16.msra.mxu0 %v280
  %2206 = vmatprep.subr.bf16.mxu0 0
  %2207 = vmatpush1.bf16.msra.mxu0 0
  %2208 = vmatprep.subr.bf16.mxu0 0
  %2209 = vmatpush1.bf16.msra.mxu0 0
  %2210 = vmatprep.subr.bf16.mxu0 0
  %2211 = vmatpush1.bf16.msra.mxu0 0
  %2212 = vmatprep.subr.bf16.mxu0 0
  %2213 = vmatpush1.bf16.msra.mxu0 0
  %2214 = vmatprep.subr.bf16.mxu0 0
  %2215 = vmatpush1.bf16.msra.mxu0 0
  %2216 = vmatprep.subr.bf16.mxu0 0
  %2217 = vmatpush1.bf16.msra.mxu0 0
  %2218 = vmatprep.subr.bf16.mxu0 0
  %2219 = vmatpush1.bf16.msra.mxu0 0
  %2220 = vmatprep.subr.bf16.mxu0 0
  %2221 = vmatpush1.bf16.msra.mxu0 0
  %2222 = vmatprep.mubr.bf16.mxu0 0
  %2223 = vmatmul.mubr.bf16.gmra.mrb[0].mxu0 %v1989
  %v2224 = vpop.f32.mrb[0].mxu0
  %v2225 = vadd.f32 0.0, %v2224
  %v2226 = vpop.f32.mrb[0].mxu0
  %v2227 = vadd.f32 0.0, %v2226
  %v2228 = vpop.f32.mrb[0].mxu0
  %v2229 = vpop.f32.mrb[0].mxu0
  %2230 = vdwg.mxu0
  %2231 = vmatprep.subr.bf16.mxu0 %v255
  %2232 = vmatpush1.bf16.msra.mxu0 %v254
  %2233 = vmatprep.subr.bf16.mxu0 %v259
  %2234 = vmatpush1.bf16.msra.mxu0 %v258
  %2235 = vmatprep.subr.bf16.mxu0 %v263
  %2236 = vmatpush1.bf16.msra.mxu0 %v262
  %2237 = vmatprep.subr.bf16.mxu0 %v267
  %2238 = vmatpush1.bf16.msra.mxu0 %v266
  %2239 = vmatprep.subr.bf16.mxu0 %v271
  %2240 = vmatpush1.bf16.msra.mxu0 %v270
  %2241 = vmatprep.subr.bf16.mxu0 %v275
  %2242 = vmatpush1.bf16.msra.mxu0 %v274
  %2243 = vmatprep.subr.bf16.mxu0 %v279
  %2244 = vmatpush1.bf16.msra.mxu0 %v278
  %2245 = vmatprep.subr.bf16.mxu0 %v283
  %2246 = vmatpush1.bf16.msra.mxu0 %v282
  %2247 = vmatprep.subr.bf16.mxu0 0
  %2248 = vmatpush1.bf16.msra.mxu0 0
  %2249 = vmatprep.subr.bf16.mxu0 0
  %2250 = vmatpush1.bf16.msra.mxu0 0
  %2251 = vmatprep.subr.bf16.mxu0 0
  %2252 = vmatpush1.bf16.msra.mxu0 0
  %2253 = vmatprep.subr.bf16.mxu0 0
  %2254 = vmatpush1.bf16.msra.mxu0 0
  %2255 = vmatprep.subr.bf16.mxu0 0
  %2256 = vmatpush1.bf16.msra.mxu0 0
  %2257 = vmatprep.subr.bf16.mxu0 0
  %2258 = vmatpush1.bf16.msra.mxu0 0
  %2259 = vmatprep.subr.bf16.mxu0 0
  %2260 = vmatpush1.bf16.msra.mxu0 0
  %2261 = vmatprep.subr.bf16.mxu0 0
  %2262 = vmatpush1.bf16.msra.mxu0 0
  %2263 = vmatprep.mubr.bf16.mxu0 0
  %2264 = vmatmul.mubr.bf16.gmra.mrb[0].mxu0 %v1989
  %v2265 = vpop.f32.mrb[0].mxu0
  %v2266 = vadd.f32 0.0, %v2265
  %v2267 = vpop.f32.mrb[0].mxu0
  %v2268 = vadd.f32 0.0, %v2267
  %v2269 = vpop.f32.mrb[0].mxu0
  %v2270 = vpop.f32.mrb[0].mxu0
  %2271 = vdwg.mxu0
  %v2272 = vadd.f32 %v2186, %v2225
  %v2273 = vadd.f32 %v2187, %v2227
  %v2274 = vadd.f32 %v2188, %v2266
  %v2275 = vadd.f32 %v2189, %v2268
  %v2276 = vxor.u32 %v2272, 2147483648
  %v2277 = vmul.f32 %v2276, 1.442695
  %v2278 = vpow.pop %v2277
  %v2279 = vadd.f32 %v2278, 1.0
  %v2280 = vrcp.pop %v2279
  %v2281 = vmul.f32 1.0, %v2280
  %v2282 = vxor.u32 %v2273, 2147483648
  %v2283 = vmul.f32 %v2282, 1.442695
  %v2284 = vpow.pop %v2283
  %v2285 = vadd.f32 %v2284, 1.0
  %v2286 = vrcp.pop %v2285
  %v2287 = vmul.f32 1.0, %v2286
  %v2288 = vtanh.pop %v2274
  %v2289 = vxor.u32 %v2275, 2147483648
  %v2290 = vmul.f32 %v2289, 1.442695
  %v2291 = vpow.pop %v2290
  %v2292 = vadd.f32 %v2291, 1.0
  %v2293 = vrcp.pop %v2292
  %v2294 = vmul.f32 1.0, %v2293
  %v2295 = vmul.f32 %v2287, %v1986
  %v2296 = vmul.f32 %v2281, %v2288
  %v2297 = vadd.f32 %v2295, %v2296
  %v2298 = vtanh.pop %v2297
  %v2299 = vmul.f32 %v2294, %v2298
  %v2300 = vpack.c.bf16 %v2299, %v2299
  %v2301 = vpack.c.bf16 %v2182, %v2182
  %2302 = vmatprep.subr.bf16.mxu0 %v525
  %2303 = vmatpush1.bf16.msra.mxu0 %v524
  %2304 = vmatprep.subr.bf16.mxu0 %v529
  %2305 = vmatpush1.bf16.msra.mxu0 %v528
  %2306 = vmatprep.subr.bf16.mxu0 %v533
  %2307 = vmatpush1.bf16.msra.mxu0 %v532
  %2308 = vmatprep.subr.bf16.mxu0 %v537
  %2309 = vmatpush1.bf16.msra.mxu0 %v536
  %2310 = vmatprep.subr.bf16.mxu0 %v541
  %2311 = vmatpush1.bf16.msra.mxu0 %v540
  %2312 = vmatprep.subr.bf16.mxu0 %v545
  %2313 = vmatpush1.bf16.msra.mxu0 %v544
  %2314 = vmatprep.subr.bf16.mxu0 %v549
  %2315 = vmatpush1.bf16.msra.mxu0 %v548
  %2316 = vmatprep.subr.bf16.mxu0 %v553
  %2317 = vmatpush1.bf16.msra.mxu0 %v552
  %2318 = vmatprep.subr.bf16.mxu0 0
  %2319 = vmatpush1.bf16.msra.mxu0 0
  %2320 = vmatprep.subr.bf16.mxu0 0
  %2321 = vmatpush1.bf16.msra.mxu0 0
  %2322 = vmatprep.subr.bf16.mxu0 0
  %2323 = vmatpush1.bf16.msra.mxu0 0
  %2324 = vmatprep.subr.bf16.mxu0 0
  %2325 = vmatpush1.bf16.msra.mxu0 0
  %2326 = vmatprep.subr.bf16.mxu0 0
  %2327 = vmatpush1.bf16.msra.mxu0 0
  %2328 = vmatprep.subr.bf16.mxu0 0
  %2329 = vmatpush1.bf16.msra.mxu0 0
  %2330 = vmatprep.subr.bf16.mxu0 0
  %2331 = vmatpush1.bf16.msra.mxu0 0
  %2332 = vmatprep.subr.bf16.mxu0 0
  %2333 = vmatpush1.bf16.msra.mxu0 0
  %2334 = vmatprep.mubr.bf16.mxu0 0
  %2335 = vmatmul.mubr.bf16.gmra.mrb[0].mxu0 %v2301
  %v2336 = vpop.f32.mrb[0].mxu0
  %v2337 = vadd.f32 0.0, %v2336
  %v2338 = vpop.f32.mrb[0].mxu0
  %v2339 = vadd.f32 0.0, %v2338
  %v2340 = vpop.f32.mrb[0].mxu0
  %v2341 = vpop.f32.mrb[0].mxu0
  %2342 = vdwg.mxu0
  %2343 = vmatprep.subr.bf16.mxu0 %v527
  %2344 = vmatpush1.bf16.msra.mxu0 %v526
  %2345 = vmatprep.subr.bf16.mxu0 %v531
  %2346 = vmatpush1.bf16.msra.mxu0 %v530
  %2347 = vmatprep.subr.bf16.mxu0 %v535
  %2348 = vmatpush1.bf16.msra.mxu0 %v534
  %2349 = vmatprep.subr.bf16.mxu0 %v539
  %2350 = vmatpush1.bf16.msra.mxu0 %v538
  %2351 = vmatprep.subr.bf16.mxu0 %v543
  %2352 = vmatpush1.bf16.msra.mxu0 %v542
  %2353 = vmatprep.subr.bf16.mxu0 %v547
  %2354 = vmatpush1.bf16.msra.mxu0 %v546
  %2355 = vmatprep.subr.bf16.mxu0 %v551
  %2356 = vmatpush1.bf16.msra.mxu0 %v550
  %2357 = vmatprep.subr.bf16.mxu0 %v555
  %2358 = vmatpush1.bf16.msra.mxu0 %v554
  %2359 = vmatprep.subr.bf16.mxu0 0
  %2360 = vmatpush1.bf16.msra.mxu0 0
  %2361 = vmatprep.subr.bf16.mxu0 0
  %2362 = vmatpush1.bf16.msra.mxu0 0
  %2363 = vmatprep.subr.bf16.mxu0 0
  %2364 = vmatpush1.bf16.msra.mxu0 0
  %2365 = vmatprep.subr.bf16.mxu0 0
  %2366 = vmatpush1.bf16.msra.mxu0 0
  %2367 = vmatprep.subr.bf16.mxu0 0
  %2368 = vmatpush1.bf16.msra.mxu0 0
  %2369 = vmatprep.subr.bf16.mxu0 0
  %2370 = vmatpush1.bf16.msra.mxu0 0
  %2371 = vmatprep.subr.bf16.mxu0 0
  %2372 = vmatpush1.bf16.msra.mxu0 0
  %2373 = vmatprep.subr.bf16.mxu0 0
  %2374 = vmatpush1.bf16.msra.mxu0 0
  %2375 = vmatprep.mubr.bf16.mxu0 0
  %2376 = vmatmul.mubr.bf16.gmra.mrb[0].mxu0 %v2301
  %v2377 = vpop.f32.mrb[0].mxu0
  %v2378 = vadd.f32 0.0, %v2377
  %v2379 = vpop.f32.mrb[0].mxu0
  %v2380 = vadd.f32 0.0, %v2379
  %v2381 = vpop.f32.mrb[0].mxu0
  %v2382 = vpop.f32.mrb[0].mxu0
  %2383 = vdwg.mxu0
  %2384 = vmatprep.subr.bf16.mxu0 %v767
  %2385 = vmatpush1.bf16.msra.mxu0 %v766
  %2386 = vmatprep.subr.bf16.mxu0 %v771
  %2387 = vmatpush1.bf16.msra.mxu0 %v770
  %2388 = vmatprep.subr.bf16.mxu0 %v775
  %2389 = vmatpush1.bf16.msra.mxu0 %v774
  %2390 = vmatprep.subr.bf16.mxu0 %v779
  %2391 = vmatpush1.bf16.msra.mxu0 %v778
  %2392 = vmatprep.subr.bf16.mxu0 %v783
  %2393 = vmatpush1.bf16.msra.mxu0 %v782
  %2394 = vmatprep.subr.bf16.mxu0 %v787
  %2395 = vmatpush1.bf16.msra.mxu0 %v786
  %2396 = vmatprep.subr.bf16.mxu0 %v791
  %2397 = vmatpush1.bf16.msra.mxu0 %v790
  %2398 = vmatprep.subr.bf16.mxu0 %v795
  %2399 = vmatpush1.bf16.msra.mxu0 %v794
  %2400 = vmatprep.subr.bf16.mxu0 0
  %2401 = vmatpush1.bf16.msra.mxu0 0
  %2402 = vmatprep.subr.bf16.mxu0 0
  %2403 = vmatpush1.bf16.msra.mxu0 0
  %2404 = vmatprep.subr.bf16.mxu0 0
  %2405 = vmatpush1.bf16.msra.mxu0 0
  %2406 = vmatprep.subr.bf16.mxu0 0
  %2407 = vmatpush1.bf16.msra.mxu0 0
  %2408 = vmatprep.subr.bf16.mxu0 0
  %2409 = vmatpush1.bf16.msra.mxu0 0
  %2410 = vmatprep.subr.bf16.mxu0 0
  %2411 = vmatpush1.bf16.msra.mxu0 0
  %2412 = vmatprep.subr.bf16.mxu0 0
  %2413 = vmatpush1.bf16.msra.mxu0 0
  %2414 = vmatprep.subr.bf16.mxu0 0
  %2415 = vmatpush1.bf16.msra.mxu0 0
  %2416 = vmatprep.mubr.bf16.mxu0 0
  %2417 = vmatmul.mubr.bf16.gmra.mrb[0].mxu0 %v2300
  %v2418 = vpop.f32.mrb[0].mxu0
  %v2419 = vadd.f32 %v2337, %v2418
  %v2420 = vpop.f32.mrb[0].mxu0
  %v2421 = vadd.f32 %v2339, %v2420
  %v2422 = vpop.f32.mrb[0].mxu0
  %v2423 = vpop.f32.mrb[0].mxu0
  %2424 = vdwg.mxu0
  %2425 = vmatprep.subr.bf16.mxu0 %v769
  %2426 = vmatpush1.bf16.msra.mxu0 %v768
  %2427 = vmatprep.subr.bf16.mxu0 %v773
  %2428 = vmatpush1.bf16.msra.mxu0 %v772
  %2429 = vmatprep.subr.bf16.mxu0 %v777
  %2430 = vmatpush1.bf16.msra.mxu0 %v776
  %2431 = vmatprep.subr.bf16.mxu0 %v781
  %2432 = vmatpush1.bf16.msra.mxu0 %v780
  %2433 = vmatprep.subr.bf16.mxu0 %v785
  %2434 = vmatpush1.bf16.msra.mxu0 %v784
  %2435 = vmatprep.subr.bf16.mxu0 %v789
  %2436 = vmatpush1.bf16.msra.mxu0 %v788
  %2437 = vmatprep.subr.bf16.mxu0 %v793
  %2438 = vmatpush1.bf16.msra.mxu0 %v792
  %2439 = vmatprep.subr.bf16.mxu0 %v797
  %2440 = vmatpush1.bf16.msra.mxu0 %v796
  %2441 = vmatprep.subr.bf16.mxu0 0
  %2442 = vmatpush1.bf16.msra.mxu0 0
  %2443 = vmatprep.subr.bf16.mxu0 0
  %2444 = vmatpush1.bf16.msra.mxu0 0
  %2445 = vmatprep.subr.bf16.mxu0 0
  %2446 = vmatpush1.bf16.msra.mxu0 0
  %2447 = vmatprep.subr.bf16.mxu0 0
  %2448 = vmatpush1.bf16.msra.mxu0 0
  %2449 = vmatprep.subr.bf16.mxu0 0
  %2450 = vmatpush1.bf16.msra.mxu0 0
  %2451 = vmatprep.subr.bf16.mxu0 0
  %2452 = vmatpush1.bf16.msra.mxu0 0
  %2453 = vmatprep.subr.bf16.mxu0 0
  %2454 = vmatpush1.bf16.msra.mxu0 0
  %2455 = vmatprep.subr.bf16.mxu0 0
  %2456 = vmatpush1.bf16.msra.mxu0 0
  %2457 = vmatprep.mubr.bf16.mxu0 0
  %2458 = vmatmul.mubr.bf16.gmra.mrb[0].mxu0 %v2300
  %v2459 = vpop.f32.mrb[0].mxu0
  %v2460 = vadd.f32 %v2378, %v2459
  %v2461 = vpop.f32.mrb[0].mxu0
  %v2462 = vadd.f32 %v2380, %v2461
  %v2463 = vpop.f32.mrb[0].mxu0
  %v2464 = vpop.f32.mrb[0].mxu0
  %2465 = vdwg.mxu0
  %v2466 = vadd.f32 %v2419, %v130
  %v2467 = vadd.f32 %v2421, %v134
  %v2468 = vadd.f32 %v2460, %v138
  %v2469 = vadd.f32 %v2462, %v142
  %v2470 = vxor.u32 %v2466, 2147483648
  %v2471 = vmul.f32 %v2470, 1.442695
  %v2472 = vpow.pop %v2471
  %v2473 = vadd.f32 %v2472, 1.0
  %v2474 = vrcp.pop %v2473
  %v2475 = vmul.f32 1.0, %v2474
  %v2476 = vxor.u32 %v2467, 2147483648
  %v2477 = vmul.f32 %v2476, 1.442695
  %v2478 = vpow.pop %v2477
  %v2479 = vadd.f32 %v2478, 1.0
  %v2480 = vrcp.pop %v2479
  %v2481 = vmul.f32 1.0, %v2480
  %v2482 = vtanh.pop %v2468
  %v2483 = vxor.u32 %v2469, 2147483648
  %v2484 = vmul.f32 %v2483, 1.442695
  %v2485 = vpow.pop %v2484
  %v2486 = vadd.f32 %v2485, 1.0
  %v2487 = vrcp.pop %v2486
  %v2488 = vmul.f32 1.0, %v2487
  %v2489 = vmul.f32 %v2481, %v2180
  %v2490 = vmul.f32 %v2475, %v2482
  %v2491 = vadd.f32 %v2489, %v2490
  %v2492 = vtanh.pop %v2491
  %v2493 = vmul.f32 %v2488, %v2492
  %s2494 = scalar_lea.vmem %s5, 40
  %2495 = vst [vmem:[%s2494] sm:$0xff] %v2493
  %s2496 = scalar_lea.vmem %s0, 192
  %v2497 = vld [vmem:[%s2496] sm:$0xff]
  %v2498 = vld [vmem:[%s2496 + $0x8] sm:$0xff]
  %v2499 = vld [vmem:[%s2496 + $0x10] sm:$0xff]
  %v2500 = vld [vmem:[%s2496 + $0x18] sm:$0xff]
  %2501 = vmatprep.subr.bf16.mxu0 %v253
  %2502 = vmatpush1.bf16.msra.mxu0 %v252
  %2503 = vmatprep.subr.bf16.mxu0 %v257
  %2504 = vmatpush1.bf16.msra.mxu0 %v256
  %2505 = vmatprep.subr.bf16.mxu0 %v261
  %2506 = vmatpush1.bf16.msra.mxu0 %v260
  %2507 = vmatprep.subr.bf16.mxu0 %v265
  %2508 = vmatpush1.bf16.msra.mxu0 %v264
  %2509 = vmatprep.subr.bf16.mxu0 %v269
  %2510 = vmatpush1.bf16.msra.mxu0 %v268
  %2511 = vmatprep.subr.bf16.mxu0 %v273
  %2512 = vmatpush1.bf16.msra.mxu0 %v272
  %2513 = vmatprep.subr.bf16.mxu0 %v277
  %2514 = vmatpush1.bf16.msra.mxu0 %v276
  %2515 = vmatprep.subr.bf16.mxu0 %v281
  %2516 = vmatpush1.bf16.msra.mxu0 %v280
  %2517 = vmatprep.subr.bf16.mxu0 0
  %2518 = vmatpush1.bf16.msra.mxu0 0
  %2519 = vmatprep.subr.bf16.mxu0 0
  %2520 = vmatpush1.bf16.msra.mxu0 0
  %2521 = vmatprep.subr.bf16.mxu0 0
  %2522 = vmatpush1.bf16.msra.mxu0 0
  %2523 = vmatprep.subr.bf16.mxu0 0
  %2524 = vmatpush1.bf16.msra.mxu0 0
  %2525 = vmatprep.subr.bf16.mxu0 0
  %2526 = vmatpush1.bf16.msra.mxu0 0
  %2527 = vmatprep.subr.bf16.mxu0 0
  %2528 = vmatpush1.bf16.msra.mxu0 0
  %2529 = vmatprep.subr.bf16.mxu0 0
  %2530 = vmatpush1.bf16.msra.mxu0 0
  %2531 = vmatprep.subr.bf16.mxu0 0
  %2532 = vmatpush1.bf16.msra.mxu0 0
  %2533 = vmatprep.mubr.bf16.mxu0 0
  %2534 = vmatmul.mubr.bf16.gmra.mrb[0].mxu0 %v2300
  %v2535 = vpop.f32.mrb[0].mxu0
  %v2536 = vadd.f32 0.0, %v2535
  %v2537 = vpop.f32.mrb[0].mxu0
  %v2538 = vadd.f32 0.0, %v2537
  %v2539 = vpop.f32.mrb[0].mxu0
  %v2540 = vpop.f32.mrb[0].mxu0
  %2541 = vdwg.mxu0
  %2542 = vmatprep.subr.bf16.mxu0 %v255
  %2543 = vmatpush1.bf16.msra.mxu0 %v254
  %2544 = vmatprep.subr.bf16.mxu0 %v259
  %2545 = vmatpush1.bf16.msra.mxu0 %v258
  %2546 = vmatprep.subr.bf16.mxu0 %v263
  %2547 = vmatpush1.bf16.msra.mxu0 %v262
  %2548 = vmatprep.subr.bf16.mxu0 %v267
  %2549 = vmatpush1.bf16.msra.mxu0 %v266
  %2550 = vmatprep.subr.bf16.mxu0 %v271
  %2551 = vmatpush1.bf16.msra.mxu0 %v270
  %2552 = vmatprep.subr.bf16.mxu0 %v275
  %2553 = vmatpush1.bf16.msra.mxu0 %v274
  %2554 = vmatprep.subr.bf16.mxu0 %v279
  %2555 = vmatpush1.bf16.msra.mxu0 %v278
  %2556 = vmatprep.subr.bf16.mxu0 %v283
  %2557 = vmatpush1.bf16.msra.mxu0 %v282
  %2558 = vmatprep.subr.bf16.mxu0 0
  %2559 = vmatpush1.bf16.msra.mxu0 0
  %2560 = vmatprep.subr.bf16.mxu0 0
  %2561 = vmatpush1.bf16.msra.mxu0 0
  %2562 = vmatprep.subr.bf16.mxu0 0
  %2563 = vmatpush1.bf16.msra.mxu0 0
  %2564 = vmatprep.subr.bf16.mxu0 0
  %2565 = vmatpush1.bf16.msra.mxu0 0
  %2566 = vmatprep.subr.bf16.mxu0 0
  %2567 = vmatpush1.bf16.msra.mxu0 0
  %2568 = vmatprep.subr.bf16.mxu0 0
  %2569 = vmatpush1.bf16.msra.mxu0 0
  %2570 = vmatprep.subr.bf16.mxu0 0
  %2571 = vmatpush1.bf16.msra.mxu0 0
  %2572 = vmatprep.subr.bf16.mxu0 0
  %2573 = vmatpush1.bf16.msra.mxu0 0
  %2574 = vmatprep.mubr.bf16.mxu0 0
  %2575 = vmatmul.mubr.bf16.gmra.mrb[0].mxu0 %v2300
  %v2576 = vpop.f32.mrb[0].mxu0
  %v2577 = vadd.f32 0.0, %v2576
  %v2578 = vpop.f32.mrb[0].mxu0
  %v2579 = vadd.f32 0.0, %v2578
  %v2580 = vpop.f32.mrb[0].mxu0
  %v2581 = vpop.f32.mrb[0].mxu0
  %2582 = vdwg.mxu0
  %v2583 = vadd.f32 %v2497, %v2536
  %v2584 = vadd.f32 %v2498, %v2538
  %v2585 = vadd.f32 %v2499, %v2577
  %v2586 = vadd.f32 %v2500, %v2579
  %v2587 = vxor.u32 %v2583, 2147483648
  %v2588 = vmul.f32 %v2587, 1.442695
  %v2589 = vpow.pop %v2588
  %v2590 = vadd.f32 %v2589, 1.0
  %v2591 = vrcp.pop %v2590
  %v2592 = vmul.f32 1.0, %v2591
  %v2593 = vxor.u32 %v2584, 2147483648
  %v2594 = vmul.f32 %v2593, 1.442695
  %v2595 = vpow.pop %v2594
  %v2596 = vadd.f32 %v2595, 1.0
  %v2597 = vrcp.pop %v2596
  %v2598 = vmul.f32 1.0, %v2597
  %v2599 = vtanh.pop %v2585
  %v2600 = vxor.u32 %v2586, 2147483648
  %v2601 = vmul.f32 %v2600, 1.442695
  %v2602 = vpow.pop %v2601
  %v2603 = vadd.f32 %v2602, 1.0
  %v2604 = vrcp.pop %v2603
  %v2605 = vmul.f32 1.0, %v2604
  %v2606 = vmul.f32 %v2598, %v2297
  %v2607 = vmul.f32 %v2592, %v2599
  %v2608 = vadd.f32 %v2606, %v2607
  %v2609 = vtanh.pop %v2608
  %v2610 = vmul.f32 %v2605, %v2609
  %v2611 = vpack.c.bf16 %v2610, %v2610
  %v2612 = vpack.c.bf16 %v2493, %v2493
  %2613 = vmatprep.subr.bf16.mxu0 %v525
  %2614 = vmatpush1.bf16.msra.mxu0 %v524
  %2615 = vmatprep.subr.bf16.mxu0 %v529
  %2616 = vmatpush1.bf16.msra.mxu0 %v528
  %2617 = vmatprep.subr.bf16.mxu0 %v533
  %2618 = vmatpush1.bf16.msra.mxu0 %v532
  %2619 = vmatprep.subr.bf16.mxu0 %v537
  %2620 = vmatpush1.bf16.msra.mxu0 %v536
  %2621 = vmatprep.subr.bf16.mxu0 %v541
  %2622 = vmatpush1.bf16.msra.mxu0 %v540
  %2623 = vmatprep.subr.bf16.mxu0 %v545
  %2624 = vmatpush1.bf16.msra.mxu0 %v544
  %2625 = vmatprep.subr.bf16.mxu0 %v549
  %2626 = vmatpush1.bf16.msra.mxu0 %v548
  %2627 = vmatprep.subr.bf16.mxu0 %v553
  %2628 = vmatpush1.bf16.msra.mxu0 %v552
  %2629 = vmatprep.subr.bf16.mxu0 0
  %2630 = vmatpush1.bf16.msra.mxu0 0
  %2631 = vmatprep.subr.bf16.mxu0 0
  %2632 = vmatpush1.bf16.msra.mxu0 0
  %2633 = vmatprep.subr.bf16.mxu0 0
  %2634 = vmatpush1.bf16.msra.mxu0 0
  %2635 = vmatprep.subr.bf16.mxu0 0
  %2636 = vmatpush1.bf16.msra.mxu0 0
  %2637 = vmatprep.subr.bf16.mxu0 0
  %2638 = vmatpush1.bf16.msra.mxu0 0
  %2639 = vmatprep.subr.bf16.mxu0 0
  %2640 = vmatpush1.bf16.msra.mxu0 0
  %2641 = vmatprep.subr.bf16.mxu0 0
  %2642 = vmatpush1.bf16.msra.mxu0 0
  %2643 = vmatprep.subr.bf16.mxu0 0
  %2644 = vmatpush1.bf16.msra.mxu0 0
  %2645 = vmatprep.mubr.bf16.mxu0 0
  %2646 = vmatmul.mubr.bf16.gmra.mrb[0].mxu0 %v2612
  %v2647 = vpop.f32.mrb[0].mxu0
  %v2648 = vadd.f32 0.0, %v2647
  %v2649 = vpop.f32.mrb[0].mxu0
  %v2650 = vadd.f32 0.0, %v2649
  %v2651 = vpop.f32.mrb[0].mxu0
  %v2652 = vpop.f32.mrb[0].mxu0
  %2653 = vdwg.mxu0
  %2654 = vmatprep.subr.bf16.mxu0 %v527
  %2655 = vmatpush1.bf16.msra.mxu0 %v526
  %2656 = vmatprep.subr.bf16.mxu0 %v531
  %2657 = vmatpush1.bf16.msra.mxu0 %v530
  %2658 = vmatprep.subr.bf16.mxu0 %v535
  %2659 = vmatpush1.bf16.msra.mxu0 %v534
  %2660 = vmatprep.subr.bf16.mxu0 %v539
  %2661 = vmatpush1.bf16.msra.mxu0 %v538
  %2662 = vmatprep.subr.bf16.mxu0 %v543
  %2663 = vmatpush1.bf16.msra.mxu0 %v542
  %2664 = vmatprep.subr.bf16.mxu0 %v547
  %2665 = vmatpush1.bf16.msra.mxu0 %v546
  %2666 = vmatprep.subr.bf16.mxu0 %v551
  %2667 = vmatpush1.bf16.msra.mxu0 %v550
  %2668 = vmatprep.subr.bf16.mxu0 %v555
  %2669 = vmatpush1.bf16.msra.mxu0 %v554
  %2670 = vmatprep.subr.bf16.mxu0 0
  %2671 = vmatpush1.bf16.msra.mxu0 0
  %2672 = vmatprep.subr.bf16.mxu0 0
  %2673 = vmatpush1.bf16.msra.mxu0 0
  %2674 = vmatprep.subr.bf16.mxu0 0
  %2675 = vmatpush1.bf16.msra.mxu0 0
  %2676 = vmatprep.subr.bf16.mxu0 0
  %2677 = vmatpush1.bf16.msra.mxu0 0
  %2678 = vmatprep.subr.bf16.mxu0 0
  %2679 = vmatpush1.bf16.msra.mxu0 0
  %2680 = vmatprep.subr.bf16.mxu0 0
  %2681 = vmatpush1.bf16.msra.mxu0 0
  %2682 = vmatprep.subr.bf16.mxu0 0
  %2683 = vmatpush1.bf16.msra.mxu0 0
  %2684 = vmatprep.subr.bf16.mxu0 0
  %2685 = vmatpush1.bf16.msra.mxu0 0
  %2686 = vmatprep.mubr.bf16.mxu0 0
  %2687 = vmatmul.mubr.bf16.gmra.mrb[0].mxu0 %v2612
  %v2688 = vpop.f32.mrb[0].mxu0
  %v2689 = vadd.f32 0.0, %v2688
  %v2690 = vpop.f32.mrb[0].mxu0
  %v2691 = vadd.f32 0.0, %v2690
  %v2692 = vpop.f32.mrb[0].mxu0
  %v2693 = vpop.f32.mrb[0].mxu0
  %2694 = vdwg.mxu0
  %2695 = vmatprep.subr.bf16.mxu0 %v767
  %2696 = vmatpush1.bf16.msra.mxu0 %v766
  %2697 = vmatprep.subr.bf16.mxu0 %v771
  %2698 = vmatpush1.bf16.msra.mxu0 %v770
  %2699 = vmatprep.subr.bf16.mxu0 %v775
  %2700 = vmatpush1.bf16.msra.mxu0 %v774
  %2701 = vmatprep.subr.bf16.mxu0 %v779
  %2702 = vmatpush1.bf16.msra.mxu0 %v778
  %2703 = vmatprep.subr.bf16.mxu0 %v783
  %2704 = vmatpush1.bf16.msra.mxu0 %v782
  %2705 = vmatprep.subr.bf16.mxu0 %v787
  %2706 = vmatpush1.bf16.msra.mxu0 %v786
  %2707 = vmatprep.subr.bf16.mxu0 %v791
  %2708 = vmatpush1.bf16.msra.mxu0 %v790
  %2709 = vmatprep.subr.bf16.mxu0 %v795
  %2710 = vmatpush1.bf16.msra.mxu0 %v794
  %2711 = vmatprep.subr.bf16.mxu0 0
  %2712 = vmatpush1.bf16.msra.mxu0 0
  %2713 = vmatprep.subr.bf16.mxu0 0
  %2714 = vmatpush1.bf16.msra.mxu0 0
  %2715 = vmatprep.subr.bf16.mxu0 0
  %2716 = vmatpush1.bf16.msra.mxu0 0
  %2717 = vmatprep.subr.bf16.mxu0 0
  %2718 = vmatpush1.bf16.msra.mxu0 0
  %2719 = vmatprep.subr.bf16.mxu0 0
  %2720 = vmatpush1.bf16.msra.mxu0 0
  %2721 = vmatprep.subr.bf16.mxu0 0
  %2722 = vmatpush1.bf16.msra.mxu0 0
  %2723 = vmatprep.subr.bf16.mxu0 0
  %2724 = vmatpush1.bf16.msra.mxu0 0
  %2725 = vmatprep.subr.bf16.mxu0 0
  %2726 = vmatpush1.bf16.msra.mxu0 0
  %2727 = vmatprep.mubr.bf16.mxu0 0
  %2728 = vmatmul.mubr.bf16.gmra.mrb[0].mxu0 %v2611
  %v2729 = vpop.f32.mrb[0].mxu0
  %v2730 = vadd.f32 %v2648, %v2729
  %v2731 = vpop.f32.mrb[0].mxu0
  %v2732 = vadd.f32 %v2650, %v2731
  %v2733 = vpop.f32.mrb[0].mxu0
  %v2734 = vpop.f32.mrb[0].mxu0
  %2735 = vdwg.mxu0
  %2736 = vmatprep.subr.bf16.mxu0 %v769
  %2737 = vmatpush1.bf16.msra.mxu0 %v768
  %2738 = vmatprep.subr.bf16.mxu0 %v773
  %2739 = vmatpush1.bf16.msra.mxu0 %v772
  %2740 = vmatprep.subr.bf16.mxu0 %v777
  %2741 = vmatpush1.bf16.msra.mxu0 %v776
  %2742 = vmatprep.subr.bf16.mxu0 %v781
  %2743 = vmatpush1.bf16.msra.mxu0 %v780
  %2744 = vmatprep.subr.bf16.mxu0 %v785
  %2745 = vmatpush1.bf16.msra.mxu0 %v784
  %2746 = vmatprep.subr.bf16.mxu0 %v789
  %2747 = vmatpush1.bf16.msra.mxu0 %v788
  %2748 = vmatprep.subr.bf16.mxu0 %v793
  %2749 = vmatpush1.bf16.msra.mxu0 %v792
  %2750 = vmatprep.subr.bf16.mxu0 %v797
  %2751 = vmatpush1.bf16.msra.mxu0 %v796
  %2752 = vmatprep.subr.bf16.mxu0 0
  %2753 = vmatpush1.bf16.msra.mxu0 0
  %2754 = vmatprep.subr.bf16.mxu0 0
  %2755 = vmatpush1.bf16.msra.mxu0 0
  %2756 = vmatprep.subr.bf16.mxu0 0
  %2757 = vmatpush1.bf16.msra.mxu0 0
  %2758 = vmatprep.subr.bf16.mxu0 0
  %2759 = vmatpush1.bf16.msra.mxu0 0
  %2760 = vmatprep.subr.bf16.mxu0 0
  %2761 = vmatpush1.bf16.msra.mxu0 0
  %2762 = vmatprep.subr.bf16.mxu0 0
  %2763 = vmatpush1.bf16.msra.mxu0 0
  %2764 = vmatprep.subr.bf16.mxu0 0
  %2765 = vmatpush1.bf16.msra.mxu0 0
  %2766 = vmatprep.subr.bf16.mxu0 0
  %2767 = vmatpush1.bf16.msra.mxu0 0
  %2768 = vmatprep.mubr.bf16.mxu0 0
  %2769 = vmatmul.mubr.bf16.gmra.mrb[0].mxu0 %v2611
  %v2770 = vpop.f32.mrb[0].mxu0
  %v2771 = vadd.f32 %v2689, %v2770
  %v2772 = vpop.f32.mrb[0].mxu0
  %v2773 = vadd.f32 %v2691, %v2772
  %v2774 = vpop.f32.mrb[0].mxu0
  %v2775 = vpop.f32.mrb[0].mxu0
  %2776 = vdwg.mxu0
  %v2777 = vadd.f32 %v2730, %v130
  %v2778 = vadd.f32 %v2732, %v134
  %v2779 = vadd.f32 %v2771, %v138
  %v2780 = vadd.f32 %v2773, %v142
  %v2781 = vxor.u32 %v2777, 2147483648
  %v2782 = vmul.f32 %v2781, 1.442695
  %v2783 = vpow.pop %v2782
  %v2784 = vadd.f32 %v2783, 1.0
  %v2785 = vrcp.pop %v2784
  %v2786 = vmul.f32 1.0, %v2785
  %v2787 = vxor.u32 %v2778, 2147483648
  %v2788 = vmul.f32 %v2787, 1.442695
  %v2789 = vpow.pop %v2788
  %v2790 = vadd.f32 %v2789, 1.0
  %v2791 = vrcp.pop %v2790
  %v2792 = vmul.f32 1.0, %v2791
  %v2793 = vtanh.pop %v2779
  %v2794 = vxor.u32 %v2780, 2147483648
  %v2795 = vmul.f32 %v2794, 1.442695
  %v2796 = vpow.pop %v2795
  %v2797 = vadd.f32 %v2796, 1.0
  %v2798 = vrcp.pop %v2797
  %v2799 = vmul.f32 1.0, %v2798
  %v2800 = vmul.f32 %v2792, %v2491
  %v2801 = vmul.f32 %v2786, %v2793
  %v2802 = vadd.f32 %v2800, %v2801
  %v2803 = vtanh.pop %v2802
  %v2804 = vmul.f32 %v2799, %v2803
  %s2805 = scalar_lea.vmem %s5, 48
  %2806 = vst [vmem:[%s2805] sm:$0xff] %v2804
  %s2807 = scalar_lea.vmem %s0, 224
  %v2808 = vld [vmem:[%s2807] sm:$0xff]
  %v2809 = vld [vmem:[%s2807 + $0x8] sm:$0xff]
  %v2810 = vld [vmem:[%s2807 + $0x10] sm:$0xff]
  %v2811 = vld [vmem:[%s2807 + $0x18] sm:$0xff]
  %2812 = vmatprep.subr.bf16.mxu0 %v253
  %2813 = vmatpush1.bf16.msra.mxu0 %v252
  %2814 = vmatprep.subr.bf16.mxu0 %v257
  %2815 = vmatpush1.bf16.msra.mxu0 %v256
  %2816 = vmatprep.subr.bf16.mxu0 %v261
  %2817 = vmatpush1.bf16.msra.mxu0 %v260
  %2818 = vmatprep.subr.bf16.mxu0 %v265
  %2819 = vmatpush1.bf16.msra.mxu0 %v264
  %2820 = vmatprep.subr.bf16.mxu0 %v269
  %2821 = vmatpush1.bf16.msra.mxu0 %v268
  %2822 = vmatprep.subr.bf16.mxu0 %v273
  %2823 = vmatpush1.bf16.msra.mxu0 %v272
  %2824 = vmatprep.subr.bf16.mxu0 %v277
  %2825 = vmatpush1.bf16.msra.mxu0 %v276
  %2826 = vmatprep.subr.bf16.mxu0 %v281
  %2827 = vmatpush1.bf16.msra.mxu0 %v280
  %2828 = vmatprep.subr.bf16.mxu0 0
  %2829 = vmatpush1.bf16.msra.mxu0 0
  %2830 = vmatprep.subr.bf16.mxu0 0
  %2831 = vmatpush1.bf16.msra.mxu0 0
  %2832 = vmatprep.subr.bf16.mxu0 0
  %2833 = vmatpush1.bf16.msra.mxu0 0
  %2834 = vmatprep.subr.bf16.mxu0 0
  %2835 = vmatpush1.bf16.msra.mxu0 0
  %2836 = vmatprep.subr.bf16.mxu0 0
  %2837 = vmatpush1.bf16.msra.mxu0 0
  %2838 = vmatprep.subr.bf16.mxu0 0
  %2839 = vmatpush1.bf16.msra.mxu0 0
  %2840 = vmatprep.subr.bf16.mxu0 0
  %2841 = vmatpush1.bf16.msra.mxu0 0
  %2842 = vmatprep.subr.bf16.mxu0 0
  %2843 = vmatpush1.bf16.msra.mxu0 0
  %2844 = vmatprep.mubr.bf16.mxu0 0
  %2845 = vmatmul.mubr.bf16.gmra.mrb[0].mxu0 %v2611
  %v2846 = vpop.f32.mrb[0].mxu0
  %v2847 = vadd.f32 0.0, %v2846
  %v2848 = vpop.f32.mrb[0].mxu0
  %v2849 = vadd.f32 0.0, %v2848
  %v2850 = vpop.f32.mrb[0].mxu0
  %v2851 = vpop.f32.mrb[0].mxu0
  %2852 = vdwg.mxu0
  %2853 = vmatprep.subr.bf16.mxu0 %v255
  %2854 = vmatpush1.bf16.msra.mxu0 %v254
  %2855 = vmatprep.subr.bf16.mxu0 %v259
  %2856 = vmatpush1.bf16.msra.mxu0 %v258
  %2857 = vmatprep.subr.bf16.mxu0 %v263
  %2858 = vmatpush1.bf16.msra.mxu0 %v262
  %2859 = vmatprep.subr.bf16.mxu0 %v267
  %2860 = vmatpush1.bf16.msra.mxu0 %v266
  %2861 = vmatprep.subr.bf16.mxu0 %v271
  %2862 = vmatpush1.bf16.msra.mxu0 %v270
  %2863 = vmatprep.subr.bf16.mxu0 %v275
  %2864 = vmatpush1.bf16.msra.mxu0 %v274
  %2865 = vmatprep.subr.bf16.mxu0 %v279
  %2866 = vmatpush1.bf16.msra.mxu0 %v278
  %2867 = vmatprep.subr.bf16.mxu0 %v283
  %2868 = vmatpush1.bf16.msra.mxu0 %v282
  %2869 = vmatprep.subr.bf16.mxu0 0
  %2870 = vmatpush1.bf16.msra.mxu0 0
  %2871 = vmatprep.subr.bf16.mxu0 0
  %2872 = vmatpush1.bf16.msra.mxu0 0
  %2873 = vmatprep.subr.bf16.mxu0 0
  %2874 = vmatpush1.bf16.msra.mxu0 0
  %2875 = vmatprep.subr.bf16.mxu0 0
  %2876 = vmatpush1.bf16.msra.mxu0 0
  %2877 = vmatprep.subr.bf16.mxu0 0
  %2878 = vmatpush1.bf16.msra.mxu0 0
  %2879 = vmatprep.subr.bf16.mxu0 0
  %2880 = vmatpush1.bf16.msra.mxu0 0
  %2881 = vmatprep.subr.bf16.mxu0 0
  %2882 = vmatpush1.bf16.msra.mxu0 0
  %2883 = vmatprep.subr.bf16.mxu0 0
  %2884 = vmatpush1.bf16.msra.mxu0 0
  %2885 = vmatprep.mubr.bf16.mxu0 0
  %2886 = vmatmul.mubr.bf16.gmra.mrb[0].mxu0 %v2611
  %v2887 = vpop.f32.mrb[0].mxu0
  %v2888 = vadd.f32 0.0, %v2887
  %v2889 = vpop.f32.mrb[0].mxu0
  %v2890 = vadd.f32 0.0, %v2889
  %v2891 = vpop.f32.mrb[0].mxu0
  %v2892 = vpop.f32.mrb[0].mxu0
  %2893 = vdwg.mxu0
  %v2894 = vadd.f32 %v2808, %v2847
  %v2895 = vadd.f32 %v2809, %v2849
  %v2896 = vadd.f32 %v2810, %v2888
  %v2897 = vadd.f32 %v2811, %v2890
  %v2898 = vxor.u32 %v2894, 2147483648
  %v2899 = vmul.f32 %v2898, 1.442695
  %v2900 = vpow.pop %v2899
  %v2901 = vadd.f32 %v2900, 1.0
  %v2902 = vrcp.pop %v2901
  %v2903 = vmul.f32 1.0, %v2902
  %v2904 = vxor.u32 %v2895, 2147483648
  %v2905 = vmul.f32 %v2904, 1.442695
  %v2906 = vpow.pop %v2905
  %v2907 = vadd.f32 %v2906, 1.0
  %v2908 = vrcp.pop %v2907
  %v2909 = vmul.f32 1.0, %v2908
  %v2910 = vtanh.pop %v2896
  %v2911 = vxor.u32 %v2897, 2147483648
  %v2912 = vmul.f32 %v2911, 1.442695
  %v2913 = vpow.pop %v2912
  %v2914 = vadd.f32 %v2913, 1.0
  %v2915 = vrcp.pop %v2914
  %v2916 = vmul.f32 1.0, %v2915
  %v2917 = vmul.f32 %v2909, %v2608
  %v2918 = vmul.f32 %v2903, %v2910
  %v2919 = vadd.f32 %v2917, %v2918
  %v2920 = vtanh.pop %v2919
  %v2921 = vmul.f32 %v2916, %v2920
  %v2922 = vpack.c.bf16 %v2921, %v2921
  %v2923 = vpack.c.bf16 %v2804, %v2804
  %2924 = vmatprep.subr.bf16.mxu0 %v525
  %2925 = vmatpush1.bf16.msra.mxu0 %v524
  %2926 = vmatprep.subr.bf16.mxu0 %v529
  %2927 = vmatpush1.bf16.msra.mxu0 %v528
  %2928 = vmatprep.subr.bf16.mxu0 %v533
  %2929 = vmatpush1.bf16.msra.mxu0 %v532
  %2930 = vmatprep.subr.bf16.mxu0 %v537
  %2931 = vmatpush1.bf16.msra.mxu0 %v536
  %2932 = vmatprep.subr.bf16.mxu0 %v541
  %2933 = vmatpush1.bf16.msra.mxu0 %v540
  %2934 = vmatprep.subr.bf16.mxu0 %v545
  %2935 = vmatpush1.bf16.msra.mxu0 %v544
  %2936 = vmatprep.subr.bf16.mxu0 %v549
  %2937 = vmatpush1.bf16.msra.mxu0 %v548
  %2938 = vmatprep.subr.bf16.mxu0 %v553
  %2939 = vmatpush1.bf16.msra.mxu0 %v552
  %2940 = vmatprep.subr.bf16.mxu0 0
  %2941 = vmatpush1.bf16.msra.mxu0 0
  %2942 = vmatprep.subr.bf16.mxu0 0
  %2943 = vmatpush1.bf16.msra.mxu0 0
  %2944 = vmatprep.subr.bf16.mxu0 0
  %2945 = vmatpush1.bf16.msra.mxu0 0
  %2946 = vmatprep.subr.bf16.mxu0 0
  %2947 = vmatpush1.bf16.msra.mxu0 0
  %2948 = vmatprep.subr.bf16.mxu0 0
  %2949 = vmatpush1.bf16.msra.mxu0 0
  %2950 = vmatprep.subr.bf16.mxu0 0
  %2951 = vmatpush1.bf16.msra.mxu0 0
  %2952 = vmatprep.subr.bf16.mxu0 0
  %2953 = vmatpush1.bf16.msra.mxu0 0
  %2954 = vmatprep.subr.bf16.mxu0 0
  %2955 = vmatpush1.bf16.msra.mxu0 0
  %2956 = vmatprep.mubr.bf16.mxu0 0
  %2957 = vmatmul.mubr.bf16.gmra.mrb[0].mxu0 %v2923
  %v2958 = vpop.f32.mrb[0].mxu0
  %v2959 = vadd.f32 0.0, %v2958
  %v2960 = vpop.f32.mrb[0].mxu0
  %v2961 = vadd.f32 0.0, %v2960
  %v2962 = vpop.f32.mrb[0].mxu0
  %v2963 = vpop.f32.mrb[0].mxu0
  %2964 = vdwg.mxu0
  %2965 = vmatprep.subr.bf16.mxu0 %v527
  %2966 = vmatpush1.bf16.msra.mxu0 %v526
  %2967 = vmatprep.subr.bf16.mxu0 %v531
  %2968 = vmatpush1.bf16.msra.mxu0 %v530
  %2969 = vmatprep.subr.bf16.mxu0 %v535
  %2970 = vmatpush1.bf16.msra.mxu0 %v534
  %2971 = vmatprep.subr.bf16.mxu0 %v539
  %2972 = vmatpush1.bf16.msra.mxu0 %v538
  %2973 = vmatprep.subr.bf16.mxu0 %v543
  %2974 = vmatpush1.bf16.msra.mxu0 %v542
  %2975 = vmatprep.subr.bf16.mxu0 %v547
  %2976 = vmatpush1.bf16.msra.mxu0 %v546
  %2977 = vmatprep.subr.bf16.mxu0 %v551
  %2978 = vmatpush1.bf16.msra.mxu0 %v550
  %2979 = vmatprep.subr.bf16.mxu0 %v555
  %2980 = vmatpush1.bf16.msra.mxu0 %v554
  %2981 = vmatprep.subr.bf16.mxu0 0
  %2982 = vmatpush1.bf16.msra.mxu0 0
  %2983 = vmatprep.subr.bf16.mxu0 0
  %2984 = vmatpush1.bf16.msra.mxu0 0
  %2985 = vmatprep.subr.bf16.mxu0 0
  %2986 = vmatpush1.bf16.msra.mxu0 0
  %2987 = vmatprep.subr.bf16.mxu0 0
  %2988 = vmatpush1.bf16.msra.mxu0 0
  %2989 = vmatprep.subr.bf16.mxu0 0
  %2990 = vmatpush1.bf16.msra.mxu0 0
  %2991 = vmatprep.subr.bf16.mxu0 0
  %2992 = vmatpush1.bf16.msra.mxu0 0
  %2993 = vmatprep.subr.bf16.mxu0 0
  %2994 = vmatpush1.bf16.msra.mxu0 0
  %2995 = vmatprep.subr.bf16.mxu0 0
  %2996 = vmatpush1.bf16.msra.mxu0 0
  %2997 = vmatprep.mubr.bf16.mxu0 0
  %2998 = vmatmul.mubr.bf16.gmra.mrb[0].mxu0 %v2923
  %v2999 = vpop.f32.mrb[0].mxu0
  %v3000 = vadd.f32 0.0, %v2999
  %v3001 = vpop.f32.mrb[0].mxu0
  %v3002 = vadd.f32 0.0, %v3001
  %v3003 = vpop.f32.mrb[0].mxu0
  %v3004 = vpop.f32.mrb[0].mxu0
  %3005 = vdwg.mxu0
  %3006 = vmatprep.subr.bf16.mxu0 %v767
  %3007 = vmatpush1.bf16.msra.mxu0 %v766
  %3008 = vmatprep.subr.bf16.mxu0 %v771
  %3009 = vmatpush1.bf16.msra.mxu0 %v770
  %3010 = vmatprep.subr.bf16.mxu0 %v775
  %3011 = vmatpush1.bf16.msra.mxu0 %v774
  %3012 = vmatprep.subr.bf16.mxu0 %v779
  %3013 = vmatpush1.bf16.msra.mxu0 %v778
  %3014 = vmatprep.subr.bf16.mxu0 %v783
  %3015 = vmatpush1.bf16.msra.mxu0 %v782
  %3016 = vmatprep.subr.bf16.mxu0 %v787
  %3017 = vmatpush1.bf16.msra.mxu0 %v786
  %3018 = vmatprep.subr.bf16.mxu0 %v791
  %3019 = vmatpush1.bf16.msra.mxu0 %v790
  %3020 = vmatprep.subr.bf16.mxu0 %v795
  %3021 = vmatpush1.bf16.msra.mxu0 %v794
  %3022 = vmatprep.subr.bf16.mxu0 0
  %3023 = vmatpush1.bf16.msra.mxu0 0
  %3024 = vmatprep.subr.bf16.mxu0 0
  %3025 = vmatpush1.bf16.msra.mxu0 0
  %3026 = vmatprep.subr.bf16.mxu0 0
  %3027 = vmatpush1.bf16.msra.mxu0 0
  %3028 = vmatprep.subr.bf16.mxu0 0
  %3029 = vmatpush1.bf16.msra.mxu0 0
  %3030 = vmatprep.subr.bf16.mxu0 0
  %3031 = vmatpush1.bf16.msra.mxu0 0
  %3032 = vmatprep.subr.bf16.mxu0 0
  %3033 = vmatpush1.bf16.msra.mxu0 0
  %3034 = vmatprep.subr.bf16.mxu0 0
  %3035 = vmatpush1.bf16.msra.mxu0 0
  %3036 = vmatprep.subr.bf16.mxu0 0
  %3037 = vmatpush1.bf16.msra.mxu0 0
  %3038 = vmatprep.mubr.bf16.mxu0 0
  %3039 = vmatmul.mubr.bf16.gmra.mrb[0].mxu0 %v2922
  %v3040 = vpop.f32.mrb[0].mxu0
  %v3041 = vadd.f32 %v2959, %v3040
  %v3042 = vpop.f32.mrb[0].mxu0
  %v3043 = vadd.f32 %v2961, %v3042
  %v3044 = vpop.f32.mrb[0].mxu0
  %v3045 = vpop.f32.mrb[0].mxu0
  %3046 = vdwg.mxu0
  %3047 = vmatprep.subr.bf16.mxu0 %v769
  %3048 = vmatpush1.bf16.msra.mxu0 %v768
  %3049 = vmatprep.subr.bf16.mxu0 %v773
  %3050 = vmatpush1.bf16.msra.mxu0 %v772
  %3051 = vmatprep.subr.bf16.mxu0 %v777
  %3052 = vmatpush1.bf16.msra.mxu0 %v776
  %3053 = vmatprep.subr.bf16.mxu0 %v781
  %3054 = vmatpush1.bf16.msra.mxu0 %v780
  %3055 = vmatprep.subr.bf16.mxu0 %v785
  %3056 = vmatpush1.bf16.msra.mxu0 %v784
  %3057 = vmatprep.subr.bf16.mxu0 %v789
  %3058 = vmatpush1.bf16.msra.mxu0 %v788
  %3059 = vmatprep.subr.bf16.mxu0 %v793
  %3060 = vmatpush1.bf16.msra.mxu0 %v792
  %3061 = vmatprep.subr.bf16.mxu0 %v797
  %3062 = vmatpush1.bf16.msra.mxu0 %v796
  %3063 = vmatprep.subr.bf16.mxu0 0
  %3064 = vmatpush1.bf16.msra.mxu0 0
  %3065 = vmatprep.subr.bf16.mxu0 0
  %3066 = vmatpush1.bf16.msra.mxu0 0
  %3067 = vmatprep.subr.bf16.mxu0 0
  %3068 = vmatpush1.bf16.msra.mxu0 0
  %3069 = vmatprep.subr.bf16.mxu0 0
  %3070 = vmatpush1.bf16.msra.mxu0 0
  %3071 = vmatprep.subr.bf16.mxu0 0
  %3072 = vmatpush1.bf16.msra.mxu0 0
  %3073 = vmatprep.subr.bf16.mxu0 0
  %3074 = vmatpush1.bf16.msra.mxu0 0
  %3075 = vmatprep.subr.bf16.mxu0 0
  %3076 = vmatpush1.bf16.msra.mxu0 0
  %3077 = vmatprep.subr.bf16.mxu0 0
  %3078 = vmatpush1.bf16.msra.mxu0 0
  %3079 = vmatprep.mubr.bf16.mxu0 0
  %3080 = vmatmul.mubr.bf16.gmra.mrb[0].mxu0 %v2922
  %v3081 = vpop.f32.mrb[0].mxu0
  %v3082 = vadd.f32 %v3000, %v3081
  %v3083 = vpop.f32.mrb[0].mxu0
  %v3084 = vadd.f32 %v3002, %v3083
  %v3085 = vpop.f32.mrb[0].mxu0
  %v3086 = vpop.f32.mrb[0].mxu0
  %3087 = vdwg.mxu0
  %v3088 = vadd.f32 %v3041, %v130
  %v3089 = vadd.f32 %v3043, %v134
  %v3090 = vadd.f32 %v3082, %v138
  %v3091 = vadd.f32 %v3084, %v142
  %v3092 = vxor.u32 %v3088, 2147483648
  %v3093 = vmul.f32 %v3092, 1.442695
  %v3094 = vpow.pop %v3093
  %v3095 = vadd.f32 %v3094, 1.0
  %v3096 = vrcp.pop %v3095
  %v3097 = vmul.f32 1.0, %v3096
  %v3098 = vxor.u32 %v3089, 2147483648
  %v3099 = vmul.f32 %v3098, 1.442695
  %v3100 = vpow.pop %v3099
  %v3101 = vadd.f32 %v3100, 1.0
  %v3102 = vrcp.pop %v3101
  %v3103 = vmul.f32 1.0, %v3102
  %v3104 = vtanh.pop %v3090
  %v3105 = vxor.u32 %v3091, 2147483648
  %v3106 = vmul.f32 %v3105, 1.442695
  %v3107 = vpow.pop %v3106
  %v3108 = vadd.f32 %v3107, 1.0
  %v3109 = vrcp.pop %v3108
  %v3110 = vmul.f32 1.0, %v3109
  %v3111 = vmul.f32 %v3103, %v2802
  %v3112 = vmul.f32 %v3097, %v3104
  %v3113 = vadd.f32 %v3111, %v3112
  %v3114 = vtanh.pop %v3113
  %v3115 = vmul.f32 %v3110, %v3114
  %s3116 = scalar_lea.vmem %s5, 56
  %3117 = vst [vmem:[%s3116] sm:$0xff] %v3115
  %3118 = vst [vmem:[#allocation2] sm:$0xff] %v2921
  %3119 = vst [vmem:[#allocation3] sm:$0xff] %v2919
  %3120 = vst [vmem:[#allocation4] sm:$0xff] %v3115
  %3121 = vst [vmem:[#allocation5] sm:$0xff] %v3113
  // Predicated region
  $region26: #{decoder_rnn_forward.4} parent=0 // pred_check
    _
  $region27: #{decoder_rnn_forward.4} parent=0 // pred_check_branch
    %3123 = sbr.rel (0) target = $region29
  $region28: #{decoder_rnn_forward.4} parent=0 // pred_region
    _
  $region29: #{decoder_rnn_forward.4} parent=0 // pred_fallthru
    _
  // Predicated region
  $region30: #{decoder_rnn_forward.4} parent=0 // pred_check
    _
  $region31: #{decoder_rnn_forward.4} parent=0 // pred_check_branch
    %3125 = sbr.rel (0) target = $region33
  $region32: #{decoder_rnn_forward.4} parent=0 // pred_region
    _
  $region33: #{decoder_rnn_forward.4} parent=0 // pred_fallthru
    _

</llo_original>
